<compile_context>
chip_gen: v6e
topology: v6e:2x2x1
jax: 0.10.0
libtpu: 0.0.40
codegen_flags: <defaults>
</compile_context>

<pallas_src>
import functools

import jax
import jax.numpy as jnp
from jax.experimental import pallas as pl
from jax.experimental.pallas import tpu as pltpu


def _round_up(x, m):
    return ((x + m - 1) // m) * m


# ----------------------------------------------------------------------------
# Fused kernel: conv1 matmul -> (in-kernel im2col) conv2 -> conv3 -> flatten
# -> fc -> value head.  Everything stays in VMEM.
# ----------------------------------------------------------------------------
def _ppo_value_kernel(
    # activations
    p1_ref, goal_ref,
    # conv weights / biases (pre-flattened HWIO, K pre-padded to 128 multiples)
    w1_ref, b1_ref, w2_ref, b2_ref, w3_ref, b3_ref,
    # fc + value head (pre-permuted / pre-padded)
    fcw_ref, fcb_ref, v1wf_ref, v1wg_ref, v1b_ref, v2w_ref, v2b_ref,
    v3w_ref, v3b_ref,
    # output
    out_ref,
    # VMEM scratch
    y1pad_ref, p2_ref, y2pad_ref, p3_ref, xflat_ref,
    *, B, H1, W1, C1, H2, W2, C2, H3, W3, C3,
):
    f32 = jnp.float32

    def dense(x, w_ref, b_ref, relu=True):
        y = jnp.dot(x, w_ref[...], preferred_element_type=f32) + b_ref[...]
        return jnp.maximum(y, 0.0) if relu else y

    # ---------------- conv1 (patches precomputed in the wrapper) -------------
    y1 = dense(p1_ref[...], w1_ref, b1_ref)          # (B*H1*W1, C1), NHWC rows

    # Scatter conv1 output into a zero-padded (pad=1) row-major image so that
    # conv2's im2col below becomes cheap in-VMEM row-window copies.
    Hp1, Wp1 = H1 + 2, W1 + 2
    y1pad_ref[...] = jnp.zeros((B * Hp1 * Wp1, C1), f32)
    for b in range(B):
        for h in range(H1):
            dst = b * Hp1 * Wp1 + (h + 1) * Wp1 + 1
            src = (b * H1 + h) * W1
            y1pad_ref[pl.ds(dst, W1), :] = y1[src:src + W1, :]

    # ---------------- conv2: k=4, s=2, p=1 (in-kernel im2col + matmul) -------
    p2_ref[...] = jnp.zeros(p2_ref.shape, f32)
    for i in range(4):
        for j in range(4):
            col = (i * 4 + j) * C1
            for b in range(B):
                for ho in range(H2):
                    src = b * Hp1 * Wp1 + (2 * ho + i) * Wp1 + j
                    dst = (b * H2 + ho) * W2
                    # stride-2 row gather straight out of VMEM
                    p2_ref[pl.ds(dst, W2), pl.ds(col, C1)] = (
                        y1pad_ref[pl.ds(src, W2, stride=2), :])
    y2 = dense(p2_ref[...], w2_ref, b2_ref)          # (B*H2*W2, C2)

    Hp2, Wp2 = H2 + 2, W2 + 2
    y2pad_ref[...] = jnp.zeros((B * Hp2 * Wp2, C2), f32)
    for b in range(B):
        for h in range(H2):
            dst = b * Hp2 * Wp2 + (h + 1) * Wp2 + 1
            src = (b * H2 + h) * W2
            y2pad_ref[pl.ds(dst, W2), :] = y2[src:src + W2, :]

    # ---------------- conv3: k=3, s=1, p=1 (in-kernel im2col + matmul) -------
    p3_ref[...] = jnp.zeros(p3_ref.shape, f32)
    for i in range(3):
        for j in range(3):
            col = (i * 3 + j) * C2
            for b in range(B):
                for ho in range(H3):
                    src = b * Hp2 * Wp2 + (ho + i) * Wp2 + j
                    dst = (b * H3 + ho) * W3
                    p3_ref[pl.ds(dst, W3), pl.ds(col, C2)] = (
                        y2pad_ref[pl.ds(src, W3), :])
    y3 = dense(p3_ref[...], w3_ref, b3_ref)          # (B*H3*W3, C3)

    # ---------------- NHWC flatten into a sublane-padded (Bp, K) tile --------
    # fc_w rows were permuted at prep time to consume this NHWC order, so no
    # runtime transpose is needed (matches torch's x.view(B, -1) exactly).
    xflat_ref[...] = jnp.zeros(xflat_ref.shape, f32)
    for b in range(B):
        for r in range(H3 * W3):
            src = b * H3 * W3 + r
            xflat_ref[pl.ds(b, 1), pl.ds(r * C3, C3)] = y3[src:src + 1, :]

    # ---------------- fc + value head, back-to-back on padded tiles ----------
    feat = dense(xflat_ref[...], fcw_ref, fcb_ref)                       # (Bp, F)
    h = jnp.dot(feat, v1wf_ref[...], preferred_element_type=f32)
    h = h + jnp.dot(goal_ref[...], v1wg_ref[...], preferred_element_type=f32)
    h = jnp.maximum(h + v1b_ref[...], 0.0)                               # (Bp, 256)
    h = dense(h, v2w_ref, v2b_ref)                                       # (Bp, 128)
    out_ref[...] = dense(h, v3w_ref, v3b_ref, relu=False)                # (Bp, 128)


# ----------------------------------------------------------------------------
# conv1 im2col (runs in XLA inside the jitted wrapper; output is the kernel's
# single activation operand).
# ----------------------------------------------------------------------------
def _conv1_patches(x_nhwc, kh, kw, stride, pad):
    B, H, W, C = x_nhwc.shape
    xp = jnp.pad(x_nhwc, ((0, 0), (pad, pad), (pad, pad), (0, 0)))
    Ho = (H + 2 * pad - kh) // stride + 1
    Wo = (W + 2 * pad - kw) // stride + 1
    cols = []
    for i in range(kh):
        for j in range(kw):
            cols.append(jax.lax.slice(
                xp, (0, i, j, 0),
                (B, i + (Ho - 1) * stride + 1, j + (Wo - 1) * stride + 1, C),
                (1, stride, stride, 1)))
    patches = jnp.concatenate(cols, axis=-1)      # (B, Ho, Wo, kh*kw*C), (i,j,c) order
    return patches.reshape(B * Ho * Wo, kh * kw * C), Ho, Wo


# ----------------------------------------------------------------------------
# Forward pass
# ----------------------------------------------------------------------------
def ppo_value_forward(prepared, images_nchw, goal_vec):
    B, _Cin, H, W = images_nchw.shape
    x = jnp.transpose(images_nchw, (0, 2, 3, 1)).astype(jnp.float32)   # NHWC

    # conv1 im2col (XLA, fused under jit); pad K to the pre-padded w1.
    p1, H1, W1 = _conv1_patches(x, kh=8, kw=8, stride=4, pad=2)
    K1p = prepared["w1"].shape[0]
    assert K1p >= p1.shape[1]
    if p1.shape[1] != K1p:
        p1 = jnp.pad(p1, ((0, 0), (0, K1p - p1.shape[1])))

    C1 = prepared["w1"].shape[1]
    C2 = prepared["w2"].shape[1]
    C3 = prepared["w3"].shape[1]
    H2, W2 = (H1 + 2 - 4) // 2 + 1, (W1 + 2 - 4) // 2 + 1
    H3, W3 = (H2 + 2 - 3) // 1 + 1, (W2 + 2 - 3) // 1 + 1
    conv_out = C3 * H3 * W3
    assert prepared["fcw"].shape[0] == conv_out, (prepared["fcw"].shape, conv_out)

    Bp = max(8, _round_up(B, 8))             # sublane-padded batch for dense path
    Kg = prepared["v1wg"].shape[0]           # lane-padded goal width (128)
    G = goal_vec.shape[1]
    goal_p = jnp.pad(goal_vec.astype(jnp.float32), ((0, Bp - B), (0, Kg - G)))

    F = prepared["fcw"].shape[1]
    NO = prepared["v3w"].shape[1]            # lane-padded value output (128)

    operands = [
        p1, goal_p,
        prepared["w1"], prepared["b1"], prepared["w2"], prepared["b2"],
        prepared["w3"], prepared["b3"],
        prepared["fcw"], prepared["fcb"],
        prepared["v1wf"], prepared["v1wg"], prepared["v1b"],
        prepared["v2w"], prepared["v2b"], prepared["v3w"], prepared["v3b"],
    ]

    kernel = functools.partial(
        _ppo_value_kernel,
        B=B, H1=H1, W1=W1, C1=C1, H2=H2, W2=W2, C2=C2, H3=H3, W3=W3, C3=C3)

    def mm_flops(m, k, n):
        return 2 * m * k * n

    flops = (mm_flops(B * H1 * W1, K1p, C1)
             + mm_flops(B * H2 * W2, prepared["w2"].shape[0], C2)
             + mm_flops(B * H3 * W3, prepared["w3"].shape[0], C3)
             + mm_flops(Bp, conv_out, F)
             + mm_flops(Bp, F, prepared["v1wf"].shape[1])
             + mm_flops(Bp, Kg, prepared["v1wg"].shape[1])
             + mm_flops(Bp, prepared["v2w"].shape[0], prepared["v2w"].shape[1])
             + mm_flops(Bp, prepared["v3w"].shape[0], NO))
    bytes_accessed = sum(int(o.size) * 4 for o in operands) + Bp * NO * 4

    out = pl.pallas_call(
        kernel,
        out_shape=jax.ShapeDtypeStruct((Bp, NO), jnp.float32),
        in_specs=[pl.BlockSpec(o.shape, lambda: (0, 0)) for o in operands],
        out_specs=pl.BlockSpec((Bp, NO), lambda: (0, 0)),
        scratch_shapes=[
            pltpu.VMEM((B * (H1 + 2) * (W1 + 2), C1), jnp.float32),           # y1pad
            pltpu.VMEM((B * H2 * W2, prepared["w2"].shape[0]), jnp.float32),  # p2
            pltpu.VMEM((B * (H2 + 2) * (W2 + 2), C2), jnp.float32),           # y2pad
            pltpu.VMEM((B * H3 * W3, prepared["w3"].shape[0]), jnp.float32),  # p3
            pltpu.VMEM((Bp, conv_out), jnp.float32),                          # xflat
        ],
        compiler_params=pltpu.CompilerParams(vmem_limit_bytes=32 * 1024 * 1024),
        cost_estimate=pl.CostEstimate(
            flops=int(flops), transcendentals=0, bytes_accessed=int(bytes_accessed)),
    )(*operands)

    # TODO(synk): for non-toy batches, tile the row axis with a grid and
    # dimension_semantics=("parallel",) so both v7x TensorCores are used.
    return out[:B, :1]


# ----------------------------------------------------------------------------
# One-time parameter preparation (hoists all padding / permutation out of the
# forward pass).  Input layouts are exactly PyTorch's: conv OIHW, Linear (out, in).
# ----------------------------------------------------------------------------
def prepare_params(tp, *, input_hw, goal_vec_dim):
    f32 = jnp.float32

    def conv_mat(w_oihw):
        o, i, kh, kw = w_oihw.shape
        m = jnp.transpose(w_oihw, (2, 3, 1, 0)).reshape(kh * kw * i, o).astype(f32)
        kp = _round_up(m.shape[0], 128)
        return jnp.pad(m, ((0, kp - m.shape[0]), (0, 0)))

    def row(b):
        return b.astype(f32).reshape(1, -1)

    H, W = input_hw
    H1, W1 = (H + 4 - 8) // 4 + 1, (W + 4 - 8) // 4 + 1
    H2, W2 = (H1 + 2 - 4) // 2 + 1, (W1 + 2 - 4) // 2 + 1
    H3, W3 = (H2 + 2 - 3) // 1 + 1, (W2 + 2 - 3) // 1 + 1
    C3 = tp["conv3_w"].shape[0]
    F = tp["fc_w"].shape[0]
    assert tp["fc_w"].shape[1] == C3 * H3 * W3

    # fc_w: torch columns are NCHW-flatten (c,h,w); permute rows of the
    # transposed matrix to NHWC-flatten (h,w,c) so the kernel needs no
    # runtime transpose before the fc layer.
    fcw = jnp.transpose(tp["fc_w"]).astype(f32)                     # (C3*H3*W3, F)
    fcw = fcw.reshape(C3, H3, W3, F).transpose(1, 2, 0, 3).reshape(C3 * H3 * W3, F)

    v1 = jnp.transpose(tp["v1_w"]).astype(f32)                      # (F + G, 256)
    gkp = _round_up(max(goal_vec_dim, 1), 128)
    v1wg = jnp.pad(v1[F:], ((0, gkp - goal_vec_dim), (0, 0)))

    v3 = jnp.transpose(tp["v3_w"]).astype(f32)                      # (128, 1)
    n_out = _round_up(v3.shape[1], 128)
    v3w = jnp.pad(v3, ((0, 0), (0, n_out - v3.shape[1])))
    v3b = jnp.pad(row(tp["v3_b"]), ((0, 0), (0, n_out - v3.shape[1])))

    return {
        "w1": conv_mat(tp["conv1_w"]), "b1": row(tp["conv1_b"]),
        "w2": conv_mat(tp["conv2_w"]), "b2": row(tp["conv2_b"]),
        "w3": conv_mat(tp["conv3_w"]), "b3": row(tp["conv3_b"]),
        "fcw": fcw, "fcb": row(tp["fc_b"]),
        "v1wf": v1[:F], "v1wg": v1wg, "v1b": row(tp["v1_b"]),
        "v2w": jnp.transpose(tp["v2_w"]).astype(f32), "v2b": row(tp["v2_b"]),
        "v3w": v3w, "v3b": v3b,
    }


def make_torch_params(key, *, input_channels, input_hw, feature_dim, goal_vec_dim):
    """Synthetic parameters in exact PyTorch layouts (conv: OIHW, Linear: (out,in))."""
    H, W = input_hw

    def out_sz(n, k, s, p):
        return (n + 2 * p - k) // s + 1

    h1, w1 = out_sz(H, 8, 4, 2), out_sz(W, 8, 4, 2)
    h2, w2 = out_sz(h1, 4, 2, 1), out_sz(w1, 4, 2, 1)
    h3, w3 = out_sz(h2, 3, 1, 1), out_sz(w2, 3, 1, 1)
    conv_output_size = 64 * h3 * w3
    combined = feature_dim + goal_vec_dim

    keys = jax.random.split(key, 14)
    n = lambda k, s: 0.02 * jax.random.normal(k, s, dtype=jnp.float32)
    return {
        "conv1_w": n(keys[0], (32, input_channels, 8, 8)), "conv1_b": n(keys[1], (32,)),
        "conv2_w": n(keys[2], (64, 32, 4, 4)), "conv2_b": n(keys[3], (64,)),
        "conv3_w": n(keys[4], (64, 64, 3, 3)), "conv3_b": n(keys[5], (64,)),
        "fc_w": n(keys[6], (feature_dim, conv_output_size)), "fc_b": n(keys[7], (feature_dim,)),
        "v1_w": n(keys[8], (256, combined)), "v1_b": n(keys[9], (256,)),
        "v2_w": n(keys[10], (128, 256)), "v2_b": n(keys[11], (128,)),
        "v3_w": n(keys[12], (1, 128)), "v3_b": n(keys[13], (1,)),
    }


if __name__ == "__main__":
    # Small config consistent with the module: SENSOR_SIZE (W, H) = (32, 16)
    # -> images (B, 6, 16, 32) NCHW; conv chain (16,32)->(4,8)->(2,4)->(2,4),
    # conv_output_size = 64*2*4 = 512, feature_dim = 512, goal_vec_dim = 2.
    B, Cin, H, W = 2, 6, 16, 32
    feature_dim, goal_vec_dim = 512, 2

    key = jax.random.PRNGKey(0)
    k_img, k_goal, k_par = jax.random.split(key, 3)
    images = jax.random.normal(k_img, (B, Cin, H, W), dtype=jnp.float32)
    goal_vec = jax.random.normal(k_goal, (B, goal_vec_dim), dtype=jnp.float32)

    torch_params = make_torch_params(
        k_par, input_channels=Cin, input_hw=(H, W),
        feature_dim=feature_dim, goal_vec_dim=goal_vec_dim)
    prepared = prepare_params(torch_params, input_hw=(H, W), goal_vec_dim=goal_vec_dim)

    fwd = jax.jit(ppo_value_forward)
    value = jax.block_until_ready(fwd(prepared, images, goal_vec))

    assert value.shape == (B, 1), value.shape
    assert value.dtype == jnp.float32, value.dtype
    print("KERNEL_OK")
</pallas_src>

<mosaic_0001>
module attributes {stable_mosaic.version = 11 : i64} {
  func.func @_ppo_value_kernel(%arg0: memref<64x384xf32, #tpu.memory_space<vmem>>, %arg1: memref<8x128xf32, #tpu.memory_space<vmem>>, %arg2: memref<384x32xf32, #tpu.memory_space<vmem>>, %arg3: memref<1x32xf32, #tpu.memory_space<vmem>>, %arg4: memref<512x64xf32, #tpu.memory_space<vmem>>, %arg5: memref<1x64xf32, #tpu.memory_space<vmem>>, %arg6: memref<640x64xf32, #tpu.memory_space<vmem>>, %arg7: memref<1x64xf32, #tpu.memory_space<vmem>>, %arg8: memref<512x512xf32, #tpu.memory_space<vmem>>, %arg9: memref<1x512xf32, #tpu.memory_space<vmem>>, %arg10: memref<512x256xf32, #tpu.memory_space<vmem>>, %arg11: memref<128x256xf32, #tpu.memory_space<vmem>>, %arg12: memref<1x256xf32, #tpu.memory_space<vmem>>, %arg13: memref<256x128xf32, #tpu.memory_space<vmem>>, %arg14: memref<1x128xf32, #tpu.memory_space<vmem>>, %arg15: memref<128x128xf32, #tpu.memory_space<vmem>>, %arg16: memref<1x128xf32, #tpu.memory_space<vmem>>, %arg17: memref<8x128xf32, #tpu.memory_space<vmem>>, %arg18: memref<120x32xf32, #tpu.memory_space<vmem>>, %arg19: memref<16x512xf32, #tpu.memory_space<vmem>>, %arg20: memref<48x64xf32, #tpu.memory_space<vmem>>, %arg21: memref<16x640xf32, #tpu.memory_space<vmem>>, %arg22: memref<8x512xf32, #tpu.memory_space<vmem>>) attributes {dimension_semantics = [], scalar_prefetch = 0 : i64, scratch_operands = 5 : i64, tpu.core_type = #tpu.core_type<tc>} {
    %c0 = arith.constant 0 : index
    %c0_0 = arith.constant 0 : index
    %0 = vector.load %arg0[%c0, %c0_0] : memref<64x384xf32, #tpu.memory_space<vmem>>, vector<64x384xf32>
    %c0_1 = arith.constant 0 : index
    %c0_2 = arith.constant 0 : index
    %1 = vector.load %arg2[%c0_1, %c0_2] : memref<384x32xf32, #tpu.memory_space<vmem>>, vector<384x32xf32>
    %cst = arith.constant dense<0.000000e+00> : vector<64x32xf32>
    %2 = tpu.matmul %0, %1, %cst {dimension_numbers = #tpu.dot_dimension_numbers<[1], [0], [0], [1], [0, 0, 1, 1], [], []>} : vector<64x384xf32>, vector<384x32xf32>, vector<64x32xf32> -> vector<64x32xf32>
    %c0_3 = arith.constant 0 : index
    %c0_4 = arith.constant 0 : index
    %3 = vector.load %arg3[%c0_3, %c0_4] : memref<1x32xf32, #tpu.memory_space<vmem>>, vector<1x32xf32>
    %4 = vector.broadcast %3 : vector<1x32xf32> to vector<64x32xf32>
    %5 = arith.addf %2, %4 : vector<64x32xf32>
    %cst_5 = arith.constant 0.000000e+00 : f32
    %6 = vector.broadcast %cst_5 : f32 to vector<64x32xf32>
    %7 = arith.maximumf %5, %6 : vector<64x32xf32>
    %cst_6 = arith.constant 0.000000e+00 : f32
    %8 = vector.broadcast %cst_6 : f32 to vector<120x32xf32>
    %c0_7 = arith.constant 0 : index
    %c0_8 = arith.constant 0 : index
    %9 = vector.load %arg18[%c0_7, %c0_8] : memref<120x32xf32, #tpu.memory_space<vmem>>, vector<120x32xf32>
    tpu.vector_store %arg18[%c0_7, %c0_8], %8 {strides = array<i32>} : memref<120x32xf32, #tpu.memory_space<vmem>>, vector<120x32xf32>,
    %10 = vector.extract_strided_slice %7 {offsets = [0, 0], sizes = [8, 32], strides = [1, 1]} : vector<64x32xf32> to vector<8x32xf32>
    %c11 = arith.constant 11 : index
    %c0_9 = arith.constant 0 : index
    %11 = vector.load %arg18[%c11, %c0_9] : memref<120x32xf32, #tpu.memory_space<vmem>>, vector<8x32xf32>
    tpu.vector_store %arg18[%c11, %c0_9], %10 {strides = array<i32>} : memref<120x32xf32, #tpu.memory_space<vmem>>, vector<8x32xf32>,
    %12 = vector.extract_strided_slice %7 {offsets = [8, 0], sizes = [8, 32], strides = [1, 1]} : vector<64x32xf32> to vector<8x32xf32>
    %c21 = arith.constant 21 : index
    %c0_10 = arith.constant 0 : index
    %13 = vector.load %arg18[%c21, %c0_10] : memref<120x32xf32, #tpu.memory_space<vmem>>, vector<8x32xf32>
    tpu.vector_store %arg18[%c21, %c0_10], %12 {strides = array<i32>} : memref<120x32xf32, #tpu.memory_space<vmem>>, vector<8x32xf32>,
    %14 = vector.extract_strided_slice %7 {offsets = [16, 0], sizes = [8, 32], strides = [1, 1]} : vector<64x32xf32> to vector<8x32xf32>
    %c31 = arith.constant 31 : index
    %c0_11 = arith.constant 0 : index
    %15 = vector.load %arg18[%c31, %c0_11] : memref<120x32xf32, #tpu.memory_space<vmem>>, vector<8x32xf32>
    tpu.vector_store %arg18[%c31, %c0_11], %14 {strides = array<i32>} : memref<120x32xf32, #tpu.memory_space<vmem>>, vector<8x32xf32>,
    %16 = vector.extract_strided_slice %7 {offsets = [24, 0], sizes = [8, 32], strides = [1, 1]} : vector<64x32xf32> to vector<8x32xf32>
    %c41 = arith.constant 41 : index
    %c0_12 = arith.constant 0 : index
    %17 = vector.load %arg18[%c41, %c0_12] : memref<120x32xf32, #tpu.memory_space<vmem>>, vector<8x32xf32>
    tpu.vector_store %arg18[%c41, %c0_12], %16 {strides = array<i32>} : memref<120x32xf32, #tpu.memory_space<vmem>>, vector<8x32xf32>,
    %18 = vector.extract_strided_slice %7 {offsets = [32, 0], sizes = [8, 32], strides = [1, 1]} : vector<64x32xf32> to vector<8x32xf32>
    %c71 = arith.constant 71 : index
    %c0_13 = arith.constant 0 : index
    %19 = vector.load %arg18[%c71, %c0_13] : memref<120x32xf32, #tpu.memory_space<vmem>>, vector<8x32xf32>
    tpu.vector_store %arg18[%c71, %c0_13], %18 {strides = array<i32>} : memref<120x32xf32, #tpu.memory_space<vmem>>, vector<8x32xf32>,
    %20 = vector.extract_strided_slice %7 {offsets = [40, 0], sizes = [8, 32], strides = [1, 1]} : vector<64x32xf32> to vector<8x32xf32>
    %c81 = arith.constant 81 : index
    %c0_14 = arith.constant 0 : index
    %21 = vector.load %arg18[%c81, %c0_14] : memref<120x32xf32, #tpu.memory_space<vmem>>, vector<8x32xf32>
    tpu.vector_store %arg18[%c81, %c0_14], %20 {strides = array<i32>} : memref<120x32xf32, #tpu.memory_space<vmem>>, vector<8x32xf32>,
    %22 = vector.extract_strided_slice %7 {offsets = [48, 0], sizes = [8, 32], strides = [1, 1]} : vector<64x32xf32> to vector<8x32xf32>
    %c91 = arith.constant 91 : index
    %c0_15 = arith.constant 0 : index
    %23 = vector.load %arg18[%c91, %c0_15] : memref<120x32xf32, #tpu.memory_space<vmem>>, vector<8x32xf32>
    tpu.vector_store %arg18[%c91, %c0_15], %22 {strides = array<i32>} : memref<120x32xf32, #tpu.memory_space<vmem>>, vector<8x32xf32>,
    %24 = vector.extract_strided_slice %7 {offsets = [56, 0], sizes = [8, 32], strides = [1, 1]} : vector<64x32xf32> to vector<8x32xf32>
    %c101 = arith.constant 101 : index
    %c0_16 = arith.constant 0 : index
    %25 = vector.load %arg18[%c101, %c0_16] : memref<120x32xf32, #tpu.memory_space<vmem>>, vector<8x32xf32>
    tpu.vector_store %arg18[%c101, %c0_16], %24 {strides = array<i32>} : memref<120x32xf32, #tpu.memory_space<vmem>>, vector<8x32xf32>,
    %cst_17 = arith.constant 0.000000e+00 : f32
    %26 = vector.broadcast %cst_17 : f32 to vector<16x512xf32>
    %c0_18 = arith.constant 0 : index
    %c0_19 = arith.constant 0 : index
    %27 = vector.load %arg19[%c0_18, %c0_19] : memref<16x512xf32, #tpu.memory_space<vmem>>, vector<16x512xf32>
    tpu.vector_store %arg19[%c0_18, %c0_19], %26 {strides = array<i32>} : memref<16x512xf32, #tpu.memory_space<vmem>>, vector<16x512xf32>,
    %c0_20 = arith.constant 0 : index
    %c0_21 = arith.constant 0 : index
    %28 = tpu.strided_load %arg18[%c0_20, %c0_21] {strides = array<i32: 2, 1>} : memref<120x32xf32, #tpu.memory_space<vmem>>, vector<4x32xf32>
    %c0_22 = arith.constant 0 : index
    %c0_23 = arith.constant 0 : index
    %29 = vector.load %arg19[%c0_22, %c0_23] : memref<16x512xf32, #tpu.memory_space<vmem>>, vector<4x32xf32>
    tpu.vector_store %arg19[%c0_22, %c0_23], %28 {strides = array<i32>} : memref<16x512xf32, #tpu.memory_space<vmem>>, vector<4x32xf32>,
    %c20 = arith.constant 20 : index
    %c0_24 = arith.constant 0 : index
    %30 = tpu.strided_load %arg18[%c20, %c0_24] {strides = array<i32: 2, 1>} : memref<120x32xf32, #tpu.memory_space<vmem>>, vector<4x32xf32>
    %c4 = arith.constant 4 : index
    %c0_25 = arith.constant 0 : index
    %31 = vector.load %arg19[%c4, %c0_25] : memref<16x512xf32, #tpu.memory_space<vmem>>, vector<4x32xf32>
    tpu.vector_store %arg19[%c4, %c0_25], %30 {strides = array<i32>} : memref<16x512xf32, #tpu.memory_space<vmem>>, vector<4x32xf32>,
    %c60 = arith.constant 60 : index
    %c0_26 = arith.constant 0 : index
    %32 = tpu.strided_load %arg18[%c60, %c0_26] {strides = array<i32: 2, 1>} : memref<120x32xf32, #tpu.memory_space<vmem>>, vector<4x32xf32>
    %c8 = arith.constant 8 : index
    %c0_27 = arith.constant 0 : index
    %33 = vector.load %arg19[%c8, %c0_27] : memref<16x512xf32, #tpu.memory_space<vmem>>, vector<4x32xf32>
    tpu.vector_store %arg19[%c8, %c0_27], %32 {strides = array<i32>} : memref<16x512xf32, #tpu.memory_space<vmem>>, vector<4x32xf32>,
    %c80 = arith.constant 80 : index
    %c0_28 = arith.constant 0 : index
    %34 = tpu.strided_load %arg18[%c80, %c0_28] {strides = array<i32: 2, 1>} : memref<120x32xf32, #tpu.memory_space<vmem>>, vector<4x32xf32>
    %c12 = arith.constant 12 : index
    %c0_29 = arith.constant 0 : index
    %35 = vector.load %arg19[%c12, %c0_29] : memref<16x512xf32, #tpu.memory_space<vmem>>, vector<4x32xf32>
    tpu.vector_store %arg19[%c12, %c0_29], %34 {strides = array<i32>} : memref<16x512xf32, #tpu.memory_space<vmem>>, vector<4x32xf32>,
    %c1 = arith.constant 1 : index
    %c0_30 = arith.constant 0 : index
    %36 = tpu.strided_load %arg18[%c1, %c0_30] {strides = array<i32: 2, 1>} : memref<120x32xf32, #tpu.memory_space<vmem>>, vector<4x32xf32>
    %c0_31 = arith.constant 0 : index
    %c32 = arith.constant 32 : index
    %37 = vector.load %arg19[%c0_31, %c32] : memref<16x512xf32, #tpu.memory_space<vmem>>, vector<4x32xf32>
    tpu.vector_store %arg19[%c0_31, %c32], %36 {strides = array<i32>} : memref<16x512xf32, #tpu.memory_space<vmem>>, vector<4x32xf32>,
    %c21_32 = arith.constant 21 : index
    %c0_33 = arith.constant 0 : index
    %38 = tpu.strided_load %arg18[%c21_32, %c0_33] {strides = array<i32: 2, 1>} : memref<120x32xf32, #tpu.memory_space<vmem>>, vector<4x32xf32>
    %c4_34 = arith.constant 4 : index
    %c32_35 = arith.constant 32 : index
    %39 = vector.load %arg19[%c4_34, %c32_35] : memref<16x512xf32, #tpu.memory_space<vmem>>, vector<4x32xf32>
    tpu.vector_store %arg19[%c4_34, %c32_35], %38 {strides = array<i32>} : memref<16x512xf32, #tpu.memory_space<vmem>>, vector<4x32xf32>,
    %c61 = arith.constant 61 : index
    %c0_36 = arith.constant 0 : index
    %40 = tpu.strided_load %arg18[%c61, %c0_36] {strides = array<i32: 2, 1>} : memref<120x32xf32, #tpu.memory_space<vmem>>, vector<4x32xf32>
    %c8_37 = arith.constant 8 : index
    %c32_38 = arith.constant 32 : index
    %41 = vector.load %arg19[%c8_37, %c32_38] : memref<16x512xf32, #tpu.memory_space<vmem>>, vector<4x32xf32>
    tpu.vector_store %arg19[%c8_37, %c32_38], %40 {strides = array<i32>} : memref<16x512xf32, #tpu.memory_space<vmem>>, vector<4x32xf32>,
    %c81_39 = arith.constant 81 : index
    %c0_40 = arith.constant 0 : index
    %42 = tpu.strided_load %arg18[%c81_39, %c0_40] {strides = array<i32: 2, 1>} : memref<120x32xf32, #tpu.memory_space<vmem>>, vector<4x32xf32>
    %c12_41 = arith.constant 12 : index
    %c32_42 = arith.constant 32 : index
    %43 = vector.load %arg19[%c12_41, %c32_42] : memref<16x512xf32, #tpu.memory_space<vmem>>, vector<4x32xf32>
    tpu.vector_store %arg19[%c12_41, %c32_42], %42 {strides = array<i32>} : memref<16x512xf32, #tpu.memory_space<vmem>>, vector<4x32xf32>,
    %c2 = arith.constant 2 : index
    %c0_43 = arith.constant 0 : index
    %44 = tpu.strided_load %arg18[%c2, %c0_43] {strides = array<i32: 2, 1>} : memref<120x32xf32, #tpu.memory_space<vmem>>, vector<4x32xf32>
    %c0_44 = arith.constant 0 : index
    %c64 = arith.constant 64 : index
    %45 = vector.load %arg19[%c0_44, %c64] : memref<16x512xf32, #tpu.memory_space<vmem>>, vector<4x32xf32>
    tpu.vector_store %arg19[%c0_44, %c64], %44 {strides = array<i32>} : memref<16x512xf32, #tpu.memory_space<vmem>>, vector<4x32xf32>,
    %c22 = arith.constant 22 : index
    %c0_45 = arith.constant 0 : index
    %46 = tpu.strided_load %arg18[%c22, %c0_45] {strides = array<i32: 2, 1>} : memref<120x32xf32, #tpu.memory_space<vmem>>, vector<4x32xf32>
    %c4_46 = arith.constant 4 : index
    %c64_47 = arith.constant 64 : index
    %47 = vector.load %arg19[%c4_46, %c64_47] : memref<16x512xf32, #tpu.memory_space<vmem>>, vector<4x32xf32>
    tpu.vector_store %arg19[%c4_46, %c64_47], %46 {strides = array<i32>} : memref<16x512xf32, #tpu.memory_space<vmem>>, vector<4x32xf32>,
    %c62 = arith.constant 62 : index
    %c0_48 = arith.constant 0 : index
    %48 = tpu.strided_load %arg18[%c62, %c0_48] {strides = array<i32: 2, 1>} : memref<120x32xf32, #tpu.memory_space<vmem>>, vector<4x32xf32>
    %c8_49 = arith.constant 8 : index
    %c64_50 = arith.constant 64 : index
    %49 = vector.load %arg19[%c8_49, %c64_50] : memref<16x512xf32, #tpu.memory_space<vmem>>, vector<4x32xf32>
    tpu.vector_store %arg19[%c8_49, %c64_50], %48 {strides = array<i32>} : memref<16x512xf32, #tpu.memory_space<vmem>>, vector<4x32xf32>,
    %c82 = arith.constant 82 : index
    %c0_51 = arith.constant 0 : index
    %50 = tpu.strided_load %arg18[%c82, %c0_51] {strides = array<i32: 2, 1>} : memref<120x32xf32, #tpu.memory_space<vmem>>, vector<4x32xf32>
    %c12_52 = arith.constant 12 : index
    %c64_53 = arith.constant 64 : index
    %51 = vector.load %arg19[%c12_52, %c64_53] : memref<16x512xf32, #tpu.memory_space<vmem>>, vector<4x32xf32>
    tpu.vector_store %arg19[%c12_52, %c64_53], %50 {strides = array<i32>} : memref<16x512xf32, #tpu.memory_space<vmem>>, vector<4x32xf32>,
    %c3 = arith.constant 3 : index
    %c0_54 = arith.constant 0 : index
    %52 = tpu.strided_load %arg18[%c3, %c0_54] {strides = array<i32: 2, 1>} : memref<120x32xf32, #tpu.memory_space<vmem>>, vector<4x32xf32>
    %c0_55 = arith.constant 0 : index
    %c96 = arith.constant 96 : index
    %53 = vector.load %arg19[%c0_55, %c96] : memref<16x512xf32, #tpu.memory_space<vmem>>, vector<4x32xf32>
    tpu.vector_store %arg19[%c0_55, %c96], %52 {strides = array<i32>} : memref<16x512xf32, #tpu.memory_space<vmem>>, vector<4x32xf32>,
    %c23 = arith.constant 23 : index
    %c0_56 = arith.constant 0 : index
    %54 = tpu.strided_load %arg18[%c23, %c0_56] {strides = array<i32: 2, 1>} : memref<120x32xf32, #tpu.memory_space<vmem>>, vector<4x32xf32>
    %c4_57 = arith.constant 4 : index
    %c96_58 = arith.constant 96 : index
    %55 = vector.load %arg19[%c4_57, %c96_58] : memref<16x512xf32, #tpu.memory_space<vmem>>, vector<4x32xf32>
    tpu.vector_store %arg19[%c4_57, %c96_58], %54 {strides = array<i32>} : memref<16x512xf32, #tpu.memory_space<vmem>>, vector<4x32xf32>,
    %c63 = arith.constant 63 : index
    %c0_59 = arith.constant 0 : index
    %56 = tpu.strided_load %arg18[%c63, %c0_59] {strides = array<i32: 2, 1>} : memref<120x32xf32, #tpu.memory_space<vmem>>, vector<4x32xf32>
    %c8_60 = arith.constant 8 : index
    %c96_61 = arith.constant 96 : index
    %57 = vector.load %arg19[%c8_60, %c96_61] : memref<16x512xf32, #tpu.memory_space<vmem>>, vector<4x32xf32>
    tpu.vector_store %arg19[%c8_60, %c96_61], %56 {strides = array<i32>} : memref<16x512xf32, #tpu.memory_space<vmem>>, vector<4x32xf32>,
    %c83 = arith.constant 83 : index
    %c0_62 = arith.constant 0 : index
    %58 = tpu.strided_load %arg18[%c83, %c0_62] {strides = array<i32: 2, 1>} : memref<120x32xf32, #tpu.memory_space<vmem>>, vector<4x32xf32>
    %c12_63 = arith.constant 12 : index
    %c96_64 = arith.constant 96 : index
    %59 = vector.load %arg19[%c12_63, %c96_64] : memref<16x512xf32, #tpu.memory_space<vmem>>, vector<4x32xf32>
    tpu.vector_store %arg19[%c12_63, %c96_64], %58 {strides = array<i32>} : memref<16x512xf32, #tpu.memory_space<vmem>>, vector<4x32xf32>,
    %c10 = arith.constant 10 : index
    %c0_65 = arith.constant 0 : index
    %60 = tpu.strided_load %arg18[%c10, %c0_65] {strides = array<i32: 2, 1>} : memref<120x32xf32, #tpu.memory_space<vmem>>, vector<4x32xf32>
    %c0_66 = arith.constant 0 : index
    %c128 = arith.constant 128 : index
    %61 = vector.load %arg19[%c0_66, %c128] : memref<16x512xf32, #tpu.memory_space<vmem>>, vector<4x32xf32>
    tpu.vector_store %arg19[%c0_66, %c128], %60 {strides = array<i32>} : memref<16x512xf32, #tpu.memory_space<vmem>>, vector<4x32xf32>,
    %c30 = arith.constant 30 : index
    %c0_67 = arith.constant 0 : index
    %62 = tpu.strided_load %arg18[%c30, %c0_67] {strides = array<i32: 2, 1>} : memref<120x32xf32, #tpu.memory_space<vmem>>, vector<4x32xf32>
    %c4_68 = arith.constant 4 : index
    %c128_69 = arith.constant 128 : index
    %63 = vector.load %arg19[%c4_68, %c128_69] : memref<16x512xf32, #tpu.memory_space<vmem>>, vector<4x32xf32>
    tpu.vector_store %arg19[%c4_68, %c128_69], %62 {strides = array<i32>} : memref<16x512xf32, #tpu.memory_space<vmem>>, vector<4x32xf32>,
    %c70 = arith.constant 70 : index
    %c0_70 = arith.constant 0 : index
    %64 = tpu.strided_load %arg18[%c70, %c0_70] {strides = array<i32: 2, 1>} : memref<120x32xf32, #tpu.memory_space<vmem>>, vector<4x32xf32>
    %c8_71 = arith.constant 8 : index
    %c128_72 = arith.constant 128 : index
    %65 = vector.load %arg19[%c8_71, %c128_72] : memref<16x512xf32, #tpu.memory_space<vmem>>, vector<4x32xf32>
    tpu.vector_store %arg19[%c8_71, %c128_72], %64 {strides = array<i32>} : memref<16x512xf32, #tpu.memory_space<vmem>>, vector<4x32xf32>,
    %c90 = arith.constant 90 : index
    %c0_73 = arith.constant 0 : index
    %66 = tpu.strided_load %arg18[%c90, %c0_73] {strides = array<i32: 2, 1>} : memref<120x32xf32, #tpu.memory_space<vmem>>, vector<4x32xf32>
    %c12_74 = arith.constant 12 : index
    %c128_75 = arith.constant 128 : index
    %67 = vector.load %arg19[%c12_74, %c128_75] : memref<16x512xf32, #tpu.memory_space<vmem>>, vector<4x32xf32>
    tpu.vector_store %arg19[%c12_74, %c128_75], %66 {strides = array<i32>} : memref<16x512xf32, #tpu.memory_space<vmem>>, vector<4x32xf32>,
    %c11_76 = arith.constant 11 : index
    %c0_77 = arith.constant 0 : index
    %68 = tpu.strided_load %arg18[%c11_76, %c0_77] {strides = array<i32: 2, 1>} : memref<120x32xf32, #tpu.memory_space<vmem>>, vector<4x32xf32>
    %c0_78 = arith.constant 0 : index
    %c160 = arith.constant 160 : index
    %69 = vector.load %arg19[%c0_78, %c160] : memref<16x512xf32, #tpu.memory_space<vmem>>, vector<4x32xf32>
    tpu.vector_store %arg19[%c0_78, %c160], %68 {strides = array<i32>} : memref<16x512xf32, #tpu.memory_space<vmem>>, vector<4x32xf32>,
    %c31_79 = arith.constant 31 : index
    %c0_80 = arith.constant 0 : index
    %70 = tpu.strided_load %arg18[%c31_79, %c0_80] {strides = array<i32: 2, 1>} : memref<120x32xf32, #tpu.memory_space<vmem>>, vector<4x32xf32>
    %c4_81 = arith.constant 4 : index
    %c160_82 = arith.constant 160 : index
    %71 = vector.load %arg19[%c4_81, %c160_82] : memref<16x512xf32, #tpu.memory_space<vmem>>, vector<4x32xf32>
    tpu.vector_store %arg19[%c4_81, %c160_82], %70 {strides = array<i32>} : memref<16x512xf32, #tpu.memory_space<vmem>>, vector<4x32xf32>,
    %c71_83 = arith.constant 71 : index
    %c0_84 = arith.constant 0 : index
    %72 = tpu.strided_load %arg18[%c71_83, %c0_84] {strides = array<i32: 2, 1>} : memref<120x32xf32, #tpu.memory_space<vmem>>, vector<4x32xf32>
    %c8_85 = arith.constant 8 : index
    %c160_86 = arith.constant 160 : index
    %73 = vector.load %arg19[%c8_85, %c160_86] : memref<16x512xf32, #tpu.memory_space<vmem>>, vector<4x32xf32>
    tpu.vector_store %arg19[%c8_85, %c160_86], %72 {strides = array<i32>} : memref<16x512xf32, #tpu.memory_space<vmem>>, vector<4x32xf32>,
    %c91_87 = arith.constant 91 : index
    %c0_88 = arith.constant 0 : index
    %74 = tpu.strided_load %arg18[%c91_87, %c0_88] {strides = array<i32: 2, 1>} : memref<120x32xf32, #tpu.memory_space<vmem>>, vector<4x32xf32>
    %c12_89 = arith.constant 12 : index
    %c160_90 = arith.constant 160 : index
    %75 = vector.load %arg19[%c12_89, %c160_90] : memref<16x512xf32, #tpu.memory_space<vmem>>, vector<4x32xf32>
    tpu.vector_store %arg19[%c12_89, %c160_90], %74 {strides = array<i32>} : memref<16x512xf32, #tpu.memory_space<vmem>>, vector<4x32xf32>,
    %c12_91 = arith.constant 12 : index
    %c0_92 = arith.constant 0 : index
    %76 = tpu.strided_load %arg18[%c12_91, %c0_92] {strides = array<i32: 2, 1>} : memref<120x32xf32, #tpu.memory_space<vmem>>, vector<4x32xf32>
    %c0_93 = arith.constant 0 : index
    %c192 = arith.constant 192 : index
    %77 = vector.load %arg19[%c0_93, %c192] : memref<16x512xf32, #tpu.memory_space<vmem>>, vector<4x32xf32>
    tpu.vector_store %arg19[%c0_93, %c192], %76 {strides = array<i32>} : memref<16x512xf32, #tpu.memory_space<vmem>>, vector<4x32xf32>,
    %c32_94 = arith.constant 32 : index
    %c0_95 = arith.constant 0 : index
    %78 = tpu.strided_load %arg18[%c32_94, %c0_95] {strides = array<i32: 2, 1>} : memref<120x32xf32, #tpu.memory_space<vmem>>, vector<4x32xf32>
    %c4_96 = arith.constant 4 : index
    %c192_97 = arith.constant 192 : index
    %79 = vector.load %arg19[%c4_96, %c192_97] : memref<16x512xf32, #tpu.memory_space<vmem>>, vector<4x32xf32>
    tpu.vector_store %arg19[%c4_96, %c192_97], %78 {strides = array<i32>} : memref<16x512xf32, #tpu.memory_space<vmem>>, vector<4x32xf32>,
    %c72 = arith.constant 72 : index
    %c0_98 = arith.constant 0 : index
    %80 = tpu.strided_load %arg18[%c72, %c0_98] {strides = array<i32: 2, 1>} : memref<120x32xf32, #tpu.memory_space<vmem>>, vector<4x32xf32>
    %c8_99 = arith.constant 8 : index
    %c192_100 = arith.constant 192 : index
    %81 = vector.load %arg19[%c8_99, %c192_100] : memref<16x512xf32, #tpu.memory_space<vmem>>, vector<4x32xf32>
    tpu.vector_store %arg19[%c8_99, %c192_100], %80 {strides = array<i32>} : memref<16x512xf32, #tpu.memory_space<vmem>>, vector<4x32xf32>,
    %c92 = arith.constant 92 : index
    %c0_101 = arith.constant 0 : index
    %82 = tpu.strided_load %arg18[%c92, %c0_101] {strides = array<i32: 2, 1>} : memref<120x32xf32, #tpu.memory_space<vmem>>, vector<4x32xf32>
    %c12_102 = arith.constant 12 : index
    %c192_103 = arith.constant 192 : index
    %83 = vector.load %arg19[%c12_102, %c192_103] : memref<16x512xf32, #tpu.memory_space<vmem>>, vector<4x32xf32>
    tpu.vector_store %arg19[%c12_102, %c192_103], %82 {strides = array<i32>} : memref<16x512xf32, #tpu.memory_space<vmem>>, vector<4x32xf32>,
    %c13 = arith.constant 13 : index
    %c0_104 = arith.constant 0 : index
    %84 = tpu.strided_load %arg18[%c13, %c0_104] {strides = array<i32: 2, 1>} : memref<120x32xf32, #tpu.memory_space<vmem>>, vector<4x32xf32>
    %c0_105 = arith.constant 0 : index
    %c224 = arith.constant 224 : index
    %85 = vector.load %arg19[%c0_105, %c224] : memref<16x512xf32, #tpu.memory_space<vmem>>, vector<4x32xf32>
    tpu.vector_store %arg19[%c0_105, %c224], %84 {strides = array<i32>} : memref<16x512xf32, #tpu.memory_space<vmem>>, vector<4x32xf32>,
    %c33 = arith.constant 33 : index
    %c0_106 = arith.constant 0 : index
    %86 = tpu.strided_load %arg18[%c33, %c0_106] {strides = array<i32: 2, 1>} : memref<120x32xf32, #tpu.memory_space<vmem>>, vector<4x32xf32>
    %c4_107 = arith.constant 4 : index
    %c224_108 = arith.constant 224 : index
    %87 = vector.load %arg19[%c4_107, %c224_108] : memref<16x512xf32, #tpu.memory_space<vmem>>, vector<4x32xf32>
    tpu.vector_store %arg19[%c4_107, %c224_108], %86 {strides = array<i32>} : memref<16x512xf32, #tpu.memory_space<vmem>>, vector<4x32xf32>,
    %c73 = arith.constant 73 : index
    %c0_109 = arith.constant 0 : index
    %88 = tpu.strided_load %arg18[%c73, %c0_109] {strides = array<i32: 2, 1>} : memref<120x32xf32, #tpu.memory_space<vmem>>, vector<4x32xf32>
    %c8_110 = arith.constant 8 : index
    %c224_111 = arith.constant 224 : index
    %89 = vector.load %arg19[%c8_110, %c224_111] : memref<16x512xf32, #tpu.memory_space<vmem>>, vector<4x32xf32>
    tpu.vector_store %arg19[%c8_110, %c224_111], %88 {strides = array<i32>} : memref<16x512xf32, #tpu.memory_space<vmem>>, vector<4x32xf32>,
    %c93 = arith.constant 93 : index
    %c0_112 = arith.constant 0 : index
    %90 = tpu.strided_load %arg18[%c93, %c0_112] {strides = array<i32: 2, 1>} : memref<120x32xf32, #tpu.memory_space<vmem>>, vector<4x32xf32>
    %c12_113 = arith.constant 12 : index
    %c224_114 = arith.constant 224 : index
    %91 = vector.load %arg19[%c12_113, %c224_114] : memref<16x512xf32, #tpu.memory_space<vmem>>, vector<4x32xf32>
    tpu.vector_store %arg19[%c12_113, %c224_114], %90 {strides = array<i32>} : memref<16x512xf32, #tpu.memory_space<vmem>>, vector<4x32xf32>,
    %c20_115 = arith.constant 20 : index
    %c0_116 = arith.constant 0 : index
    %92 = tpu.strided_load %arg18[%c20_115, %c0_116] {strides = array<i32: 2, 1>} : memref<120x32xf32, #tpu.memory_space<vmem>>, vector<4x32xf32>
    %c0_117 = arith.constant 0 : index
    %c256 = arith.constant 256 : index
    %93 = vector.load %arg19[%c0_117, %c256] : memref<16x512xf32, #tpu.memory_space<vmem>>, vector<4x32xf32>
    tpu.vector_store %arg19[%c0_117, %c256], %92 {strides = array<i32>} : memref<16x512xf32, #tpu.memory_space<vmem>>, vector<4x32xf32>,
    %c40 = arith.constant 40 : index
    %c0_118 = arith.constant 0 : index
    %94 = tpu.strided_load %arg18[%c40, %c0_118] {strides = array<i32: 2, 1>} : memref<120x32xf32, #tpu.memory_space<vmem>>, vector<4x32xf32>
    %c4_119 = arith.constant 4 : index
    %c256_120 = arith.constant 256 : index
    %95 = vector.load %arg19[%c4_119, %c256_120] : memref<16x512xf32, #tpu.memory_space<vmem>>, vector<4x32xf32>
    tpu.vector_store %arg19[%c4_119, %c256_120], %94 {strides = array<i32>} : memref<16x512xf32, #tpu.memory_space<vmem>>, vector<4x32xf32>,
    %c80_121 = arith.constant 80 : index
    %c0_122 = arith.constant 0 : index
    %96 = tpu.strided_load %arg18[%c80_121, %c0_122] {strides = array<i32: 2, 1>} : memref<120x32xf32, #tpu.memory_space<vmem>>, vector<4x32xf32>
    %c8_123 = arith.constant 8 : index
    %c256_124 = arith.constant 256 : index
    %97 = vector.load %arg19[%c8_123, %c256_124] : memref<16x512xf32, #tpu.memory_space<vmem>>, vector<4x32xf32>
    tpu.vector_store %arg19[%c8_123, %c256_124], %96 {strides = array<i32>} : memref<16x512xf32, #tpu.memory_space<vmem>>, vector<4x32xf32>,
    %c100 = arith.constant 100 : index
    %c0_125 = arith.constant 0 : index
    %98 = tpu.strided_load %arg18[%c100, %c0_125] {strides = array<i32: 2, 1>} : memref<120x32xf32, #tpu.memory_space<vmem>>, vector<4x32xf32>
    %c12_126 = arith.constant 12 : index
    %c256_127 = arith.constant 256 : index
    %99 = vector.load %arg19[%c12_126, %c256_127] : memref<16x512xf32, #tpu.memory_space<vmem>>, vector<4x32xf32>
    tpu.vector_store %arg19[%c12_126, %c256_127], %98 {strides = array<i32>} : memref<16x512xf32, #tpu.memory_space<vmem>>, vector<4x32xf32>,
    %c21_128 = arith.constant 21 : index
    %c0_129 = arith.constant 0 : index
    %100 = tpu.strided_load %arg18[%c21_128, %c0_129] {strides = array<i32: 2, 1>} : memref<120x32xf32, #tpu.memory_space<vmem>>, vector<4x32xf32>
    %c0_130 = arith.constant 0 : index
    %c288 = arith.constant 288 : index
    %101 = vector.load %arg19[%c0_130, %c288] : memref<16x512xf32, #tpu.memory_space<vmem>>, vector<4x32xf32>
    tpu.vector_store %arg19[%c0_130, %c288], %100 {strides = array<i32>} : memref<16x512xf32, #tpu.memory_space<vmem>>, vector<4x32xf32>,
    %c41_131 = arith.constant 41 : index
    %c0_132 = arith.constant 0 : index
    %102 = tpu.strided_load %arg18[%c41_131, %c0_132] {strides = array<i32: 2, 1>} : memref<120x32xf32, #tpu.memory_space<vmem>>, vector<4x32xf32>
    %c4_133 = arith.constant 4 : index
    %c288_134 = arith.constant 288 : index
    %103 = vector.load %arg19[%c4_133, %c288_134] : memref<16x512xf32, #tpu.memory_space<vmem>>, vector<4x32xf32>
    tpu.vector_store %arg19[%c4_133, %c288_134], %102 {strides = array<i32>} : memref<16x512xf32, #tpu.memory_space<vmem>>, vector<4x32xf32>,
    %c81_135 = arith.constant 81 : index
    %c0_136 = arith.constant 0 : index
    %104 = tpu.strided_load %arg18[%c81_135, %c0_136] {strides = array<i32: 2, 1>} : memref<120x32xf32, #tpu.memory_space<vmem>>, vector<4x32xf32>
    %c8_137 = arith.constant 8 : index
    %c288_138 = arith.constant 288 : index
    %105 = vector.load %arg19[%c8_137, %c288_138] : memref<16x512xf32, #tpu.memory_space<vmem>>, vector<4x32xf32>
    tpu.vector_store %arg19[%c8_137, %c288_138], %104 {strides = array<i32>} : memref<16x512xf32, #tpu.memory_space<vmem>>, vector<4x32xf32>,
    %c101_139 = arith.constant 101 : index
    %c0_140 = arith.constant 0 : index
    %106 = tpu.strided_load %arg18[%c101_139, %c0_140] {strides = array<i32: 2, 1>} : memref<120x32xf32, #tpu.memory_space<vmem>>, vector<4x32xf32>
    %c12_141 = arith.constant 12 : index
    %c288_142 = arith.constant 288 : index
    %107 = vector.load %arg19[%c12_141, %c288_142] : memref<16x512xf32, #tpu.memory_space<vmem>>, vector<4x32xf32>
    tpu.vector_store %arg19[%c12_141, %c288_142], %106 {strides = array<i32>} : memref<16x512xf32, #tpu.memory_space<vmem>>, vector<4x32xf32>,
    %c22_143 = arith.constant 22 : index
    %c0_144 = arith.constant 0 : index
    %108 = tpu.strided_load %arg18[%c22_143, %c0_144] {strides = array<i32: 2, 1>} : memref<120x32xf32, #tpu.memory_space<vmem>>, vector<4x32xf32>
    %c0_145 = arith.constant 0 : index
    %c320 = arith.constant 320 : index
    %109 = vector.load %arg19[%c0_145, %c320] : memref<16x512xf32, #tpu.memory_space<vmem>>, vector<4x32xf32>
    tpu.vector_store %arg19[%c0_145, %c320], %108 {strides = array<i32>} : memref<16x512xf32, #tpu.memory_space<vmem>>, vector<4x32xf32>,
    %c42 = arith.constant 42 : index
    %c0_146 = arith.constant 0 : index
    %110 = tpu.strided_load %arg18[%c42, %c0_146] {strides = array<i32: 2, 1>} : memref<120x32xf32, #tpu.memory_space<vmem>>, vector<4x32xf32>
    %c4_147 = arith.constant 4 : index
    %c320_148 = arith.constant 320 : index
    %111 = vector.load %arg19[%c4_147, %c320_148] : memref<16x512xf32, #tpu.memory_space<vmem>>, vector<4x32xf32>
    tpu.vector_store %arg19[%c4_147, %c320_148], %110 {strides = array<i32>} : memref<16x512xf32, #tpu.memory_space<vmem>>, vector<4x32xf32>,
    %c82_149 = arith.constant 82 : index
    %c0_150 = arith.constant 0 : index
    %112 = tpu.strided_load %arg18[%c82_149, %c0_150] {strides = array<i32: 2, 1>} : memref<120x32xf32, #tpu.memory_space<vmem>>, vector<4x32xf32>
    %c8_151 = arith.constant 8 : index
    %c320_152 = arith.constant 320 : index
    %113 = vector.load %arg19[%c8_151, %c320_152] : memref<16x512xf32, #tpu.memory_space<vmem>>, vector<4x32xf32>
    tpu.vector_store %arg19[%c8_151, %c320_152], %112 {strides = array<i32>} : memref<16x512xf32, #tpu.memory_space<vmem>>, vector<4x32xf32>,
    %c102 = arith.constant 102 : index
    %c0_153 = arith.constant 0 : index
    %114 = tpu.strided_load %arg18[%c102, %c0_153] {strides = array<i32: 2, 1>} : memref<120x32xf32, #tpu.memory_space<vmem>>, vector<4x32xf32>
    %c12_154 = arith.constant 12 : index
    %c320_155 = arith.constant 320 : index
    %115 = vector.load %arg19[%c12_154, %c320_155] : memref<16x512xf32, #tpu.memory_space<vmem>>, vector<4x32xf32>
    tpu.vector_store %arg19[%c12_154, %c320_155], %114 {strides = array<i32>} : memref<16x512xf32, #tpu.memory_space<vmem>>, vector<4x32xf32>,
    %c23_156 = arith.constant 23 : index
    %c0_157 = arith.constant 0 : index
    %116 = tpu.strided_load %arg18[%c23_156, %c0_157] {strides = array<i32: 2, 1>} : memref<120x32xf32, #tpu.memory_space<vmem>>, vector<4x32xf32>
    %c0_158 = arith.constant 0 : index
    %c352 = arith.constant 352 : index
    %117 = vector.load %arg19[%c0_158, %c352] : memref<16x512xf32, #tpu.memory_space<vmem>>, vector<4x32xf32>
    tpu.vector_store %arg19[%c0_158, %c352], %116 {strides = array<i32>} : memref<16x512xf32, #tpu.memory_space<vmem>>, vector<4x32xf32>,
    %c43 = arith.constant 43 : index
    %c0_159 = arith.constant 0 : index
    %118 = tpu.strided_load %arg18[%c43, %c0_159] {strides = array<i32: 2, 1>} : memref<120x32xf32, #tpu.memory_space<vmem>>, vector<4x32xf32>
    %c4_160 = arith.constant 4 : index
    %c352_161 = arith.constant 352 : index
    %119 = vector.load %arg19[%c4_160, %c352_161] : memref<16x512xf32, #tpu.memory_space<vmem>>, vector<4x32xf32>
    tpu.vector_store %arg19[%c4_160, %c352_161], %118 {strides = array<i32>} : memref<16x512xf32, #tpu.memory_space<vmem>>, vector<4x32xf32>,
    %c83_162 = arith.constant 83 : index
    %c0_163 = arith.constant 0 : index
    %120 = tpu.strided_load %arg18[%c83_162, %c0_163] {strides = array<i32: 2, 1>} : memref<120x32xf32, #tpu.memory_space<vmem>>, vector<4x32xf32>
    %c8_164 = arith.constant 8 : index
    %c352_165 = arith.constant 352 : index
    %121 = vector.load %arg19[%c8_164, %c352_165] : memref<16x512xf32, #tpu.memory_space<vmem>>, vector<4x32xf32>
    tpu.vector_store %arg19[%c8_164, %c352_165], %120 {strides = array<i32>} : memref<16x512xf32, #tpu.memory_space<vmem>>, vector<4x32xf32>,
    %c103 = arith.constant 103 : index
    %c0_166 = arith.constant 0 : index
    %122 = tpu.strided_load %arg18[%c103, %c0_166] {strides = array<i32: 2, 1>} : memref<120x32xf32, #tpu.memory_space<vmem>>, vector<4x32xf32>
    %c12_167 = arith.constant 12 : index
    %c352_168 = arith.constant 352 : index
    %123 = vector.load %arg19[%c12_167, %c352_168] : memref<16x512xf32, #tpu.memory_space<vmem>>, vector<4x32xf32>
    tpu.vector_store %arg19[%c12_167, %c352_168], %122 {strides = array<i32>} : memref<16x512xf32, #tpu.memory_space<vmem>>, vector<4x32xf32>,
    %c30_169 = arith.constant 30 : index
    %c0_170 = arith.constant 0 : index
    %124 = tpu.strided_load %arg18[%c30_169, %c0_170] {strides = array<i32: 2, 1>} : memref<120x32xf32, #tpu.memory_space<vmem>>, vector<4x32xf32>
    %c0_171 = arith.constant 0 : index
    %c384 = arith.constant 384 : index
    %125 = vector.load %arg19[%c0_171, %c384] : memref<16x512xf32, #tpu.memory_space<vmem>>, vector<4x32xf32>
    tpu.vector_store %arg19[%c0_171, %c384], %124 {strides = array<i32>} : memref<16x512xf32, #tpu.memory_space<vmem>>, vector<4x32xf32>,
    %c50 = arith.constant 50 : index
    %c0_172 = arith.constant 0 : index
    %126 = tpu.strided_load %arg18[%c50, %c0_172] {strides = array<i32: 2, 1>} : memref<120x32xf32, #tpu.memory_space<vmem>>, vector<4x32xf32>
    %c4_173 = arith.constant 4 : index
    %c384_174 = arith.constant 384 : index
    %127 = vector.load %arg19[%c4_173, %c384_174] : memref<16x512xf32, #tpu.memory_space<vmem>>, vector<4x32xf32>
    tpu.vector_store %arg19[%c4_173, %c384_174], %126 {strides = array<i32>} : memref<16x512xf32, #tpu.memory_space<vmem>>, vector<4x32xf32>,
    %c90_175 = arith.constant 90 : index
    %c0_176 = arith.constant 0 : index
    %128 = tpu.strided_load %arg18[%c90_175, %c0_176] {strides = array<i32: 2, 1>} : memref<120x32xf32, #tpu.memory_space<vmem>>, vector<4x32xf32>
    %c8_177 = arith.constant 8 : index
    %c384_178 = arith.constant 384 : index
    %129 = vector.load %arg19[%c8_177, %c384_178] : memref<16x512xf32, #tpu.memory_space<vmem>>, vector<4x32xf32>
    tpu.vector_store %arg19[%c8_177, %c384_178], %128 {strides = array<i32>} : memref<16x512xf32, #tpu.memory_space<vmem>>, vector<4x32xf32>,
    %c110 = arith.constant 110 : index
    %c0_179 = arith.constant 0 : index
    %130 = tpu.strided_load %arg18[%c110, %c0_179] {strides = array<i32: 2, 1>} : memref<120x32xf32, #tpu.memory_space<vmem>>, vector<4x32xf32>
    %c12_180 = arith.constant 12 : index
    %c384_181 = arith.constant 384 : index
    %131 = vector.load %arg19[%c12_180, %c384_181] : memref<16x512xf32, #tpu.memory_space<vmem>>, vector<4x32xf32>
    tpu.vector_store %arg19[%c12_180, %c384_181], %130 {strides = array<i32>} : memref<16x512xf32, #tpu.memory_space<vmem>>, vector<4x32xf32>,
    %c31_182 = arith.constant 31 : index
    %c0_183 = arith.constant 0 : index
    %132 = tpu.strided_load %arg18[%c31_182, %c0_183] {strides = array<i32: 2, 1>} : memref<120x32xf32, #tpu.memory_space<vmem>>, vector<4x32xf32>
    %c0_184 = arith.constant 0 : index
    %c416 = arith.constant 416 : index
    %133 = vector.load %arg19[%c0_184, %c416] : memref<16x512xf32, #tpu.memory_space<vmem>>, vector<4x32xf32>
    tpu.vector_store %arg19[%c0_184, %c416], %132 {strides = array<i32>} : memref<16x512xf32, #tpu.memory_space<vmem>>, vector<4x32xf32>,
    %c51 = arith.constant 51 : index
    %c0_185 = arith.constant 0 : index
    %134 = tpu.strided_load %arg18[%c51, %c0_185] {strides = array<i32: 2, 1>} : memref<120x32xf32, #tpu.memory_space<vmem>>, vector<4x32xf32>
    %c4_186 = arith.constant 4 : index
    %c416_187 = arith.constant 416 : index
    %135 = vector.load %arg19[%c4_186, %c416_187] : memref<16x512xf32, #tpu.memory_space<vmem>>, vector<4x32xf32>
    tpu.vector_store %arg19[%c4_186, %c416_187], %134 {strides = array<i32>} : memref<16x512xf32, #tpu.memory_space<vmem>>, vector<4x32xf32>,
    %c91_188 = arith.constant 91 : index
    %c0_189 = arith.constant 0 : index
    %136 = tpu.strided_load %arg18[%c91_188, %c0_189] {strides = array<i32: 2, 1>} : memref<120x32xf32, #tpu.memory_space<vmem>>, vector<4x32xf32>
    %c8_190 = arith.constant 8 : index
    %c416_191 = arith.constant 416 : index
    %137 = vector.load %arg19[%c8_190, %c416_191] : memref<16x512xf32, #tpu.memory_space<vmem>>, vector<4x32xf32>
    tpu.vector_store %arg19[%c8_190, %c416_191], %136 {strides = array<i32>} : memref<16x512xf32, #tpu.memory_space<vmem>>, vector<4x32xf32>,
    %c111 = arith.constant 111 : index
    %c0_192 = arith.constant 0 : index
    %138 = tpu.strided_load %arg18[%c111, %c0_192] {strides = array<i32: 2, 1>} : memref<120x32xf32, #tpu.memory_space<vmem>>, vector<4x32xf32>
    %c12_193 = arith.constant 12 : index
    %c416_194 = arith.constant 416 : index
    %139 = vector.load %arg19[%c12_193, %c416_194] : memref<16x512xf32, #tpu.memory_space<vmem>>, vector<4x32xf32>
    tpu.vector_store %arg19[%c12_193, %c416_194], %138 {strides = array<i32>} : memref<16x512xf32, #tpu.memory_space<vmem>>, vector<4x32xf32>,
    %c32_195 = arith.constant 32 : index
    %c0_196 = arith.constant 0 : index
    %140 = tpu.strided_load %arg18[%c32_195, %c0_196] {strides = array<i32: 2, 1>} : memref<120x32xf32, #tpu.memory_space<vmem>>, vector<4x32xf32>
    %c0_197 = arith.constant 0 : index
    %c448 = arith.constant 448 : index
    %141 = vector.load %arg19[%c0_197, %c448] : memref<16x512xf32, #tpu.memory_space<vmem>>, vector<4x32xf32>
    tpu.vector_store %arg19[%c0_197, %c448], %140 {strides = array<i32>} : memref<16x512xf32, #tpu.memory_space<vmem>>, vector<4x32xf32>,
    %c52 = arith.constant 52 : index
    %c0_198 = arith.constant 0 : index
    %142 = tpu.strided_load %arg18[%c52, %c0_198] {strides = array<i32: 2, 1>} : memref<120x32xf32, #tpu.memory_space<vmem>>, vector<4x32xf32>
    %c4_199 = arith.constant 4 : index
    %c448_200 = arith.constant 448 : index
    %143 = vector.load %arg19[%c4_199, %c448_200] : memref<16x512xf32, #tpu.memory_space<vmem>>, vector<4x32xf32>
    tpu.vector_store %arg19[%c4_199, %c448_200], %142 {strides = array<i32>} : memref<16x512xf32, #tpu.memory_space<vmem>>, vector<4x32xf32>,
    %c92_201 = arith.constant 92 : index
    %c0_202 = arith.constant 0 : index
    %144 = tpu.strided_load %arg18[%c92_201, %c0_202] {strides = array<i32: 2, 1>} : memref<120x32xf32, #tpu.memory_space<vmem>>, vector<4x32xf32>
    %c8_203 = arith.constant 8 : index
    %c448_204 = arith.constant 448 : index
    %145 = vector.load %arg19[%c8_203, %c448_204] : memref<16x512xf32, #tpu.memory_space<vmem>>, vector<4x32xf32>
    tpu.vector_store %arg19[%c8_203, %c448_204], %144 {strides = array<i32>} : memref<16x512xf32, #tpu.memory_space<vmem>>, vector<4x32xf32>,
    %c112 = arith.constant 112 : index
    %c0_205 = arith.constant 0 : index
    %146 = tpu.strided_load %arg18[%c112, %c0_205] {strides = array<i32: 2, 1>} : memref<120x32xf32, #tpu.memory_space<vmem>>, vector<4x32xf32>
    %c12_206 = arith.constant 12 : index
    %c448_207 = arith.constant 448 : index
    %147 = vector.load %arg19[%c12_206, %c448_207] : memref<16x512xf32, #tpu.memory_space<vmem>>, vector<4x32xf32>
    tpu.vector_store %arg19[%c12_206, %c448_207], %146 {strides = array<i32>} : memref<16x512xf32, #tpu.memory_space<vmem>>, vector<4x32xf32>,
    %c33_208 = arith.constant 33 : index
    %c0_209 = arith.constant 0 : index
    %148 = tpu.strided_load %arg18[%c33_208, %c0_209] {strides = array<i32: 2, 1>} : memref<120x32xf32, #tpu.memory_space<vmem>>, vector<4x32xf32>
    %c0_210 = arith.constant 0 : index
    %c480 = arith.constant 480 : index
    %149 = vector.load %arg19[%c0_210, %c480] : memref<16x512xf32, #tpu.memory_space<vmem>>, vector<4x32xf32>
    tpu.vector_store %arg19[%c0_210, %c480], %148 {strides = array<i32>} : memref<16x512xf32, #tpu.memory_space<vmem>>, vector<4x32xf32>,
    %c53 = arith.constant 53 : index
    %c0_211 = arith.constant 0 : index
    %150 = tpu.strided_load %arg18[%c53, %c0_211] {strides = array<i32: 2, 1>} : memref<120x32xf32, #tpu.memory_space<vmem>>, vector<4x32xf32>
    %c4_212 = arith.constant 4 : index
    %c480_213 = arith.constant 480 : index
    %151 = vector.load %arg19[%c4_212, %c480_213] : memref<16x512xf32, #tpu.memory_space<vmem>>, vector<4x32xf32>
    tpu.vector_store %arg19[%c4_212, %c480_213], %150 {strides = array<i32>} : memref<16x512xf32, #tpu.memory_space<vmem>>, vector<4x32xf32>,
    %c93_214 = arith.constant 93 : index
    %c0_215 = arith.constant 0 : index
    %152 = tpu.strided_load %arg18[%c93_214, %c0_215] {strides = array<i32: 2, 1>} : memref<120x32xf32, #tpu.memory_space<vmem>>, vector<4x32xf32>
    %c8_216 = arith.constant 8 : index
    %c480_217 = arith.constant 480 : index
    %153 = vector.load %arg19[%c8_216, %c480_217] : memref<16x512xf32, #tpu.memory_space<vmem>>, vector<4x32xf32>
    tpu.vector_store %arg19[%c8_216, %c480_217], %152 {strides = array<i32>} : memref<16x512xf32, #tpu.memory_space<vmem>>, vector<4x32xf32>,
    %c113 = arith.constant 113 : index
    %c0_218 = arith.constant 0 : index
    %154 = tpu.strided_load %arg18[%c113, %c0_218] {strides = array<i32: 2, 1>} : memref<120x32xf32, #tpu.memory_space<vmem>>, vector<4x32xf32>
    %c12_219 = arith.constant 12 : index
    %c480_220 = arith.constant 480 : index
    %155 = vector.load %arg19[%c12_219, %c480_220] : memref<16x512xf32, #tpu.memory_space<vmem>>, vector<4x32xf32>
    tpu.vector_store %arg19[%c12_219, %c480_220], %154 {strides = array<i32>} : memref<16x512xf32, #tpu.memory_space<vmem>>, vector<4x32xf32>,
    %c0_221 = arith.constant 0 : index
    %c0_222 = arith.constant 0 : index
    %156 = vector.load %arg19[%c0_221, %c0_222] : memref<16x512xf32, #tpu.memory_space<vmem>>, vector<16x512xf32>
    %c0_223 = arith.constant 0 : index
    %c0_224 = arith.constant 0 : index
    %157 = vector.load %arg4[%c0_223, %c0_224] : memref<512x64xf32, #tpu.memory_space<vmem>>, vector<512x64xf32>
    %cst_225 = arith.constant dense<0.000000e+00> : vector<16x64xf32>
    %158 = tpu.matmul %156, %157, %cst_225 {dimension_numbers = #tpu.dot_dimension_numbers<[1], [0], [0], [1], [0, 0, 1, 1], [], []>} : vector<16x512xf32>, vector<512x64xf32>, vector<16x64xf32> -> vector<16x64xf32>
    %c0_226 = arith.constant 0 : index
    %c0_227 = arith.constant 0 : index
    %159 = vector.load %arg5[%c0_226, %c0_227] : memref<1x64xf32, #tpu.memory_space<vmem>>, vector<1x64xf32>
    %160 = vector.broadcast %159 : vector<1x64xf32> to vector<16x64xf32>
    %161 = arith.addf %158, %160 : vector<16x64xf32>
    %cst_228 = arith.constant 0.000000e+00 : f32
    %162 = vector.broadcast %cst_228 : f32 to vector<16x64xf32>
    %163 = arith.maximumf %161, %162 : vector<16x64xf32>
    %cst_229 = arith.constant 0.000000e+00 : f32
    %164 = vector.broadcast %cst_229 : f32 to vector<48x64xf32>
    %c0_230 = arith.constant 0 : index
    %c0_231 = arith.constant 0 : index
    %165 = vector.load %arg20[%c0_230, %c0_231] : memref<48x64xf32, #tpu.memory_space<vmem>>, vector<48x64xf32>
    tpu.vector_store %arg20[%c0_230, %c0_231], %164 {strides = array<i32>} : memref<48x64xf32, #tpu.memory_space<vmem>>, vector<48x64xf32>,
    %166 = vector.extract_strided_slice %163 {offsets = [0, 0], sizes = [4, 64], strides = [1, 1]} : vector<16x64xf32> to vector<4x64xf32>
    %c7 = arith.constant 7 : index
    %c0_232 = arith.constant 0 : index
    %167 = vector.load %arg20[%c7, %c0_232] : memref<48x64xf32, #tpu.memory_space<vmem>>, vector<4x64xf32>
    tpu.vector_store %arg20[%c7, %c0_232], %166 {strides = array<i32>} : memref<48x64xf32, #tpu.memory_space<vmem>>, vector<4x64xf32>,
    %168 = vector.extract_strided_slice %163 {offsets = [4, 0], sizes = [4, 64], strides = [1, 1]} : vector<16x64xf32> to vector<4x64xf32>
    %c13_233 = arith.constant 13 : index
    %c0_234 = arith.constant 0 : index
    %169 = vector.load %arg20[%c13_233, %c0_234] : memref<48x64xf32, #tpu.memory_space<vmem>>, vector<4x64xf32>
    tpu.vector_store %arg20[%c13_233, %c0_234], %168 {strides = array<i32>} : memref<48x64xf32, #tpu.memory_space<vmem>>, vector<4x64xf32>,
    %170 = vector.extract_strided_slice %163 {offsets = [8, 0], sizes = [4, 64], strides = [1, 1]} : vector<16x64xf32> to vector<4x64xf32>
    %c31_235 = arith.constant 31 : index
    %c0_236 = arith.constant 0 : index
    %171 = vector.load %arg20[%c31_235, %c0_236] : memref<48x64xf32, #tpu.memory_space<vmem>>, vector<4x64xf32>
    tpu.vector_store %arg20[%c31_235, %c0_236], %170 {strides = array<i32>} : memref<48x64xf32, #tpu.memory_space<vmem>>, vector<4x64xf32>,
    %172 = vector.extract_strided_slice %163 {offsets = [12, 0], sizes = [4, 64], strides = [1, 1]} : vector<16x64xf32> to vector<4x64xf32>
    %c37 = arith.constant 37 : index
    %c0_237 = arith.constant 0 : index
    %173 = vector.load %arg20[%c37, %c0_237] : memref<48x64xf32, #tpu.memory_space<vmem>>, vector<4x64xf32>
    tpu.vector_store %arg20[%c37, %c0_237], %172 {strides = array<i32>} : memref<48x64xf32, #tpu.memory_space<vmem>>, vector<4x64xf32>,
    %cst_238 = arith.constant 0.000000e+00 : f32
    %174 = vector.broadcast %cst_238 : f32 to vector<16x640xf32>
    %c0_239 = arith.constant 0 : index
    %c0_240 = arith.constant 0 : index
    %175 = vector.load %arg21[%c0_239, %c0_240] : memref<16x640xf32, #tpu.memory_space<vmem>>, vector<16x640xf32>
    tpu.vector_store %arg21[%c0_239, %c0_240], %174 {strides = array<i32>} : memref<16x640xf32, #tpu.memory_space<vmem>>, vector<16x640xf32>,
    %c0_241 = arith.constant 0 : index
    %c0_242 = arith.constant 0 : index
    %176 = vector.load %arg20[%c0_241, %c0_242] : memref<48x64xf32, #tpu.memory_space<vmem>>, vector<4x64xf32>
    %c0_243 = arith.constant 0 : index
    %c0_244 = arith.constant 0 : index
    %177 = vector.load %arg21[%c0_243, %c0_244] : memref<16x640xf32, #tpu.memory_space<vmem>>, vector<4x64xf32>
    tpu.vector_store %arg21[%c0_243, %c0_244], %176 {strides = array<i32>} : memref<16x640xf32, #tpu.memory_space<vmem>>, vector<4x64xf32>,
    %c6 = arith.constant 6 : index
    %c0_245 = arith.constant 0 : index
    %178 = vector.load %arg20[%c6, %c0_245] : memref<48x64xf32, #tpu.memory_space<vmem>>, vector<4x64xf32>
    %c4_246 = arith.constant 4 : index
    %c0_247 = arith.constant 0 : index
    %179 = vector.load %arg21[%c4_246, %c0_247] : memref<16x640xf32, #tpu.memory_space<vmem>>, vector<4x64xf32>
    tpu.vector_store %arg21[%c4_246, %c0_247], %178 {strides = array<i32>} : memref<16x640xf32, #tpu.memory_space<vmem>>, vector<4x64xf32>,
    %c24 = arith.constant 24 : index
    %c0_248 = arith.constant 0 : index
    %180 = vector.load %arg20[%c24, %c0_248] : memref<48x64xf32, #tpu.memory_space<vmem>>, vector<4x64xf32>
    %c8_249 = arith.constant 8 : index
    %c0_250 = arith.constant 0 : index
    %181 = vector.load %arg21[%c8_249, %c0_250] : memref<16x640xf32, #tpu.memory_space<vmem>>, vector<4x64xf32>
    tpu.vector_store %arg21[%c8_249, %c0_250], %180 {strides = array<i32>} : memref<16x640xf32, #tpu.memory_space<vmem>>, vector<4x64xf32>,
    %c30_251 = arith.constant 30 : index
    %c0_252 = arith.constant 0 : index
    %182 = vector.load %arg20[%c30_251, %c0_252] : memref<48x64xf32, #tpu.memory_space<vmem>>, vector<4x64xf32>
    %c12_253 = arith.constant 12 : index
    %c0_254 = arith.constant 0 : index
    %183 = vector.load %arg21[%c12_253, %c0_254] : memref<16x640xf32, #tpu.memory_space<vmem>>, vector<4x64xf32>
    tpu.vector_store %arg21[%c12_253, %c0_254], %182 {strides = array<i32>} : memref<16x640xf32, #tpu.memory_space<vmem>>, vector<4x64xf32>,
    %c1_255 = arith.constant 1 : index
    %c0_256 = arith.constant 0 : index
    %184 = vector.load %arg20[%c1_255, %c0_256] : memref<48x64xf32, #tpu.memory_space<vmem>>, vector<4x64xf32>
    %c0_257 = arith.constant 0 : index
    %c64_258 = arith.constant 64 : index
    %185 = vector.load %arg21[%c0_257, %c64_258] : memref<16x640xf32, #tpu.memory_space<vmem>>, vector<4x64xf32>
    tpu.vector_store %arg21[%c0_257, %c64_258], %184 {strides = array<i32>} : memref<16x640xf32, #tpu.memory_space<vmem>>, vector<4x64xf32>,
    %c7_259 = arith.constant 7 : index
    %c0_260 = arith.constant 0 : index
    %186 = vector.load %arg20[%c7_259, %c0_260] : memref<48x64xf32, #tpu.memory_space<vmem>>, vector<4x64xf32>
    %c4_261 = arith.constant 4 : index
    %c64_262 = arith.constant 64 : index
    %187 = vector.load %arg21[%c4_261, %c64_262] : memref<16x640xf32, #tpu.memory_space<vmem>>, vector<4x64xf32>
    tpu.vector_store %arg21[%c4_261, %c64_262], %186 {strides = array<i32>} : memref<16x640xf32, #tpu.memory_space<vmem>>, vector<4x64xf32>,
    %c25 = arith.constant 25 : index
    %c0_263 = arith.constant 0 : index
    %188 = vector.load %arg20[%c25, %c0_263] : memref<48x64xf32, #tpu.memory_space<vmem>>, vector<4x64xf32>
    %c8_264 = arith.constant 8 : index
    %c64_265 = arith.constant 64 : index
    %189 = vector.load %arg21[%c8_264, %c64_265] : memref<16x640xf32, #tpu.memory_space<vmem>>, vector<4x64xf32>
    tpu.vector_store %arg21[%c8_264, %c64_265], %188 {strides = array<i32>} : memref<16x640xf32, #tpu.memory_space<vmem>>, vector<4x64xf32>,
    %c31_266 = arith.constant 31 : index
    %c0_267 = arith.constant 0 : index
    %190 = vector.load %arg20[%c31_266, %c0_267] : memref<48x64xf32, #tpu.memory_space<vmem>>, vector<4x64xf32>
    %c12_268 = arith.constant 12 : index
    %c64_269 = arith.constant 64 : index
    %191 = vector.load %arg21[%c12_268, %c64_269] : memref<16x640xf32, #tpu.memory_space<vmem>>, vector<4x64xf32>
    tpu.vector_store %arg21[%c12_268, %c64_269], %190 {strides = array<i32>} : memref<16x640xf32, #tpu.memory_space<vmem>>, vector<4x64xf32>,
    %c2_270 = arith.constant 2 : index
    %c0_271 = arith.constant 0 : index
    %192 = vector.load %arg20[%c2_270, %c0_271] : memref<48x64xf32, #tpu.memory_space<vmem>>, vector<4x64xf32>
    %c0_272 = arith.constant 0 : index
    %c128_273 = arith.constant 128 : index
    %193 = vector.load %arg21[%c0_272, %c128_273] : memref<16x640xf32, #tpu.memory_space<vmem>>, vector<4x64xf32>
    tpu.vector_store %arg21[%c0_272, %c128_273], %192 {strides = array<i32>} : memref<16x640xf32, #tpu.memory_space<vmem>>, vector<4x64xf32>,
    %c8_274 = arith.constant 8 : index
    %c0_275 = arith.constant 0 : index
    %194 = vector.load %arg20[%c8_274, %c0_275] : memref<48x64xf32, #tpu.memory_space<vmem>>, vector<4x64xf32>
    %c4_276 = arith.constant 4 : index
    %c128_277 = arith.constant 128 : index
    %195 = vector.load %arg21[%c4_276, %c128_277] : memref<16x640xf32, #tpu.memory_space<vmem>>, vector<4x64xf32>
    tpu.vector_store %arg21[%c4_276, %c128_277], %194 {strides = array<i32>} : memref<16x640xf32, #tpu.memory_space<vmem>>, vector<4x64xf32>,
    %c26 = arith.constant 26 : index
    %c0_278 = arith.constant 0 : index
    %196 = vector.load %arg20[%c26, %c0_278] : memref<48x64xf32, #tpu.memory_space<vmem>>, vector<4x64xf32>
    %c8_279 = arith.constant 8 : index
    %c128_280 = arith.constant 128 : index
    %197 = vector.load %arg21[%c8_279, %c128_280] : memref<16x640xf32, #tpu.memory_space<vmem>>, vector<4x64xf32>
    tpu.vector_store %arg21[%c8_279, %c128_280], %196 {strides = array<i32>} : memref<16x640xf32, #tpu.memory_space<vmem>>, vector<4x64xf32>,
    %c32_281 = arith.constant 32 : index
    %c0_282 = arith.constant 0 : index
    %198 = vector.load %arg20[%c32_281, %c0_282] : memref<48x64xf32, #tpu.memory_space<vmem>>, vector<4x64xf32>
    %c12_283 = arith.constant 12 : index
    %c128_284 = arith.constant 128 : index
    %199 = vector.load %arg21[%c12_283, %c128_284] : memref<16x640xf32, #tpu.memory_space<vmem>>, vector<4x64xf32>
    tpu.vector_store %arg21[%c12_283, %c128_284], %198 {strides = array<i32>} : memref<16x640xf32, #tpu.memory_space<vmem>>, vector<4x64xf32>,
    %c6_285 = arith.constant 6 : index
    %c0_286 = arith.constant 0 : index
    %200 = vector.load %arg20[%c6_285, %c0_286] : memref<48x64xf32, #tpu.memory_space<vmem>>, vector<4x64xf32>
    %c0_287 = arith.constant 0 : index
    %c192_288 = arith.constant 192 : index
    %201 = vector.load %arg21[%c0_287, %c192_288] : memref<16x640xf32, #tpu.memory_space<vmem>>, vector<4x64xf32>
    tpu.vector_store %arg21[%c0_287, %c192_288], %200 {strides = array<i32>} : memref<16x640xf32, #tpu.memory_space<vmem>>, vector<4x64xf32>,
    %c12_289 = arith.constant 12 : index
    %c0_290 = arith.constant 0 : index
    %202 = vector.load %arg20[%c12_289, %c0_290] : memref<48x64xf32, #tpu.memory_space<vmem>>, vector<4x64xf32>
    %c4_291 = arith.constant 4 : index
    %c192_292 = arith.constant 192 : index
    %203 = vector.load %arg21[%c4_291, %c192_292] : memref<16x640xf32, #tpu.memory_space<vmem>>, vector<4x64xf32>
    tpu.vector_store %arg21[%c4_291, %c192_292], %202 {strides = array<i32>} : memref<16x640xf32, #tpu.memory_space<vmem>>, vector<4x64xf32>,
    %c30_293 = arith.constant 30 : index
    %c0_294 = arith.constant 0 : index
    %204 = vector.load %arg20[%c30_293, %c0_294] : memref<48x64xf32, #tpu.memory_space<vmem>>, vector<4x64xf32>
    %c8_295 = arith.constant 8 : index
    %c192_296 = arith.constant 192 : index
    %205 = vector.load %arg21[%c8_295, %c192_296] : memref<16x640xf32, #tpu.memory_space<vmem>>, vector<4x64xf32>
    tpu.vector_store %arg21[%c8_295, %c192_296], %204 {strides = array<i32>} : memref<16x640xf32, #tpu.memory_space<vmem>>, vector<4x64xf32>,
    %c36 = arith.constant 36 : index
    %c0_297 = arith.constant 0 : index
    %206 = vector.load %arg20[%c36, %c0_297] : memref<48x64xf32, #tpu.memory_space<vmem>>, vector<4x64xf32>
    %c12_298 = arith.constant 12 : index
    %c192_299 = arith.constant 192 : index
    %207 = vector.load %arg21[%c12_298, %c192_299] : memref<16x640xf32, #tpu.memory_space<vmem>>, vector<4x64xf32>
    tpu.vector_store %arg21[%c12_298, %c192_299], %206 {strides = array<i32>} : memref<16x640xf32, #tpu.memory_space<vmem>>, vector<4x64xf32>,
    %c7_300 = arith.constant 7 : index
    %c0_301 = arith.constant 0 : index
    %208 = vector.load %arg20[%c7_300, %c0_301] : memref<48x64xf32, #tpu.memory_space<vmem>>, vector<4x64xf32>
    %c0_302 = arith.constant 0 : index
    %c256_303 = arith.constant 256 : index
    %209 = vector.load %arg21[%c0_302, %c256_303] : memref<16x640xf32, #tpu.memory_space<vmem>>, vector<4x64xf32>
    tpu.vector_store %arg21[%c0_302, %c256_303], %208 {strides = array<i32>} : memref<16x640xf32, #tpu.memory_space<vmem>>, vector<4x64xf32>,
    %c13_304 = arith.constant 13 : index
    %c0_305 = arith.constant 0 : index
    %210 = vector.load %arg20[%c13_304, %c0_305] : memref<48x64xf32, #tpu.memory_space<vmem>>, vector<4x64xf32>
    %c4_306 = arith.constant 4 : index
    %c256_307 = arith.constant 256 : index
    %211 = vector.load %arg21[%c4_306, %c256_307] : memref<16x640xf32, #tpu.memory_space<vmem>>, vector<4x64xf32>
    tpu.vector_store %arg21[%c4_306, %c256_307], %210 {strides = array<i32>} : memref<16x640xf32, #tpu.memory_space<vmem>>, vector<4x64xf32>,
    %c31_308 = arith.constant 31 : index
    %c0_309 = arith.constant 0 : index
    %212 = vector.load %arg20[%c31_308, %c0_309] : memref<48x64xf32, #tpu.memory_space<vmem>>, vector<4x64xf32>
    %c8_310 = arith.constant 8 : index
    %c256_311 = arith.constant 256 : index
    %213 = vector.load %arg21[%c8_310, %c256_311] : memref<16x640xf32, #tpu.memory_space<vmem>>, vector<4x64xf32>
    tpu.vector_store %arg21[%c8_310, %c256_311], %212 {strides = array<i32>} : memref<16x640xf32, #tpu.memory_space<vmem>>, vector<4x64xf32>,
    %c37_312 = arith.constant 37 : index
    %c0_313 = arith.constant 0 : index
    %214 = vector.load %arg20[%c37_312, %c0_313] : memref<48x64xf32, #tpu.memory_space<vmem>>, vector<4x64xf32>
    %c12_314 = arith.constant 12 : index
    %c256_315 = arith.constant 256 : index
    %215 = vector.load %arg21[%c12_314, %c256_315] : memref<16x640xf32, #tpu.memory_space<vmem>>, vector<4x64xf32>
    tpu.vector_store %arg21[%c12_314, %c256_315], %214 {strides = array<i32>} : memref<16x640xf32, #tpu.memory_space<vmem>>, vector<4x64xf32>,
    %c8_316 = arith.constant 8 : index
    %c0_317 = arith.constant 0 : index
    %216 = vector.load %arg20[%c8_316, %c0_317] : memref<48x64xf32, #tpu.memory_space<vmem>>, vector<4x64xf32>
    %c0_318 = arith.constant 0 : index
    %c320_319 = arith.constant 320 : index
    %217 = vector.load %arg21[%c0_318, %c320_319] : memref<16x640xf32, #tpu.memory_space<vmem>>, vector<4x64xf32>
    tpu.vector_store %arg21[%c0_318, %c320_319], %216 {strides = array<i32>} : memref<16x640xf32, #tpu.memory_space<vmem>>, vector<4x64xf32>,
    %c14 = arith.constant 14 : index
    %c0_320 = arith.constant 0 : index
    %218 = vector.load %arg20[%c14, %c0_320] : memref<48x64xf32, #tpu.memory_space<vmem>>, vector<4x64xf32>
    %c4_321 = arith.constant 4 : index
    %c320_322 = arith.constant 320 : index
    %219 = vector.load %arg21[%c4_321, %c320_322] : memref<16x640xf32, #tpu.memory_space<vmem>>, vector<4x64xf32>
    tpu.vector_store %arg21[%c4_321, %c320_322], %218 {strides = array<i32>} : memref<16x640xf32, #tpu.memory_space<vmem>>, vector<4x64xf32>,
    %c32_323 = arith.constant 32 : index
    %c0_324 = arith.constant 0 : index
    %220 = vector.load %arg20[%c32_323, %c0_324] : memref<48x64xf32, #tpu.memory_space<vmem>>, vector<4x64xf32>
    %c8_325 = arith.constant 8 : index
    %c320_326 = arith.constant 320 : index
    %221 = vector.load %arg21[%c8_325, %c320_326] : memref<16x640xf32, #tpu.memory_space<vmem>>, vector<4x64xf32>
    tpu.vector_store %arg21[%c8_325, %c320_326], %220 {strides = array<i32>} : memref<16x640xf32, #tpu.memory_space<vmem>>, vector<4x64xf32>,
    %c38 = arith.constant 38 : index
    %c0_327 = arith.constant 0 : index
    %222 = vector.load %arg20[%c38, %c0_327] : memref<48x64xf32, #tpu.memory_space<vmem>>, vector<4x64xf32>
    %c12_328 = arith.constant 12 : index
    %c320_329 = arith.constant 320 : index
    %223 = vector.load %arg21[%c12_328, %c320_329] : memref<16x640xf32, #tpu.memory_space<vmem>>, vector<4x64xf32>
    tpu.vector_store %arg21[%c12_328, %c320_329], %222 {strides = array<i32>} : memref<16x640xf32, #tpu.memory_space<vmem>>, vector<4x64xf32>,
    %c12_330 = arith.constant 12 : index
    %c0_331 = arith.constant 0 : index
    %224 = vector.load %arg20[%c12_330, %c0_331] : memref<48x64xf32, #tpu.memory_space<vmem>>, vector<4x64xf32>
    %c0_332 = arith.constant 0 : index
    %c384_333 = arith.constant 384 : index
    %225 = vector.load %arg21[%c0_332, %c384_333] : memref<16x640xf32, #tpu.memory_space<vmem>>, vector<4x64xf32>
    tpu.vector_store %arg21[%c0_332, %c384_333], %224 {strides = array<i32>} : memref<16x640xf32, #tpu.memory_space<vmem>>, vector<4x64xf32>,
    %c18 = arith.constant 18 : index
    %c0_334 = arith.constant 0 : index
    %226 = vector.load %arg20[%c18, %c0_334] : memref<48x64xf32, #tpu.memory_space<vmem>>, vector<4x64xf32>
    %c4_335 = arith.constant 4 : index
    %c384_336 = arith.constant 384 : index
    %227 = vector.load %arg21[%c4_335, %c384_336] : memref<16x640xf32, #tpu.memory_space<vmem>>, vector<4x64xf32>
    tpu.vector_store %arg21[%c4_335, %c384_336], %226 {strides = array<i32>} : memref<16x640xf32, #tpu.memory_space<vmem>>, vector<4x64xf32>,
    %c36_337 = arith.constant 36 : index
    %c0_338 = arith.constant 0 : index
    %228 = vector.load %arg20[%c36_337, %c0_338] : memref<48x64xf32, #tpu.memory_space<vmem>>, vector<4x64xf32>
    %c8_339 = arith.constant 8 : index
    %c384_340 = arith.constant 384 : index
    %229 = vector.load %arg21[%c8_339, %c384_340] : memref<16x640xf32, #tpu.memory_space<vmem>>, vector<4x64xf32>
    tpu.vector_store %arg21[%c8_339, %c384_340], %228 {strides = array<i32>} : memref<16x640xf32, #tpu.memory_space<vmem>>, vector<4x64xf32>,
    %c42_341 = arith.constant 42 : index
    %c0_342 = arith.constant 0 : index
    %230 = vector.load %arg20[%c42_341, %c0_342] : memref<48x64xf32, #tpu.memory_space<vmem>>, vector<4x64xf32>
    %c12_343 = arith.constant 12 : index
    %c384_344 = arith.constant 384 : index
    %231 = vector.load %arg21[%c12_343, %c384_344] : memref<16x640xf32, #tpu.memory_space<vmem>>, vector<4x64xf32>
    tpu.vector_store %arg21[%c12_343, %c384_344], %230 {strides = array<i32>} : memref<16x640xf32, #tpu.memory_space<vmem>>, vector<4x64xf32>,
    %c13_345 = arith.constant 13 : index
    %c0_346 = arith.constant 0 : index
    %232 = vector.load %arg20[%c13_345, %c0_346] : memref<48x64xf32, #tpu.memory_space<vmem>>, vector<4x64xf32>
    %c0_347 = arith.constant 0 : index
    %c448_348 = arith.constant 448 : index
    %233 = vector.load %arg21[%c0_347, %c448_348] : memref<16x640xf32, #tpu.memory_space<vmem>>, vector<4x64xf32>
    tpu.vector_store %arg21[%c0_347, %c448_348], %232 {strides = array<i32>} : memref<16x640xf32, #tpu.memory_space<vmem>>, vector<4x64xf32>,
    %c19 = arith.constant 19 : index
    %c0_349 = arith.constant 0 : index
    %234 = vector.load %arg20[%c19, %c0_349] : memref<48x64xf32, #tpu.memory_space<vmem>>, vector<4x64xf32>
    %c4_350 = arith.constant 4 : index
    %c448_351 = arith.constant 448 : index
    %235 = vector.load %arg21[%c4_350, %c448_351] : memref<16x640xf32, #tpu.memory_space<vmem>>, vector<4x64xf32>
    tpu.vector_store %arg21[%c4_350, %c448_351], %234 {strides = array<i32>} : memref<16x640xf32, #tpu.memory_space<vmem>>, vector<4x64xf32>,
    %c37_352 = arith.constant 37 : index
    %c0_353 = arith.constant 0 : index
    %236 = vector.load %arg20[%c37_352, %c0_353] : memref<48x64xf32, #tpu.memory_space<vmem>>, vector<4x64xf32>
    %c8_354 = arith.constant 8 : index
    %c448_355 = arith.constant 448 : index
    %237 = vector.load %arg21[%c8_354, %c448_355] : memref<16x640xf32, #tpu.memory_space<vmem>>, vector<4x64xf32>
    tpu.vector_store %arg21[%c8_354, %c448_355], %236 {strides = array<i32>} : memref<16x640xf32, #tpu.memory_space<vmem>>, vector<4x64xf32>,
    %c43_356 = arith.constant 43 : index
    %c0_357 = arith.constant 0 : index
    %238 = vector.load %arg20[%c43_356, %c0_357] : memref<48x64xf32, #tpu.memory_space<vmem>>, vector<4x64xf32>
    %c12_358 = arith.constant 12 : index
    %c448_359 = arith.constant 448 : index
    %239 = vector.load %arg21[%c12_358, %c448_359] : memref<16x640xf32, #tpu.memory_space<vmem>>, vector<4x64xf32>
    tpu.vector_store %arg21[%c12_358, %c448_359], %238 {strides = array<i32>} : memref<16x640xf32, #tpu.memory_space<vmem>>, vector<4x64xf32>,
    %c14_360 = arith.constant 14 : index
    %c0_361 = arith.constant 0 : index
    %240 = vector.load %arg20[%c14_360, %c0_361] : memref<48x64xf32, #tpu.memory_space<vmem>>, vector<4x64xf32>
    %c0_362 = arith.constant 0 : index
    %c512 = arith.constant 512 : index
    %241 = vector.load %arg21[%c0_362, %c512] : memref<16x640xf32, #tpu.memory_space<vmem>>, vector<4x64xf32>
    tpu.vector_store %arg21[%c0_362, %c512], %240 {strides = array<i32>} : memref<16x640xf32, #tpu.memory_space<vmem>>, vector<4x64xf32>,
    %c20_363 = arith.constant 20 : index
    %c0_364 = arith.constant 0 : index
    %242 = vector.load %arg20[%c20_363, %c0_364] : memref<48x64xf32, #tpu.memory_space<vmem>>, vector<4x64xf32>
    %c4_365 = arith.constant 4 : index
    %c512_366 = arith.constant 512 : index
    %243 = vector.load %arg21[%c4_365, %c512_366] : memref<16x640xf32, #tpu.memory_space<vmem>>, vector<4x64xf32>
    tpu.vector_store %arg21[%c4_365, %c512_366], %242 {strides = array<i32>} : memref<16x640xf32, #tpu.memory_space<vmem>>, vector<4x64xf32>,
    %c38_367 = arith.constant 38 : index
    %c0_368 = arith.constant 0 : index
    %244 = vector.load %arg20[%c38_367, %c0_368] : memref<48x64xf32, #tpu.memory_space<vmem>>, vector<4x64xf32>
    %c8_369 = arith.constant 8 : index
    %c512_370 = arith.constant 512 : index
    %245 = vector.load %arg21[%c8_369, %c512_370] : memref<16x640xf32, #tpu.memory_space<vmem>>, vector<4x64xf32>
    tpu.vector_store %arg21[%c8_369, %c512_370], %244 {strides = array<i32>} : memref<16x640xf32, #tpu.memory_space<vmem>>, vector<4x64xf32>,
    %c44 = arith.constant 44 : index
    %c0_371 = arith.constant 0 : index
    %246 = vector.load %arg20[%c44, %c0_371] : memref<48x64xf32, #tpu.memory_space<vmem>>, vector<4x64xf32>
    %c12_372 = arith.constant 12 : index
    %c512_373 = arith.constant 512 : index
    %247 = vector.load %arg21[%c12_372, %c512_373] : memref<16x640xf32, #tpu.memory_space<vmem>>, vector<4x64xf32>
    tpu.vector_store %arg21[%c12_372, %c512_373], %246 {strides = array<i32>} : memref<16x640xf32, #tpu.memory_space<vmem>>, vector<4x64xf32>,
    %c0_374 = arith.constant 0 : index
    %c0_375 = arith.constant 0 : index
    %248 = vector.load %arg21[%c0_374, %c0_375] : memref<16x640xf32, #tpu.memory_space<vmem>>, vector<16x640xf32>
    %c0_376 = arith.constant 0 : index
    %c0_377 = arith.constant 0 : index
    %249 = vector.load %arg6[%c0_376, %c0_377] : memref<640x64xf32, #tpu.memory_space<vmem>>, vector<640x64xf32>
    %cst_378 = arith.constant dense<0.000000e+00> : vector<16x64xf32>
    %250 = tpu.matmul %248, %249, %cst_378 {dimension_numbers = #tpu.dot_dimension_numbers<[1], [0], [0], [1], [0, 0, 1, 1], [], []>} : vector<16x640xf32>, vector<640x64xf32>, vector<16x64xf32> -> vector<16x64xf32>
    %c0_379 = arith.constant 0 : index
    %c0_380 = arith.constant 0 : index
    %251 = vector.load %arg7[%c0_379, %c0_380] : memref<1x64xf32, #tpu.memory_space<vmem>>, vector<1x64xf32>
    %252 = vector.broadcast %251 : vector<1x64xf32> to vector<16x64xf32>
    %253 = arith.addf %250, %252 : vector<16x64xf32>
    %cst_381 = arith.constant 0.000000e+00 : f32
    %254 = vector.broadcast %cst_381 : f32 to vector<16x64xf32>
    %255 = arith.maximumf %253, %254 : vector<16x64xf32>
    %cst_382 = arith.constant 0.000000e+00 : f32
    %256 = vector.broadcast %cst_382 : f32 to vector<8x512xf32>
    %c0_383 = arith.constant 0 : index
    %c0_384 = arith.constant 0 : index
    %257 = vector.load %arg22[%c0_383, %c0_384] : memref<8x512xf32, #tpu.memory_space<vmem>>, vector<8x512xf32>
    tpu.vector_store %arg22[%c0_383, %c0_384], %256 {strides = array<i32>} : memref<8x512xf32, #tpu.memory_space<vmem>>, vector<8x512xf32>,
    %258 = vector.extract_strided_slice %255 {offsets = [0, 0], sizes = [1, 64], strides = [1, 1]} : vector<16x64xf32> to vector<1x64xf32>
    %c0_385 = arith.constant 0 : index
    %c0_386 = arith.constant 0 : index
    %259 = vector.load %arg22[%c0_385, %c0_386] : memref<8x512xf32, #tpu.memory_space<vmem>>, vector<1x64xf32>
    tpu.vector_store %arg22[%c0_385, %c0_386], %258 {strides = array<i32>} : memref<8x512xf32, #tpu.memory_space<vmem>>, vector<1x64xf32>,
    %260 = vector.extract_strided_slice %255 {offsets = [1, 0], sizes = [1, 64], strides = [1, 1]} : vector<16x64xf32> to vector<1x64xf32>
    %c0_387 = arith.constant 0 : index
    %c64_388 = arith.constant 64 : index
    %261 = vector.load %arg22[%c0_387, %c64_388] : memref<8x512xf32, #tpu.memory_space<vmem>>, vector<1x64xf32>
    tpu.vector_store %arg22[%c0_387, %c64_388], %260 {strides = array<i32>} : memref<8x512xf32, #tpu.memory_space<vmem>>, vector<1x64xf32>,
    %262 = vector.extract_strided_slice %255 {offsets = [2, 0], sizes = [1, 64], strides = [1, 1]} : vector<16x64xf32> to vector<1x64xf32>
    %c0_389 = arith.constant 0 : index
    %c128_390 = arith.constant 128 : index
    %263 = vector.load %arg22[%c0_389, %c128_390] : memref<8x512xf32, #tpu.memory_space<vmem>>, vector<1x64xf32>
    tpu.vector_store %arg22[%c0_389, %c128_390], %262 {strides = array<i32>} : memref<8x512xf32, #tpu.memory_space<vmem>>, vector<1x64xf32>,
    %264 = vector.extract_strided_slice %255 {offsets = [3, 0], sizes = [1, 64], strides = [1, 1]} : vector<16x64xf32> to vector<1x64xf32>
    %c0_391 = arith.constant 0 : index
    %c192_392 = arith.constant 192 : index
    %265 = vector.load %arg22[%c0_391, %c192_392] : memref<8x512xf32, #tpu.memory_space<vmem>>, vector<1x64xf32>
    tpu.vector_store %arg22[%c0_391, %c192_392], %264 {strides = array<i32>} : memref<8x512xf32, #tpu.memory_space<vmem>>, vector<1x64xf32>,
    %266 = vector.extract_strided_slice %255 {offsets = [4, 0], sizes = [1, 64], strides = [1, 1]} : vector<16x64xf32> to vector<1x64xf32>
    %c0_393 = arith.constant 0 : index
    %c256_394 = arith.constant 256 : index
    %267 = vector.load %arg22[%c0_393, %c256_394] : memref<8x512xf32, #tpu.memory_space<vmem>>, vector<1x64xf32>
    tpu.vector_store %arg22[%c0_393, %c256_394], %266 {strides = array<i32>} : memref<8x512xf32, #tpu.memory_space<vmem>>, vector<1x64xf32>,
    %268 = vector.extract_strided_slice %255 {offsets = [5, 0], sizes = [1, 64], strides = [1, 1]} : vector<16x64xf32> to vector<1x64xf32>
    %c0_395 = arith.constant 0 : index
    %c320_396 = arith.constant 320 : index
    %269 = vector.load %arg22[%c0_395, %c320_396] : memref<8x512xf32, #tpu.memory_space<vmem>>, vector<1x64xf32>
    tpu.vector_store %arg22[%c0_395, %c320_396], %268 {strides = array<i32>} : memref<8x512xf32, #tpu.memory_space<vmem>>, vector<1x64xf32>,
    %270 = vector.extract_strided_slice %255 {offsets = [6, 0], sizes = [1, 64], strides = [1, 1]} : vector<16x64xf32> to vector<1x64xf32>
    %c0_397 = arith.constant 0 : index
    %c384_398 = arith.constant 384 : index
    %271 = vector.load %arg22[%c0_397, %c384_398] : memref<8x512xf32, #tpu.memory_space<vmem>>, vector<1x64xf32>
    tpu.vector_store %arg22[%c0_397, %c384_398], %270 {strides = array<i32>} : memref<8x512xf32, #tpu.memory_space<vmem>>, vector<1x64xf32>,
    %272 = vector.extract_strided_slice %255 {offsets = [7, 0], sizes = [1, 64], strides = [1, 1]} : vector<16x64xf32> to vector<1x64xf32>
    %c0_399 = arith.constant 0 : index
    %c448_400 = arith.constant 448 : index
    %273 = vector.load %arg22[%c0_399, %c448_400] : memref<8x512xf32, #tpu.memory_space<vmem>>, vector<1x64xf32>
    tpu.vector_store %arg22[%c0_399, %c448_400], %272 {strides = array<i32>} : memref<8x512xf32, #tpu.memory_space<vmem>>, vector<1x64xf32>,
    %274 = vector.extract_strided_slice %255 {offsets = [8, 0], sizes = [1, 64], strides = [1, 1]} : vector<16x64xf32> to vector<1x64xf32>
    %c1_401 = arith.constant 1 : index
    %c0_402 = arith.constant 0 : index
    %275 = vector.load %arg22[%c1_401, %c0_402] : memref<8x512xf32, #tpu.memory_space<vmem>>, vector<1x64xf32>
    tpu.vector_store %arg22[%c1_401, %c0_402], %274 {strides = array<i32>} : memref<8x512xf32, #tpu.memory_space<vmem>>, vector<1x64xf32>,
    %276 = vector.extract_strided_slice %255 {offsets = [9, 0], sizes = [1, 64], strides = [1, 1]} : vector<16x64xf32> to vector<1x64xf32>
    %c1_403 = arith.constant 1 : index
    %c64_404 = arith.constant 64 : index
    %277 = vector.load %arg22[%c1_403, %c64_404] : memref<8x512xf32, #tpu.memory_space<vmem>>, vector<1x64xf32>
    tpu.vector_store %arg22[%c1_403, %c64_404], %276 {strides = array<i32>} : memref<8x512xf32, #tpu.memory_space<vmem>>, vector<1x64xf32>,
    %278 = vector.extract_strided_slice %255 {offsets = [10, 0], sizes = [1, 64], strides = [1, 1]} : vector<16x64xf32> to vector<1x64xf32>
    %c1_405 = arith.constant 1 : index
    %c128_406 = arith.constant 128 : index
    %279 = vector.load %arg22[%c1_405, %c128_406] : memref<8x512xf32, #tpu.memory_space<vmem>>, vector<1x64xf32>
    tpu.vector_store %arg22[%c1_405, %c128_406], %278 {strides = array<i32>} : memref<8x512xf32, #tpu.memory_space<vmem>>, vector<1x64xf32>,
    %280 = vector.extract_strided_slice %255 {offsets = [11, 0], sizes = [1, 64], strides = [1, 1]} : vector<16x64xf32> to vector<1x64xf32>
    %c1_407 = arith.constant 1 : index
    %c192_408 = arith.constant 192 : index
    %281 = vector.load %arg22[%c1_407, %c192_408] : memref<8x512xf32, #tpu.memory_space<vmem>>, vector<1x64xf32>
    tpu.vector_store %arg22[%c1_407, %c192_408], %280 {strides = array<i32>} : memref<8x512xf32, #tpu.memory_space<vmem>>, vector<1x64xf32>,
    %282 = vector.extract_strided_slice %255 {offsets = [12, 0], sizes = [1, 64], strides = [1, 1]} : vector<16x64xf32> to vector<1x64xf32>
    %c1_409 = arith.constant 1 : index
    %c256_410 = arith.constant 256 : index
    %283 = vector.load %arg22[%c1_409, %c256_410] : memref<8x512xf32, #tpu.memory_space<vmem>>, vector<1x64xf32>
    tpu.vector_store %arg22[%c1_409, %c256_410], %282 {strides = array<i32>} : memref<8x512xf32, #tpu.memory_space<vmem>>, vector<1x64xf32>,
    %284 = vector.extract_strided_slice %255 {offsets = [13, 0], sizes = [1, 64], strides = [1, 1]} : vector<16x64xf32> to vector<1x64xf32>
    %c1_411 = arith.constant 1 : index
    %c320_412 = arith.constant 320 : index
    %285 = vector.load %arg22[%c1_411, %c320_412] : memref<8x512xf32, #tpu.memory_space<vmem>>, vector<1x64xf32>
    tpu.vector_store %arg22[%c1_411, %c320_412], %284 {strides = array<i32>} : memref<8x512xf32, #tpu.memory_space<vmem>>, vector<1x64xf32>,
    %286 = vector.extract_strided_slice %255 {offsets = [14, 0], sizes = [1, 64], strides = [1, 1]} : vector<16x64xf32> to vector<1x64xf32>
    %c1_413 = arith.constant 1 : index
    %c384_414 = arith.constant 384 : index
    %287 = vector.load %arg22[%c1_413, %c384_414] : memref<8x512xf32, #tpu.memory_space<vmem>>, vector<1x64xf32>
    tpu.vector_store %arg22[%c1_413, %c384_414], %286 {strides = array<i32>} : memref<8x512xf32, #tpu.memory_space<vmem>>, vector<1x64xf32>,
    %288 = vector.extract_strided_slice %255 {offsets = [15, 0], sizes = [1, 64], strides = [1, 1]} : vector<16x64xf32> to vector<1x64xf32>
    %c1_415 = arith.constant 1 : index
    %c448_416 = arith.constant 448 : index
    %289 = vector.load %arg22[%c1_415, %c448_416] : memref<8x512xf32, #tpu.memory_space<vmem>>, vector<1x64xf32>
    tpu.vector_store %arg22[%c1_415, %c448_416], %288 {strides = array<i32>} : memref<8x512xf32, #tpu.memory_space<vmem>>, vector<1x64xf32>,
    %c0_417 = arith.constant 0 : index
    %c0_418 = arith.constant 0 : index
    %290 = vector.load %arg22[%c0_417, %c0_418] : memref<8x512xf32, #tpu.memory_space<vmem>>, vector<8x512xf32>
    %c0_419 = arith.constant 0 : index
    %c0_420 = arith.constant 0 : index
    %291 = vector.load %arg8[%c0_419, %c0_420] : memref<512x512xf32, #tpu.memory_space<vmem>>, vector<512x512xf32>
    %cst_421 = arith.constant dense<0.000000e+00> : vector<8x512xf32>
    %292 = tpu.matmul %290, %291, %cst_421 {dimension_numbers = #tpu.dot_dimension_numbers<[1], [0], [0], [1], [0, 0, 1, 1], [], []>} : vector<8x512xf32>, vector<512x512xf32>, vector<8x512xf32> -> vector<8x512xf32>
    %c0_422 = arith.constant 0 : index
    %c0_423 = arith.constant 0 : index
    %293 = vector.load %arg9[%c0_422, %c0_423] : memref<1x512xf32, #tpu.memory_space<vmem>>, vector<1x512xf32>
    %294 = vector.broadcast %293 : vector<1x512xf32> to vector<8x512xf32>
    %295 = arith.addf %292, %294 : vector<8x512xf32>
    %cst_424 = arith.constant 0.000000e+00 : f32
    %296 = vector.broadcast %cst_424 : f32 to vector<8x512xf32>
    %297 = arith.maximumf %295, %296 : vector<8x512xf32>
    %c0_425 = arith.constant 0 : index
    %c0_426 = arith.constant 0 : index
    %298 = vector.load %arg10[%c0_425, %c0_426] : memref<512x256xf32, #tpu.memory_space<vmem>>, vector<512x256xf32>
    %cst_427 = arith.constant dense<0.000000e+00> : vector<8x256xf32>
    %299 = tpu.matmul %297, %298, %cst_427 {dimension_numbers = #tpu.dot_dimension_numbers<[1], [0], [0], [1], [0, 0, 1, 1], [], []>} : vector<8x512xf32>, vector<512x256xf32>, vector<8x256xf32> -> vector<8x256xf32>
    %c0_428 = arith.constant 0 : index
    %c0_429 = arith.constant 0 : index
    %300 = vector.load %arg1[%c0_428, %c0_429] : memref<8x128xf32, #tpu.memory_space<vmem>>, vector<8x128xf32>
    %c0_430 = arith.constant 0 : index
    %c0_431 = arith.constant 0 : index
    %301 = vector.load %arg11[%c0_430, %c0_431] : memref<128x256xf32, #tpu.memory_space<vmem>>, vector<128x256xf32>
    %cst_432 = arith.constant dense<0.000000e+00> : vector<8x256xf32>
    %302 = tpu.matmul %300, %301, %cst_432 {dimension_numbers = #tpu.dot_dimension_numbers<[1], [0], [0], [1], [0, 0, 1, 1], [], []>} : vector<8x128xf32>, vector<128x256xf32>, vector<8x256xf32> -> vector<8x256xf32>
    %303 = arith.addf %299, %302 : vector<8x256xf32>
    %c0_433 = arith.constant 0 : index
    %c0_434 = arith.constant 0 : index
    %304 = vector.load %arg12[%c0_433, %c0_434] : memref<1x256xf32, #tpu.memory_space<vmem>>, vector<1x256xf32>
    %305 = vector.broadcast %304 : vector<1x256xf32> to vector<8x256xf32>
    %306 = arith.addf %303, %305 : vector<8x256xf32>
    %cst_435 = arith.constant 0.000000e+00 : f32
    %307 = vector.broadcast %cst_435 : f32 to vector<8x256xf32>
    %308 = arith.maximumf %306, %307 : vector<8x256xf32>
    %c0_436 = arith.constant 0 : index
    %c0_437 = arith.constant 0 : index
    %309 = vector.load %arg13[%c0_436, %c0_437] : memref<256x128xf32, #tpu.memory_space<vmem>>, vector<256x128xf32>
    %cst_438 = arith.constant dense<0.000000e+00> : vector<8x128xf32>
    %310 = tpu.matmul %308, %309, %cst_438 {dimension_numbers = #tpu.dot_dimension_numbers<[1], [0], [0], [1], [0, 0, 1, 1], [], []>} : vector<8x256xf32>, vector<256x128xf32>, vector<8x128xf32> -> vector<8x128xf32>
    %c0_439 = arith.constant 0 : index
    %c0_440 = arith.constant 0 : index
    %311 = vector.load %arg14[%c0_439, %c0_440] : memref<1x128xf32, #tpu.memory_space<vmem>>, vector<1x128xf32>
    %312 = vector.broadcast %311 : vector<1x128xf32> to vector<8x128xf32>
    %313 = arith.addf %310, %312 : vector<8x128xf32>
    %cst_441 = arith.constant 0.000000e+00 : f32
    %314 = vector.broadcast %cst_441 : f32 to vector<8x128xf32>
    %315 = arith.maximumf %313, %314 : vector<8x128xf32>
    %c0_442 = arith.constant 0 : index
    %c0_443 = arith.constant 0 : index
    %316 = vector.load %arg15[%c0_442, %c0_443] : memref<128x128xf32, #tpu.memory_space<vmem>>, vector<128x128xf32>
    %cst_444 = arith.constant dense<0.000000e+00> : vector<8x128xf32>
    %317 = tpu.matmul %315, %316, %cst_444 {dimension_numbers = #tpu.dot_dimension_numbers<[1], [0], [0], [1], [0, 0, 1, 1], [], []>} : vector<8x128xf32>, vector<128x128xf32>, vector<8x128xf32> -> vector<8x128xf32>
    %c0_445 = arith.constant 0 : index
    %c0_446 = arith.constant 0 : index
    %318 = vector.load %arg16[%c0_445, %c0_446] : memref<1x128xf32, #tpu.memory_space<vmem>>, vector<1x128xf32>
    %319 = vector.broadcast %318 : vector<1x128xf32> to vector<8x128xf32>
    %320 = arith.addf %317, %319 : vector<8x128xf32>
    %c0_447 = arith.constant 0 : index
    %c0_448 = arith.constant 0 : index
    %321 = vector.load %arg17[%c0_447, %c0_448] : memref<8x128xf32, #tpu.memory_space<vmem>>, vector<8x128xf32>
    tpu.vector_store %arg17[%c0_447, %c0_448], %320 {strides = array<i32>} : memref<8x128xf32, #tpu.memory_space<vmem>>, vector<8x128xf32>,
    return
  }
}

</mosaic_0001>

<llo_original>
// kernel: ppo_value_forward.1
$region0: #{ppo_value_forward.1}
  #allocation0 [shape = 'u32[]', space=smem, size = 0x4, offset = 0x4, fixed_abs, tag = 'smem constant byte address 0x4 - core index']
  #allocation1 [shape = 'u32[144,128]{1,0:T(1,128)}', space=vmem, size = 0x12000, scoped, tag = 'internal scratch']
  #allocation2 [shape = 'f32[120,32]{1,0:T(8,128)}', space=vmem, size = 0xf000, scoped, tag = 'scratch operand']
  #allocation3 [shape = 'f32[16,512]{1,0:T(8,128)}', space=vmem, size = 0x8000, scoped, tag = 'scratch operand']
  #allocation4 [shape = 'f32[48,64]{1,0:T(8,128)}', space=vmem, size = 0x6000, scoped, tag = 'scratch operand']
  #allocation5 [shape = 'f32[16,640]{1,0:T(8,128)}', space=vmem, size = 0xa000, scoped, tag = 'scratch operand']
  #allocation6 [shape = 'f32[8,512]{1,0:T(8,128)}', space=vmem, size = 0x4000, scoped, tag = 'scratch operand']
  %s0 = inlined_call_operand.vmem [shape: f32[64,384], index: 0, kind: input, shape index: {}]
  %s1 = inlined_call_operand.vmem [shape: f32[8,128], index: 1, kind: input, shape index: {}]
  %s2 = inlined_call_operand.vmem [shape: f32[384,32], index: 2, kind: input, shape index: {}]
  %s3 = inlined_call_operand.vmem [shape: f32[1,32], index: 3, kind: input, shape index: {}]
  %s4 = inlined_call_operand.vmem [shape: f32[512,64], index: 4, kind: input, shape index: {}]
  %s5 = inlined_call_operand.vmem [shape: f32[1,64], index: 5, kind: input, shape index: {}]
  %s6 = inlined_call_operand.vmem [shape: f32[640,64], index: 6, kind: input, shape index: {}]
  %s7 = inlined_call_operand.vmem [shape: f32[1,64], index: 7, kind: input, shape index: {}]
  %s8 = inlined_call_operand.vmem [shape: f32[512,512], index: 8, kind: input, shape index: {}]
  %s9 = inlined_call_operand.vmem [shape: f32[1,512], index: 9, kind: input, shape index: {}]
  %s10 = inlined_call_operand.vmem [shape: f32[512,256], index: 10, kind: input, shape index: {}]
  %s11 = inlined_call_operand.vmem [shape: f32[128,256], index: 11, kind: input, shape index: {}]
  %s12 = inlined_call_operand.vmem [shape: f32[1,256], index: 12, kind: input, shape index: {}]
  %s13 = inlined_call_operand.vmem [shape: f32[256,128], index: 13, kind: input, shape index: {}]
  %s14 = inlined_call_operand.vmem [shape: f32[1,128], index: 14, kind: input, shape index: {}]
  %s15 = inlined_call_operand.vmem [shape: f32[128,128], index: 15, kind: input, shape index: {}]
  %s16 = inlined_call_operand.vmem [shape: f32[1,128], index: 16, kind: input, shape index: {}]
  %s17 = inlined_call_operand.vmem [shape: f32[8,128], index: 17, kind: output, shape index: {}]
  %s18 = sld [smem:[#allocation0]]
  $region78: #{ppo_value_forward.1} parent=0
    _
  %s20 = ssub.s32 1, %s18
  %s21 = scalar_select 0, %s20, %s18
  // Predicated region
  $region2: #{ppo_value_forward.1} parent=0 // pred_check
    _
  $region3: #{ppo_value_forward.1} parent=0 // pred_check_branch
    %23 = sbr.rel (0) target = $region5
  $region4: #{ppo_value_forward.1} parent=0 // pred_region
    _
  $region5: #{ppo_value_forward.1} parent=0 // pred_fallthru
    _
  // Predicated region
  $region6: #{ppo_value_forward.1} parent=0 // pred_check
    _
  $region7: #{ppo_value_forward.1} parent=0 // pred_check_branch
    %25 = sbr.rel (0) target = $region9
  $region8: #{ppo_value_forward.1} parent=0 // pred_region
    _
  $region9: #{ppo_value_forward.1} parent=0 // pred_fallthru
    _
  // Predicated region
  $region10: #{ppo_value_forward.1} parent=0 // pred_check
    _
  $region11: #{ppo_value_forward.1} parent=0 // pred_check_branch
    %27 = sbr.rel (0) target = $region13
  $region12: #{ppo_value_forward.1} parent=0 // pred_region
    _
  $region13: #{ppo_value_forward.1} parent=0 // pred_fallthru
    _
  // Predicated region
  $region14: #{ppo_value_forward.1} parent=0 // pred_check
    _
  $region15: #{ppo_value_forward.1} parent=0 // pred_check_branch
    %29 = sbr.rel (0) target = $region17
  $region16: #{ppo_value_forward.1} parent=0 // pred_region
    _
  $region17: #{ppo_value_forward.1} parent=0 // pred_fallthru
    _
  // Predicated region
  $region18: #{ppo_value_forward.1} parent=0 // pred_check
    _
  $region19: #{ppo_value_forward.1} parent=0 // pred_check_branch
    %31 = sbr.rel (0) target = $region21
  $region20: #{ppo_value_forward.1} parent=0 // pred_region
    _
  $region21: #{ppo_value_forward.1} parent=0 // pred_fallthru
    _
  // Predicated region
  $region22: #{ppo_value_forward.1} parent=0 // pred_check
    _
  $region23: #{ppo_value_forward.1} parent=0 // pred_check_branch
    %33 = sbr.rel (0) target = $region25
  $region24: #{ppo_value_forward.1} parent=0 // pred_region
    _
  $region25: #{ppo_value_forward.1} parent=0 // pred_fallthru
    _
  // Predicated region
  $region26: #{ppo_value_forward.1} parent=0 // pred_check
    _
  $region27: #{ppo_value_forward.1} parent=0 // pred_check_branch
    %35 = sbr.rel (0) target = $region29
  $region28: #{ppo_value_forward.1} parent=0 // pred_region
    _
  $region29: #{ppo_value_forward.1} parent=0 // pred_fallthru
    _
  // Predicated region
  $region30: #{ppo_value_forward.1} parent=0 // pred_check
    _
  $region31: #{ppo_value_forward.1} parent=0 // pred_check_branch
    %37 = sbr.rel (0) target = $region33
  $region32: #{ppo_value_forward.1} parent=0 // pred_region
    _
  $region33: #{ppo_value_forward.1} parent=0 // pred_fallthru
    _
  // Predicated region
  $region34: #{ppo_value_forward.1} parent=0 // pred_check
    _
  $region35: #{ppo_value_forward.1} parent=0 // pred_check_branch
    %39 = sbr.rel (0) target = $region37
  $region36: #{ppo_value_forward.1} parent=0 // pred_region
    _
  $region37: #{ppo_value_forward.1} parent=0 // pred_fallthru
    _
  // Predicated region
  $region38: #{ppo_value_forward.1} parent=0 // pred_check
    _
  $region39: #{ppo_value_forward.1} parent=0 // pred_check_branch
    %41 = sbr.rel (0) target = $region41
  $region40: #{ppo_value_forward.1} parent=0 // pred_region
    _
  $region41: #{ppo_value_forward.1} parent=0 // pred_fallthru
    _
  // Predicated region
  $region42: #{ppo_value_forward.1} parent=0 // pred_check
    _
  $region43: #{ppo_value_forward.1} parent=0 // pred_check_branch
    %43 = sbr.rel (0) target = $region45
  $region44: #{ppo_value_forward.1} parent=0 // pred_region
    _
  $region45: #{ppo_value_forward.1} parent=0 // pred_fallthru
    _
  // Predicated region
  $region46: #{ppo_value_forward.1} parent=0 // pred_check
    _
  $region47: #{ppo_value_forward.1} parent=0 // pred_check_branch
    %45 = sbr.rel (0) target = $region49
  $region48: #{ppo_value_forward.1} parent=0 // pred_region
    _
  $region49: #{ppo_value_forward.1} parent=0 // pred_fallthru
    _
  // Predicated region
  $region50: #{ppo_value_forward.1} parent=0 // pred_check
    _
  $region51: #{ppo_value_forward.1} parent=0 // pred_check_branch
    %47 = sbr.rel (0) target = $region53
  $region52: #{ppo_value_forward.1} parent=0 // pred_region
    _
  $region53: #{ppo_value_forward.1} parent=0 // pred_fallthru
    _
  // Predicated region
  $region54: #{ppo_value_forward.1} parent=0 // pred_check
    _
  $region55: #{ppo_value_forward.1} parent=0 // pred_check_branch
    %49 = sbr.rel (0) target = $region57
  $region56: #{ppo_value_forward.1} parent=0 // pred_region
    _
  $region57: #{ppo_value_forward.1} parent=0 // pred_fallthru
    _
  // Predicated region
  $region58: #{ppo_value_forward.1} parent=0 // pred_check
    _
  $region59: #{ppo_value_forward.1} parent=0 // pred_check_branch
    %51 = sbr.rel (0) target = $region61
  $region60: #{ppo_value_forward.1} parent=0 // pred_region
    _
  $region61: #{ppo_value_forward.1} parent=0 // pred_fallthru
    _
  // Predicated region
  $region62: #{ppo_value_forward.1} parent=0 // pred_check
    _
  $region63: #{ppo_value_forward.1} parent=0 // pred_check_branch
    %53 = sbr.rel (0) target = $region65
  $region64: #{ppo_value_forward.1} parent=0 // pred_region
    _
  $region65: #{ppo_value_forward.1} parent=0 // pred_fallthru
    _
  // Predicated region
  $region66: #{ppo_value_forward.1} parent=0 // pred_check
    _
  $region67: #{ppo_value_forward.1} parent=0 // pred_check_branch
    %55 = sbr.rel (0) target = $region69
  $region68: #{ppo_value_forward.1} parent=0 // pred_region
    _
  $region69: #{ppo_value_forward.1} parent=0 // pred_fallthru
    _
  %v56 = vld [vmem:[%s0] sm:$0xff]
  %v57 = vld [vmem:[%s0 + $0x8] sm:$0xff]
  %v58 = vld [vmem:[%s0 + $0x10] sm:$0xff]
  %v59 = vld [vmem:[%s0 + $0x18] sm:$0xff]
  %v60 = vld [vmem:[%s0 + $0x20] sm:$0xff]
  %v61 = vld [vmem:[%s0 + $0x28] sm:$0xff]
  %v62 = vld [vmem:[%s0 + $0x30] sm:$0xff]
  %v63 = vld [vmem:[%s0 + $0x38] sm:$0xff]
  %v64 = vld [vmem:[%s0 + $0x40] sm:$0xff]
  %v65 = vld [vmem:[%s0 + $0x48] sm:$0xff]
  %v66 = vld [vmem:[%s0 + $0x50] sm:$0xff]
  %v67 = vld [vmem:[%s0 + $0x58] sm:$0xff]
  %v68 = vld [vmem:[%s0 + $0x60] sm:$0xff]
  %v69 = vld [vmem:[%s0 + $0x68] sm:$0xff]
  %v70 = vld [vmem:[%s0 + $0x70] sm:$0xff]
  %v71 = vld [vmem:[%s0 + $0x78] sm:$0xff]
  %v72 = vld [vmem:[%s0 + $0x80] sm:$0xff]
  %v73 = vld [vmem:[%s0 + $0x88] sm:$0xff]
  %v74 = vld [vmem:[%s0 + $0x90] sm:$0xff]
  %v75 = vld [vmem:[%s0 + $0x98] sm:$0xff]
  %v76 = vld [vmem:[%s0 + $0xa0] sm:$0xff]
  %v77 = vld [vmem:[%s0 + $0xa8] sm:$0xff]
  %v78 = vld [vmem:[%s0 + $0xb0] sm:$0xff]
  %v79 = vld [vmem:[%s0 + $0xb8] sm:$0xff]
  %v80 = vld [vmem:[%s2] sm:$0xff]
  %v81 = vld [vmem:[%s2 + $0x8] sm:$0xff]
  %v82 = vld [vmem:[%s2 + $0x10] sm:$0xff]
  %v83 = vld [vmem:[%s2 + $0x18] sm:$0xff]
  %v84 = vld [vmem:[%s2 + $0x20] sm:$0xff]
  %v85 = vld [vmem:[%s2 + $0x28] sm:$0xff]
  %v86 = vld [vmem:[%s2 + $0x30] sm:$0xff]
  %v87 = vld [vmem:[%s2 + $0x38] sm:$0xff]
  %v88 = vld [vmem:[%s2 + $0x40] sm:$0xff]
  %v89 = vld [vmem:[%s2 + $0x48] sm:$0xff]
  %v90 = vld [vmem:[%s2 + $0x50] sm:$0xff]
  %v91 = vld [vmem:[%s2 + $0x58] sm:$0xff]
  %v92 = vld [vmem:[%s2 + $0x60] sm:$0xff]
  %v93 = vld [vmem:[%s2 + $0x68] sm:$0xff]
  %v94 = vld [vmem:[%s2 + $0x70] sm:$0xff]
  %v95 = vld [vmem:[%s2 + $0x78] sm:$0xff]
  %v96 = vld [vmem:[%s2 + $0x80] sm:$0xff]
  %v97 = vld [vmem:[%s2 + $0x88] sm:$0xff]
  %v98 = vld [vmem:[%s2 + $0x90] sm:$0xff]
  %v99 = vld [vmem:[%s2 + $0x98] sm:$0xff]
  %v100 = vld [vmem:[%s2 + $0xa0] sm:$0xff]
  %v101 = vld [vmem:[%s2 + $0xa8] sm:$0xff]
  %v102 = vld [vmem:[%s2 + $0xb0] sm:$0xff]
  %v103 = vld [vmem:[%s2 + $0xb8] sm:$0xff]
  %v104 = vld [vmem:[%s2 + $0xc0] sm:$0xff]
  %v105 = vld [vmem:[%s2 + $0xc8] sm:$0xff]
  %v106 = vld [vmem:[%s2 + $0xd0] sm:$0xff]
  %v107 = vld [vmem:[%s2 + $0xd8] sm:$0xff]
  %v108 = vld [vmem:[%s2 + $0xe0] sm:$0xff]
  %v109 = vld [vmem:[%s2 + $0xe8] sm:$0xff]
  %v110 = vld [vmem:[%s2 + $0xf0] sm:$0xff]
  %v111 = vld [vmem:[%s2 + $0xf8] sm:$0xff]
  %v112 = vld [vmem:[%s2 + $0x100] sm:$0xff]
  %v113 = vld [vmem:[%s2 + $0x108] sm:$0xff]
  %v114 = vld [vmem:[%s2 + $0x110] sm:$0xff]
  %v115 = vld [vmem:[%s2 + $0x118] sm:$0xff]
  %v116 = vld [vmem:[%s2 + $0x120] sm:$0xff]
  %v117 = vld [vmem:[%s2 + $0x128] sm:$0xff]
  %v118 = vld [vmem:[%s2 + $0x130] sm:$0xff]
  %v119 = vld [vmem:[%s2 + $0x138] sm:$0xff]
  %v120 = vld [vmem:[%s2 + $0x140] sm:$0xff]
  %v121 = vld [vmem:[%s2 + $0x148] sm:$0xff]
  %v122 = vld [vmem:[%s2 + $0x150] sm:$0xff]
  %v123 = vld [vmem:[%s2 + $0x158] sm:$0xff]
  %v124 = vld [vmem:[%s2 + $0x160] sm:$0xff]
  %v125 = vld [vmem:[%s2 + $0x168] sm:$0xff]
  %v126 = vld [vmem:[%s2 + $0x170] sm:$0xff]
  %v127 = vld [vmem:[%s2 + $0x178] sm:$0xff]
  %v128 = vld [vmem:[%s3] sm:$0x1]
  %v130 = vlaneseq
  %v131 = vshrl.u32 %v130, 7
  %v132 = vsub.s32 0, %v131
  %v133 = vrot.slane %v128, %v132
  %135 = vmatprep.subr.mxu0 0.0
  %136 = vmatpush1.msra.mxu0 %v95
  %137 = vmatprep.subr.mxu0 0.0
  %138 = vmatpush1.msra.mxu0 %v94
  %139 = vmatprep.subr.mxu0 0.0
  %140 = vmatpush1.msra.mxu0 %v93
  %141 = vmatprep.subr.mxu0 0.0
  %142 = vmatpush1.msra.mxu0 %v92
  %143 = vmatprep.subr.mxu0 0.0
  %144 = vmatpush1.msra.mxu0 %v91
  %145 = vmatprep.subr.mxu0 0.0
  %146 = vmatpush1.msra.mxu0 %v90
  %147 = vmatprep.subr.mxu0 0.0
  %148 = vmatpush1.msra.mxu0 %v89
  %149 = vmatprep.subr.mxu0 0.0
  %150 = vmatpush1.msra.mxu0 %v88
  %151 = vmatprep.subr.mxu0 0.0
  %152 = vmatpush1.msra.mxu0 %v87
  %153 = vmatprep.subr.mxu0 0.0
  %154 = vmatpush1.msra.mxu0 %v86
  %155 = vmatprep.subr.mxu0 0.0
  %156 = vmatpush1.msra.mxu0 %v85
  %157 = vmatprep.subr.mxu0 0.0
  %158 = vmatpush1.msra.mxu0 %v84
  %159 = vmatprep.subr.mxu0 0.0
  %160 = vmatpush1.msra.mxu0 %v83
  %161 = vmatprep.subr.mxu0 0.0
  %162 = vmatpush1.msra.mxu0 %v82
  %163 = vmatprep.subr.mxu0 0.0
  %164 = vmatpush1.msra.mxu0 %v81
  %165 = vmatprep.subr.mxu0 0.0
  %166 = vmatpush1.msra.mxu0 %v80
  %167 = vmatprep.subr.mxu0 0.0
  %168 = vmatpush2.msra.mxu0 %v111
  %169 = vmatprep.subr.mxu0 0.0
  %170 = vmatpush2.msra.mxu0 %v110
  %171 = vmatprep.subr.mxu0 0.0
  %172 = vmatpush2.msra.mxu0 %v109
  %173 = vmatprep.subr.mxu0 0.0
  %174 = vmatpush2.msra.mxu0 %v108
  %175 = vmatprep.subr.mxu0 0.0
  %176 = vmatpush2.msra.mxu0 %v107
  %177 = vmatprep.subr.mxu0 0.0
  %178 = vmatpush2.msra.mxu0 %v106
  %179 = vmatprep.subr.mxu0 0.0
  %180 = vmatpush2.msra.mxu0 %v105
  %181 = vmatprep.subr.mxu0 0.0
  %182 = vmatpush2.msra.mxu0 %v104
  %183 = vmatprep.subr.mxu0 0.0
  %184 = vmatpush2.msra.mxu0 %v103
  %185 = vmatprep.subr.mxu0 0.0
  %186 = vmatpush2.msra.mxu0 %v102
  %187 = vmatprep.subr.mxu0 0.0
  %188 = vmatpush2.msra.mxu0 %v101
  %189 = vmatprep.subr.mxu0 0.0
  %190 = vmatpush2.msra.mxu0 %v100
  %191 = vmatprep.subr.mxu0 0.0
  %192 = vmatpush2.msra.mxu0 %v99
  %193 = vmatprep.subr.mxu0 0.0
  %194 = vmatpush2.msra.mxu0 %v98
  %195 = vmatprep.subr.mxu0 0.0
  %196 = vmatpush2.msra.mxu0 %v97
  %197 = vmatprep.subr.mxu0 0.0
  %198 = vmatpush2.msra.mxu0 %v96
  %199 = vmatprep.mubr.f32.mxu0 %v57
  %200 = vmatmul.mubr.f32.gmra.mxu0 %v56
  %v201 = vpop.f32.mrf.mxu0
  %v202 = vadd.f32 %v133, %v201
  %v203 = vpop.f32.mrf.mxu0
  %204 = vmatprep.mubr.f32.mxu0 %v60
  %205 = vmatmul.mubr.f32.gmra.mxu0 %v59
  %v206 = vpop.f32.mrf.mxu0
  %v207 = vadd.f32 %v133, %v206
  %v208 = vpop.f32.mrf.mxu0
  %209 = vmatprep.mubr.f32.mxu0 %v63
  %210 = vmatmul.mubr.f32.gmra.mxu0 %v62
  %v211 = vpop.f32.mrf.mxu0
  %v212 = vadd.f32 %v133, %v211
  %v213 = vpop.f32.mrf.mxu0
  %214 = vmatprep.mubr.f32.mxu0 %v66
  %215 = vmatmul.mubr.f32.gmra.mxu0 %v65
  %v216 = vpop.f32.mrf.mxu0
  %v217 = vadd.f32 %v133, %v216
  %v218 = vpop.f32.mrf.mxu0
  %219 = vmatprep.mubr.f32.mxu0 %v69
  %220 = vmatmul.mubr.f32.gmra.mxu0 %v68
  %v221 = vpop.f32.mrf.mxu0
  %v222 = vadd.f32 %v133, %v221
  %v223 = vpop.f32.mrf.mxu0
  %224 = vmatprep.mubr.f32.mxu0 %v72
  %225 = vmatmul.mubr.f32.gmra.mxu0 %v71
  %v226 = vpop.f32.mrf.mxu0
  %v227 = vadd.f32 %v133, %v226
  %v228 = vpop.f32.mrf.mxu0
  %229 = vmatprep.mubr.f32.mxu0 %v75
  %230 = vmatmul.mubr.f32.gmra.mxu0 %v74
  %v231 = vpop.f32.mrf.mxu0
  %v232 = vadd.f32 %v133, %v231
  %v233 = vpop.f32.mrf.mxu0
  %234 = vmatprep.mubr.f32.mxu0 %v78
  %235 = vmatmul.mubr.f32.gmra.mxu0 %v77
  %v236 = vpop.f32.mrf.mxu0
  %v237 = vadd.f32 %v133, %v236
  %v238 = vpop.f32.mrf.mxu0
  %239 = vdwg.mxu0
  %240 = vmatprep.subr.mxu0 0.0
  %241 = vmatpush1.msra.mxu0 %v127
  %242 = vmatprep.subr.mxu0 0.0
  %243 = vmatpush1.msra.mxu0 %v126
  %244 = vmatprep.subr.mxu0 0.0
  %245 = vmatpush1.msra.mxu0 %v125
  %246 = vmatprep.subr.mxu0 0.0
  %247 = vmatpush1.msra.mxu0 %v124
  %248 = vmatprep.subr.mxu0 0.0
  %249 = vmatpush1.msra.mxu0 %v123
  %250 = vmatprep.subr.mxu0 0.0
  %251 = vmatpush1.msra.mxu0 %v122
  %252 = vmatprep.subr.mxu0 0.0
  %253 = vmatpush1.msra.mxu0 %v121
  %254 = vmatprep.subr.mxu0 0.0
  %255 = vmatpush1.msra.mxu0 %v120
  %256 = vmatprep.subr.mxu0 0.0
  %257 = vmatpush1.msra.mxu0 %v119
  %258 = vmatprep.subr.mxu0 0.0
  %259 = vmatpush1.msra.mxu0 %v118
  %260 = vmatprep.subr.mxu0 0.0
  %261 = vmatpush1.msra.mxu0 %v117
  %262 = vmatprep.subr.mxu0 0.0
  %263 = vmatpush1.msra.mxu0 %v116
  %264 = vmatprep.subr.mxu0 0.0
  %265 = vmatpush1.msra.mxu0 %v115
  %266 = vmatprep.subr.mxu0 0.0
  %267 = vmatpush1.msra.mxu0 %v114
  %268 = vmatprep.subr.mxu0 0.0
  %269 = vmatpush1.msra.mxu0 %v113
  %270 = vmatprep.subr.mxu0 0.0
  %271 = vmatpush1.msra.mxu0 %v112
  %272 = vmatprep.subr.mxu0 0.0
  %273 = vmatpush2.msra.mxu0 0.0
  %274 = vmatprep.subr.mxu0 0.0
  %275 = vmatpush2.msra.mxu0 0.0
  %276 = vmatprep.subr.mxu0 0.0
  %277 = vmatpush2.msra.mxu0 0.0
  %278 = vmatprep.subr.mxu0 0.0
  %279 = vmatpush2.msra.mxu0 0.0
  %280 = vmatprep.subr.mxu0 0.0
  %281 = vmatpush2.msra.mxu0 0.0
  %282 = vmatprep.subr.mxu0 0.0
  %283 = vmatpush2.msra.mxu0 0.0
  %284 = vmatprep.subr.mxu0 0.0
  %285 = vmatpush2.msra.mxu0 0.0
  %286 = vmatprep.subr.mxu0 0.0
  %287 = vmatpush2.msra.mxu0 0.0
  %288 = vmatprep.subr.mxu0 0.0
  %289 = vmatpush2.msra.mxu0 0.0
  %290 = vmatprep.subr.mxu0 0.0
  %291 = vmatpush2.msra.mxu0 0.0
  %292 = vmatprep.subr.mxu0 0.0
  %293 = vmatpush2.msra.mxu0 0.0
  %294 = vmatprep.subr.mxu0 0.0
  %295 = vmatpush2.msra.mxu0 0.0
  %296 = vmatprep.subr.mxu0 0.0
  %297 = vmatpush2.msra.mxu0 0.0
  %298 = vmatprep.subr.mxu0 0.0
  %299 = vmatpush2.msra.mxu0 0.0
  %300 = vmatprep.subr.mxu0 0.0
  %301 = vmatpush2.msra.mxu0 0.0
  %302 = vmatprep.subr.mxu0 0.0
  %303 = vmatpush2.msra.mxu0 0.0
  %304 = vmatprep.mubr.f32.mxu0 0.0
  %305 = vmatmul.mubr.f32.gmra.mxu0 %v58
  %v306 = vpop.f32.mrf.mxu0
  %v307 = vadd.f32 %v202, %v306
  %v308 = vpop.f32.mrf.mxu0
  %309 = vmatprep.mubr.f32.mxu0 0.0
  %310 = vmatmul.mubr.f32.gmra.mxu0 %v61
  %v311 = vpop.f32.mrf.mxu0
  %v312 = vadd.f32 %v207, %v311
  %v313 = vpop.f32.mrf.mxu0
  %314 = vmatprep.mubr.f32.mxu0 0.0
  %315 = vmatmul.mubr.f32.gmra.mxu0 %v64
  %v316 = vpop.f32.mrf.mxu0
  %v317 = vadd.f32 %v212, %v316
  %v318 = vpop.f32.mrf.mxu0
  %319 = vmatprep.mubr.f32.mxu0 0.0
  %320 = vmatmul.mubr.f32.gmra.mxu0 %v67
  %v321 = vpop.f32.mrf.mxu0
  %v322 = vadd.f32 %v217, %v321
  %v323 = vpop.f32.mrf.mxu0
  %324 = vmatprep.mubr.f32.mxu0 0.0
  %325 = vmatmul.mubr.f32.gmra.mxu0 %v70
  %v326 = vpop.f32.mrf.mxu0
  %v327 = vadd.f32 %v222, %v326
  %v328 = vpop.f32.mrf.mxu0
  %329 = vmatprep.mubr.f32.mxu0 0.0
  %330 = vmatmul.mubr.f32.gmra.mxu0 %v73
  %v331 = vpop.f32.mrf.mxu0
  %v332 = vadd.f32 %v227, %v331
  %v333 = vpop.f32.mrf.mxu0
  %334 = vmatprep.mubr.f32.mxu0 0.0
  %335 = vmatmul.mubr.f32.gmra.mxu0 %v76
  %v336 = vpop.f32.mrf.mxu0
  %v337 = vadd.f32 %v232, %v336
  %v338 = vpop.f32.mrf.mxu0
  %339 = vmatprep.mubr.f32.mxu0 0.0
  %340 = vmatmul.mubr.f32.gmra.mxu0 %v79
  %v341 = vpop.f32.mrf.mxu0
  %v342 = vadd.f32 %v237, %v341
  %v343 = vpop.f32.mrf.mxu0
  %344 = vdwg.mxu0
  %v345 = vmax.f32 %v307, 0.0
  %v346 = vmax.f32 %v312, 0.0
  %v347 = vmax.f32 %v317, 0.0
  %v348 = vmax.f32 %v322, 0.0
  %v349 = vmax.f32 %v327, 0.0
  %v350 = vmax.f32 %v332, 0.0
  %v351 = vmax.f32 %v337, 0.0
  %v352 = vmax.f32 %v342, 0.0
  %vm353 = vcmask 261120
  %354 = vst.msk [vmem:[#allocation2] sm:$0xff] %vm353, 0.0
  %355 = vst.msk [vmem:[#allocation2 + $0x8] sm:$0xff] %vm353, 0.0
  %356 = vst.msk [vmem:[#allocation2 + $0x10] sm:$0xff] %vm353, 0.0
  %357 = vst.msk [vmem:[#allocation2 + $0x18] sm:$0xff] %vm353, 0.0
  %358 = vst.msk [vmem:[#allocation2 + $0x20] sm:$0xff] %vm353, 0.0
  %359 = vst.msk [vmem:[#allocation2 + $0x28] sm:$0xff] %vm353, 0.0
  %360 = vst.msk [vmem:[#allocation2 + $0x30] sm:$0xff] %vm353, 0.0
  %361 = vst.msk [vmem:[#allocation2 + $0x38] sm:$0xff] %vm353, 0.0
  %362 = vst.msk [vmem:[#allocation2 + $0x40] sm:$0xff] %vm353, 0.0
  %363 = vst.msk [vmem:[#allocation2 + $0x48] sm:$0xff] %vm353, 0.0
  %364 = vst.msk [vmem:[#allocation2 + $0x50] sm:$0xff] %vm353, 0.0
  %365 = vst.msk [vmem:[#allocation2 + $0x58] sm:$0xff] %vm353, 0.0
  %366 = vst.msk [vmem:[#allocation2 + $0x60] sm:$0xff] %vm353, 0.0
  %367 = vst.msk [vmem:[#allocation2 + $0x68] sm:$0xff] %vm353, 0.0
  %368 = vst.msk [vmem:[#allocation2 + $0x70] sm:$0xff] %vm353, 0.0
  %369 = vst.msk [vmem:[#allocation2 + $0xb] sm:$0xff] %vm353, %v345
  %370 = vst.msk [vmem:[#allocation2 + $0x15] sm:$0xff] %vm353, %v346
  %371 = vst.msk [vmem:[#allocation2 + $0x1f] sm:$0xff] %vm353, %v347
  %372 = vst.msk [vmem:[#allocation2 + $0x29] sm:$0xff] %vm353, %v348
  %373 = vst.msk [vmem:[#allocation2 + $0x47] sm:$0xff] %vm353, %v349
  %374 = vst.msk [vmem:[#allocation2 + $0x51] sm:$0xff] %vm353, %v350
  %375 = vst.msk [vmem:[#allocation2 + $0x5b] sm:$0xff] %vm353, %v351
  %376 = vst.msk [vmem:[#allocation2 + $0x65] sm:$0xff] %vm353, %v352
  %377 = vst [vmem:[#allocation3] sm:$0xff] 0.0
  %378 = vst [vmem:[#allocation3 + $0x8] sm:$0xff] 0.0
  %379 = vst [vmem:[#allocation3 + $0x10] sm:$0xff] 0.0
  %380 = vst [vmem:[#allocation3 + $0x18] sm:$0xff] 0.0
  %381 = vst [vmem:[#allocation3 + $0x20] sm:$0xff] 0.0
  %382 = vst [vmem:[#allocation3 + $0x28] sm:$0xff] 0.0
  %383 = vst [vmem:[#allocation3 + $0x30] sm:$0xff] 0.0
  %384 = vst [vmem:[#allocation3 + $0x38] sm:$0xff] 0.0
  %v385 = vld [vmem:[#allocation2] ss:$2 sm:$0xf]
  %vm386 = vcmask 257024
  %387 = vst.msk [vmem:[#allocation3] sm:$0xf] %vm386, %v385
  %s388 = scalar_lea.vmem [#allocation2], 20
  %v389 = vld [vmem:[%s388] ss:$2 sm:$0xf]
  %v391 = vrot.slane %v389, 4
  %vm393 = vcmask 261124
  %394 = vst.msk [vmem:[#allocation3] sm:$0xf0] %vm393, %v391
  %s395 = scalar_lea.vmem [#allocation2], 60
  %v396 = vld [vmem:[%s395] ss:$2 sm:$0xf]
  %397 = vst.msk [vmem:[#allocation3 + $0x20] sm:$0xf] %vm386, %v396
  %s398 = scalar_lea.vmem [#allocation2], 80
  %v399 = vld [vmem:[%s398] ss:$2 sm:$0xf]
  %v401 = vrot.slane %v399, 4
  %403 = vst.msk [vmem:[#allocation3 + $0x20] sm:$0xf0] %vm393, %v401
  %s404 = scalar_lea.vmem [#allocation2], 1
  %v405 = vld [vmem:[%s404] ss:$2 sm:$0xf]
  %407 = vrot.lane.b32.xlu0 %v405, 32
  %v408 = vpop.permute.xlu0 %407
  %vm410 = vcmask 519424
  %411 = vst.msk [vmem:[#allocation3] sm:$0xf] %vm410, %v408
  %s412 = scalar_lea.vmem [#allocation2], 21
  %v413 = vld [vmem:[%s412] ss:$2 sm:$0xf]
  %v415 = vrot.slane %v413, 4
  %416 = vrot.lane.b32.xlu0 %v415, 32
  %v417 = vpop.permute.xlu0 %416
  %vm419 = vcmask 523524
  %420 = vst.msk [vmem:[#allocation3] sm:$0xf0] %vm419, %v417
  %s421 = scalar_lea.vmem [#allocation2], 61
  %v422 = vld [vmem:[%s421] ss:$2 sm:$0xf]
  %424 = vrot.lane.b32.xlu0 %v422, 32
  %v425 = vpop.permute.xlu0 %424
  %427 = vst.msk [vmem:[#allocation3 + $0x20] sm:$0xf] %vm410, %v425
  %s428 = scalar_lea.vmem [#allocation2], 81
  %v429 = vld [vmem:[%s428] ss:$2 sm:$0xf]
  %v431 = vrot.slane %v429, 4
  %432 = vrot.lane.b32.xlu0 %v431, 32
  %v433 = vpop.permute.xlu0 %432
  %435 = vst.msk [vmem:[#allocation3 + $0x20] sm:$0xf0] %vm419, %v433
  %s436 = scalar_lea.vmem [#allocation2], 2
  %v437 = vld [vmem:[%s436] ss:$2 sm:$0xf]
  %439 = vrot.lane.b32.xlu0 %v437, 64
  %v440 = vpop.permute.xlu0 %439
  %vm442 = vcmask 781824
  %443 = vst.msk [vmem:[#allocation3] sm:$0xf] %vm442, %v440
  %s444 = scalar_lea.vmem [#allocation2], 22
  %v445 = vld [vmem:[%s444] ss:$2 sm:$0xf]
  %v447 = vrot.slane %v445, 4
  %448 = vrot.lane.b32.xlu0 %v447, 64
  %v449 = vpop.permute.xlu0 %448
  %vm451 = vcmask 785924
  %452 = vst.msk [vmem:[#allocation3] sm:$0xf0] %vm451, %v449
  %s453 = scalar_lea.vmem [#allocation2], 62
  %v454 = vld [vmem:[%s453] ss:$2 sm:$0xf]
  %456 = vrot.lane.b32.xlu0 %v454, 64
  %v457 = vpop.permute.xlu0 %456
  %459 = vst.msk [vmem:[#allocation3 + $0x20] sm:$0xf] %vm442, %v457
  %s460 = scalar_lea.vmem [#allocation2], 82
  %v461 = vld [vmem:[%s460] ss:$2 sm:$0xf]
  %v463 = vrot.slane %v461, 4
  %464 = vrot.lane.b32.xlu0 %v463, 64
  %v465 = vpop.permute.xlu0 %464
  %467 = vst.msk [vmem:[#allocation3 + $0x20] sm:$0xf0] %vm451, %v465
  %s468 = scalar_lea.vmem [#allocation2], 3
  %v469 = vld [vmem:[%s468] ss:$2 sm:$0xf]
  %471 = vrot.lane.b32.xlu0 %v469, 96
  %v472 = vpop.permute.xlu0 %471
  %vm474 = vcmask 1044224
  %475 = vst.msk [vmem:[#allocation3] sm:$0xf] %vm474, %v472
  %s476 = scalar_lea.vmem [#allocation2], 23
  %v477 = vld [vmem:[%s476] ss:$2 sm:$0xf]
  %v479 = vrot.slane %v477, 4
  %480 = vrot.lane.b32.xlu0 %v479, 96
  %v481 = vpop.permute.xlu0 %480
  %vm483 = vcmask 1048324
  %484 = vst.msk [vmem:[#allocation3] sm:$0xf0] %vm483, %v481
  %s485 = scalar_lea.vmem [#allocation2], 63
  %v486 = vld [vmem:[%s485] ss:$2 sm:$0xf]
  %488 = vrot.lane.b32.xlu0 %v486, 96
  %v489 = vpop.permute.xlu0 %488
  %491 = vst.msk [vmem:[#allocation3 + $0x20] sm:$0xf] %vm474, %v489
  %s492 = scalar_lea.vmem [#allocation2], 83
  %v493 = vld [vmem:[%s492] ss:$2 sm:$0xf]
  %v495 = vrot.slane %v493, 4
  %496 = vrot.lane.b32.xlu0 %v495, 96
  %v497 = vpop.permute.xlu0 %496
  %499 = vst.msk [vmem:[#allocation3 + $0x20] sm:$0xf0] %vm483, %v497
  %s500 = scalar_lea.vmem [#allocation2], 10
  %v501 = vld [vmem:[%s500] ss:$2 sm:$0xf]
  %502 = vst.msk [vmem:[#allocation3 + $0x8] sm:$0xf] %vm386, %v501
  %s503 = scalar_lea.vmem [#allocation2], 30
  %v504 = vld [vmem:[%s503] ss:$2 sm:$0xf]
  %v506 = vrot.slane %v504, 4
  %508 = vst.msk [vmem:[#allocation3 + $0x8] sm:$0xf0] %vm393, %v506
  %s509 = scalar_lea.vmem [#allocation2], 70
  %v510 = vld [vmem:[%s509] ss:$2 sm:$0xf]
  %511 = vst.msk [vmem:[#allocation3 + $0x28] sm:$0xf] %vm386, %v510
  %s512 = scalar_lea.vmem [#allocation2], 90
  %v513 = vld [vmem:[%s512] ss:$2 sm:$0xf]
  %v515 = vrot.slane %v513, 4
  %517 = vst.msk [vmem:[#allocation3 + $0x28] sm:$0xf0] %vm393, %v515
  %s518 = scalar_lea.vmem [#allocation2], 11
  %v519 = vld [vmem:[%s518] ss:$2 sm:$0xf]
  %521 = vrot.lane.b32.xlu0 %v519, 32
  %v522 = vpop.permute.xlu0 %521
  %524 = vst.msk [vmem:[#allocation3 + $0x8] sm:$0xf] %vm410, %v522
  %s525 = scalar_lea.vmem [#allocation2], 31
  %v526 = vld [vmem:[%s525] ss:$2 sm:$0xf]
  %v528 = vrot.slane %v526, 4
  %529 = vrot.lane.b32.xlu0 %v528, 32
  %v530 = vpop.permute.xlu0 %529
  %532 = vst.msk [vmem:[#allocation3 + $0x8] sm:$0xf0] %vm419, %v530
  %s533 = scalar_lea.vmem [#allocation2], 71
  %v534 = vld [vmem:[%s533] ss:$2 sm:$0xf]
  %536 = vrot.lane.b32.xlu0 %v534, 32
  %v537 = vpop.permute.xlu0 %536
  %539 = vst.msk [vmem:[#allocation3 + $0x28] sm:$0xf] %vm410, %v537
  %s540 = scalar_lea.vmem [#allocation2], 91
  %v541 = vld [vmem:[%s540] ss:$2 sm:$0xf]
  %v543 = vrot.slane %v541, 4
  %544 = vrot.lane.b32.xlu0 %v543, 32
  %v545 = vpop.permute.xlu0 %544
  %547 = vst.msk [vmem:[#allocation3 + $0x28] sm:$0xf0] %vm419, %v545
  %s548 = scalar_lea.vmem [#allocation2], 12
  %v549 = vld [vmem:[%s548] ss:$2 sm:$0xf]
  %551 = vrot.lane.b32.xlu0 %v549, 64
  %v552 = vpop.permute.xlu0 %551
  %554 = vst.msk [vmem:[#allocation3 + $0x8] sm:$0xf] %vm442, %v552
  %s555 = scalar_lea.vmem [#allocation2], 32
  %v556 = vld [vmem:[%s555] ss:$2 sm:$0xf]
  %v558 = vrot.slane %v556, 4
  %559 = vrot.lane.b32.xlu0 %v558, 64
  %v560 = vpop.permute.xlu0 %559
  %562 = vst.msk [vmem:[#allocation3 + $0x8] sm:$0xf0] %vm451, %v560
  %s563 = scalar_lea.vmem [#allocation2], 72
  %v564 = vld [vmem:[%s563] ss:$2 sm:$0xf]
  %566 = vrot.lane.b32.xlu0 %v564, 64
  %v567 = vpop.permute.xlu0 %566
  %569 = vst.msk [vmem:[#allocation3 + $0x28] sm:$0xf] %vm442, %v567
  %s570 = scalar_lea.vmem [#allocation2], 92
  %v571 = vld [vmem:[%s570] ss:$2 sm:$0xf]
  %v573 = vrot.slane %v571, 4
  %574 = vrot.lane.b32.xlu0 %v573, 64
  %v575 = vpop.permute.xlu0 %574
  %577 = vst.msk [vmem:[#allocation3 + $0x28] sm:$0xf0] %vm451, %v575
  %s578 = scalar_lea.vmem [#allocation2], 13
  %v579 = vld [vmem:[%s578] ss:$2 sm:$0xf]
  %581 = vrot.lane.b32.xlu0 %v579, 96
  %v582 = vpop.permute.xlu0 %581
  %584 = vst.msk [vmem:[#allocation3 + $0x8] sm:$0xf] %vm474, %v582
  %s585 = scalar_lea.vmem [#allocation2], 33
  %v586 = vld [vmem:[%s585] ss:$2 sm:$0xf]
  %v588 = vrot.slane %v586, 4
  %589 = vrot.lane.b32.xlu0 %v588, 96
  %v590 = vpop.permute.xlu0 %589
  %592 = vst.msk [vmem:[#allocation3 + $0x8] sm:$0xf0] %vm483, %v590
  %s593 = scalar_lea.vmem [#allocation2], 73
  %v594 = vld [vmem:[%s593] ss:$2 sm:$0xf]
  %596 = vrot.lane.b32.xlu0 %v594, 96
  %v597 = vpop.permute.xlu0 %596
  %599 = vst.msk [vmem:[#allocation3 + $0x28] sm:$0xf] %vm474, %v597
  %s600 = scalar_lea.vmem [#allocation2], 93
  %v601 = vld [vmem:[%s600] ss:$2 sm:$0xf]
  %v603 = vrot.slane %v601, 4
  %604 = vrot.lane.b32.xlu0 %v603, 96
  %v605 = vpop.permute.xlu0 %604
  %607 = vst.msk [vmem:[#allocation3 + $0x28] sm:$0xf0] %vm483, %v605
  %v608 = vld [vmem:[%s388] ss:$2 sm:$0xf]
  %609 = vst.msk [vmem:[#allocation3 + $0x10] sm:$0xf] %vm386, %v608
  %s610 = scalar_lea.vmem [#allocation2], 40
  %v611 = vld [vmem:[%s610] ss:$2 sm:$0xf]
  %v613 = vrot.slane %v611, 4
  %615 = vst.msk [vmem:[#allocation3 + $0x10] sm:$0xf0] %vm393, %v613
  %v616 = vld [vmem:[%s398] ss:$2 sm:$0xf]
  %617 = vst.msk [vmem:[#allocation3 + $0x30] sm:$0xf] %vm386, %v616
  %s618 = scalar_lea.vmem [#allocation2], 100
  %v619 = vld [vmem:[%s618] ss:$2 sm:$0xf]
  %v621 = vrot.slane %v619, 4
  %623 = vst.msk [vmem:[#allocation3 + $0x30] sm:$0xf0] %vm393, %v621
  %v624 = vld [vmem:[%s412] ss:$2 sm:$0xf]
  %626 = vrot.lane.b32.xlu0 %v624, 32
  %v627 = vpop.permute.xlu0 %626
  %629 = vst.msk [vmem:[#allocation3 + $0x10] sm:$0xf] %vm410, %v627
  %s630 = scalar_lea.vmem [#allocation2], 41
  %v631 = vld [vmem:[%s630] ss:$2 sm:$0xf]
  %v633 = vrot.slane %v631, 4
  %634 = vrot.lane.b32.xlu0 %v633, 32
  %v635 = vpop.permute.xlu0 %634
  %637 = vst.msk [vmem:[#allocation3 + $0x10] sm:$0xf0] %vm419, %v635
  %v638 = vld [vmem:[%s428] ss:$2 sm:$0xf]
  %640 = vrot.lane.b32.xlu0 %v638, 32
  %v641 = vpop.permute.xlu0 %640
  %643 = vst.msk [vmem:[#allocation3 + $0x30] sm:$0xf] %vm410, %v641
  %s644 = scalar_lea.vmem [#allocation2], 101
  %v645 = vld [vmem:[%s644] ss:$2 sm:$0xf]
  %v647 = vrot.slane %v645, 4
  %648 = vrot.lane.b32.xlu0 %v647, 32
  %v649 = vpop.permute.xlu0 %648
  %651 = vst.msk [vmem:[#allocation3 + $0x30] sm:$0xf0] %vm419, %v649
  %v652 = vld [vmem:[%s444] ss:$2 sm:$0xf]
  %654 = vrot.lane.b32.xlu0 %v652, 64
  %v655 = vpop.permute.xlu0 %654
  %657 = vst.msk [vmem:[#allocation3 + $0x10] sm:$0xf] %vm442, %v655
  %s658 = scalar_lea.vmem [#allocation2], 42
  %v659 = vld [vmem:[%s658] ss:$2 sm:$0xf]
  %v661 = vrot.slane %v659, 4
  %662 = vrot.lane.b32.xlu0 %v661, 64
  %v663 = vpop.permute.xlu0 %662
  %665 = vst.msk [vmem:[#allocation3 + $0x10] sm:$0xf0] %vm451, %v663
  %v666 = vld [vmem:[%s460] ss:$2 sm:$0xf]
  %668 = vrot.lane.b32.xlu0 %v666, 64
  %v669 = vpop.permute.xlu0 %668
  %671 = vst.msk [vmem:[#allocation3 + $0x30] sm:$0xf] %vm442, %v669
  %s672 = scalar_lea.vmem [#allocation2], 102
  %v673 = vld [vmem:[%s672] ss:$2 sm:$0xf]
  %v675 = vrot.slane %v673, 4
  %676 = vrot.lane.b32.xlu0 %v675, 64
  %v677 = vpop.permute.xlu0 %676
  %679 = vst.msk [vmem:[#allocation3 + $0x30] sm:$0xf0] %vm451, %v677
  %v680 = vld [vmem:[%s476] ss:$2 sm:$0xf]
  %682 = vrot.lane.b32.xlu0 %v680, 96
  %v683 = vpop.permute.xlu0 %682
  %685 = vst.msk [vmem:[#allocation3 + $0x10] sm:$0xf] %vm474, %v683
  %s686 = scalar_lea.vmem [#allocation2], 43
  %v687 = vld [vmem:[%s686] ss:$2 sm:$0xf]
  %v689 = vrot.slane %v687, 4
  %690 = vrot.lane.b32.xlu0 %v689, 96
  %v691 = vpop.permute.xlu0 %690
  %693 = vst.msk [vmem:[#allocation3 + $0x10] sm:$0xf0] %vm483, %v691
  %v694 = vld [vmem:[%s492] ss:$2 sm:$0xf]
  %696 = vrot.lane.b32.xlu0 %v694, 96
  %v697 = vpop.permute.xlu0 %696
  %699 = vst.msk [vmem:[#allocation3 + $0x30] sm:$0xf] %vm474, %v697
  %s700 = scalar_lea.vmem [#allocation2], 103
  %v701 = vld [vmem:[%s700] ss:$2 sm:$0xf]
  %v703 = vrot.slane %v701, 4
  %704 = vrot.lane.b32.xlu0 %v703, 96
  %v705 = vpop.permute.xlu0 %704
  %707 = vst.msk [vmem:[#allocation3 + $0x30] sm:$0xf0] %vm483, %v705
  %v708 = vld [vmem:[%s503] ss:$2 sm:$0xf]
  %709 = vst.msk [vmem:[#allocation3 + $0x18] sm:$0xf] %vm386, %v708
  %s710 = scalar_lea.vmem [#allocation2], 50
  %v711 = vld [vmem:[%s710] ss:$2 sm:$0xf]
  %v713 = vrot.slane %v711, 4
  %715 = vst.msk [vmem:[#allocation3 + $0x18] sm:$0xf0] %vm393, %v713
  %v716 = vld [vmem:[%s512] ss:$2 sm:$0xf]
  %717 = vst.msk [vmem:[#allocation3 + $0x38] sm:$0xf] %vm386, %v716
  %s718 = scalar_lea.vmem [#allocation2], 110
  %v719 = vld [vmem:[%s718] ss:$2 sm:$0xf]
  %v721 = vrot.slane %v719, 4
  %723 = vst.msk [vmem:[#allocation3 + $0x38] sm:$0xf0] %vm393, %v721
  %v724 = vld [vmem:[%s525] ss:$2 sm:$0xf]
  %726 = vrot.lane.b32.xlu0 %v724, 32
  %v727 = vpop.permute.xlu0 %726
  %729 = vst.msk [vmem:[#allocation3 + $0x18] sm:$0xf] %vm410, %v727
  %s730 = scalar_lea.vmem [#allocation2], 51
  %v731 = vld [vmem:[%s730] ss:$2 sm:$0xf]
  %v733 = vrot.slane %v731, 4
  %734 = vrot.lane.b32.xlu0 %v733, 32
  %v735 = vpop.permute.xlu0 %734
  %737 = vst.msk [vmem:[#allocation3 + $0x18] sm:$0xf0] %vm419, %v735
  %v738 = vld [vmem:[%s540] ss:$2 sm:$0xf]
  %740 = vrot.lane.b32.xlu0 %v738, 32
  %v741 = vpop.permute.xlu0 %740
  %743 = vst.msk [vmem:[#allocation3 + $0x38] sm:$0xf] %vm410, %v741
  %s744 = scalar_lea.vmem [#allocation2], 111
  %v745 = vld [vmem:[%s744] ss:$2 sm:$0xf]
  %v747 = vrot.slane %v745, 4
  %748 = vrot.lane.b32.xlu0 %v747, 32
  %v749 = vpop.permute.xlu0 %748
  %751 = vst.msk [vmem:[#allocation3 + $0x38] sm:$0xf0] %vm419, %v749
  %v752 = vld [vmem:[%s555] ss:$2 sm:$0xf]
  %754 = vrot.lane.b32.xlu0 %v752, 64
  %v755 = vpop.permute.xlu0 %754
  %757 = vst.msk [vmem:[#allocation3 + $0x18] sm:$0xf] %vm442, %v755
  %s758 = scalar_lea.vmem [#allocation2], 52
  %v759 = vld [vmem:[%s758] ss:$2 sm:$0xf]
  %v761 = vrot.slane %v759, 4
  %762 = vrot.lane.b32.xlu0 %v761, 64
  %v763 = vpop.permute.xlu0 %762
  %765 = vst.msk [vmem:[#allocation3 + $0x18] sm:$0xf0] %vm451, %v763
  %v766 = vld [vmem:[%s570] ss:$2 sm:$0xf]
  %768 = vrot.lane.b32.xlu0 %v766, 64
  %v769 = vpop.permute.xlu0 %768
  %771 = vst.msk [vmem:[#allocation3 + $0x38] sm:$0xf] %vm442, %v769
  %s772 = scalar_lea.vmem [#allocation2], 112
  %v773 = vld [vmem:[%s772] ss:$2 sm:$0xf]
  %v775 = vrot.slane %v773, 4
  %776 = vrot.lane.b32.xlu0 %v775, 64
  %v777 = vpop.permute.xlu0 %776
  %779 = vst.msk [vmem:[#allocation3 + $0x38] sm:$0xf0] %vm451, %v777
  %v780 = vld [vmem:[%s585] ss:$2 sm:$0xf]
  %782 = vrot.lane.b32.xlu0 %v780, 96
  %v783 = vpop.permute.xlu0 %782
  %785 = vst.msk [vmem:[#allocation3 + $0x18] sm:$0xf] %vm474, %v783
  %s786 = scalar_lea.vmem [#allocation2], 53
  %v787 = vld [vmem:[%s786] ss:$2 sm:$0xf]
  %v789 = vrot.slane %v787, 4
  %790 = vrot.lane.b32.xlu0 %v789, 96
  %v791 = vpop.permute.xlu0 %790
  %793 = vst.msk [vmem:[#allocation3 + $0x18] sm:$0xf0] %vm483, %v791
  %v794 = vld [vmem:[%s600] ss:$2 sm:$0xf]
  %796 = vrot.lane.b32.xlu0 %v794, 96
  %v797 = vpop.permute.xlu0 %796
  %799 = vst.msk [vmem:[#allocation3 + $0x38] sm:$0xf] %vm474, %v797
  %s800 = scalar_lea.vmem [#allocation2], 113
  %v801 = vld [vmem:[%s800] ss:$2 sm:$0xf]
  %v803 = vrot.slane %v801, 4
  %804 = vrot.lane.b32.xlu0 %v803, 96
  %v805 = vpop.permute.xlu0 %804
  %807 = vst.msk [vmem:[#allocation3 + $0x38] sm:$0xf0] %vm483, %v805
  %v808 = vld [vmem:[#allocation3] sm:$0xff]
  %v809 = vld [vmem:[#allocation3 + $0x8] sm:$0xff]
  %v810 = vld [vmem:[#allocation3 + $0x10] sm:$0xff]
  %v811 = vld [vmem:[#allocation3 + $0x18] sm:$0xff]
  %v812 = vld [vmem:[#allocation3 + $0x20] sm:$0xff]
  %v813 = vld [vmem:[#allocation3 + $0x28] sm:$0xff]
  %v814 = vld [vmem:[#allocation3 + $0x30] sm:$0xff]
  %v815 = vld [vmem:[#allocation3 + $0x38] sm:$0xff]
  %v816 = vld [vmem:[%s4] sm:$0xff]
  %v817 = vld [vmem:[%s4 + $0x8] sm:$0xff]
  %v818 = vld [vmem:[%s4 + $0x10] sm:$0xff]
  %v819 = vld [vmem:[%s4 + $0x18] sm:$0xff]
  %v820 = vld [vmem:[%s4 + $0x20] sm:$0xff]
  %v821 = vld [vmem:[%s4 + $0x28] sm:$0xff]
  %v822 = vld [vmem:[%s4 + $0x30] sm:$0xff]
  %v823 = vld [vmem:[%s4 + $0x38] sm:$0xff]
  %v824 = vld [vmem:[%s4 + $0x40] sm:$0xff]
  %v825 = vld [vmem:[%s4 + $0x48] sm:$0xff]
  %v826 = vld [vmem:[%s4 + $0x50] sm:$0xff]
  %v827 = vld [vmem:[%s4 + $0x58] sm:$0xff]
  %v828 = vld [vmem:[%s4 + $0x60] sm:$0xff]
  %v829 = vld [vmem:[%s4 + $0x68] sm:$0xff]
  %v830 = vld [vmem:[%s4 + $0x70] sm:$0xff]
  %v831 = vld [vmem:[%s4 + $0x78] sm:$0xff]
  %v832 = vld [vmem:[%s4 + $0x80] sm:$0xff]
  %v833 = vld [vmem:[%s4 + $0x88] sm:$0xff]
  %v834 = vld [vmem:[%s4 + $0x90] sm:$0xff]
  %v835 = vld [vmem:[%s4 + $0x98] sm:$0xff]
  %v836 = vld [vmem:[%s4 + $0xa0] sm:$0xff]
  %v837 = vld [vmem:[%s4 + $0xa8] sm:$0xff]
  %v838 = vld [vmem:[%s4 + $0xb0] sm:$0xff]
  %v839 = vld [vmem:[%s4 + $0xb8] sm:$0xff]
  %v840 = vld [vmem:[%s4 + $0xc0] sm:$0xff]
  %v841 = vld [vmem:[%s4 + $0xc8] sm:$0xff]
  %v842 = vld [vmem:[%s4 + $0xd0] sm:$0xff]
  %v843 = vld [vmem:[%s4 + $0xd8] sm:$0xff]
  %v844 = vld [vmem:[%s4 + $0xe0] sm:$0xff]
  %v845 = vld [vmem:[%s4 + $0xe8] sm:$0xff]
  %v846 = vld [vmem:[%s4 + $0xf0] sm:$0xff]
  %v847 = vld [vmem:[%s4 + $0xf8] sm:$0xff]
  %v848 = vld [vmem:[%s4 + $0x100] sm:$0xff]
  %v849 = vld [vmem:[%s4 + $0x108] sm:$0xff]
  %v850 = vld [vmem:[%s4 + $0x110] sm:$0xff]
  %v851 = vld [vmem:[%s4 + $0x118] sm:$0xff]
  %v852 = vld [vmem:[%s4 + $0x120] sm:$0xff]
  %v853 = vld [vmem:[%s4 + $0x128] sm:$0xff]
  %v854 = vld [vmem:[%s4 + $0x130] sm:$0xff]
  %v855 = vld [vmem:[%s4 + $0x138] sm:$0xff]
  %v856 = vld [vmem:[%s4 + $0x140] sm:$0xff]
  %v857 = vld [vmem:[%s4 + $0x148] sm:$0xff]
  %v858 = vld [vmem:[%s4 + $0x150] sm:$0xff]
  %v859 = vld [vmem:[%s4 + $0x158] sm:$0xff]
  %v860 = vld [vmem:[%s4 + $0x160] sm:$0xff]
  %v861 = vld [vmem:[%s4 + $0x168] sm:$0xff]
  %v862 = vld [vmem:[%s4 + $0x170] sm:$0xff]
  %v863 = vld [vmem:[%s4 + $0x178] sm:$0xff]
  %v864 = vld [vmem:[%s4 + $0x180] sm:$0xff]
  %v865 = vld [vmem:[%s4 + $0x188] sm:$0xff]
  %v866 = vld [vmem:[%s4 + $0x190] sm:$0xff]
  %v867 = vld [vmem:[%s4 + $0x198] sm:$0xff]
  %v868 = vld [vmem:[%s4 + $0x1a0] sm:$0xff]
  %v869 = vld [vmem:[%s4 + $0x1a8] sm:$0xff]
  %v870 = vld [vmem:[%s4 + $0x1b0] sm:$0xff]
  %v871 = vld [vmem:[%s4 + $0x1b8] sm:$0xff]
  %v872 = vld [vmem:[%s4 + $0x1c0] sm:$0xff]
  %v873 = vld [vmem:[%s4 + $0x1c8] sm:$0xff]
  %v874 = vld [vmem:[%s4 + $0x1d0] sm:$0xff]
  %v875 = vld [vmem:[%s4 + $0x1d8] sm:$0xff]
  %v876 = vld [vmem:[%s4 + $0x1e0] sm:$0xff]
  %v877 = vld [vmem:[%s4 + $0x1e8] sm:$0xff]
  %v878 = vld [vmem:[%s4 + $0x1f0] sm:$0xff]
  %v879 = vld [vmem:[%s4 + $0x1f8] sm:$0xff]
  %v880 = vld [vmem:[%s5] sm:$0x1]
  %v882 = vlaneseq
  %v883 = vshrl.u32 %v882, 7
  %v884 = vsub.s32 0, %v883
  %v885 = vrot.slane %v880, %v884
  %887 = vmatprep.subr.mxu0 0.0
  %888 = vmatpush1.msra.mxu0 %v831
  %889 = vmatprep.subr.mxu0 0.0
  %890 = vmatpush1.msra.mxu0 %v830
  %891 = vmatprep.subr.mxu0 0.0
  %892 = vmatpush1.msra.mxu0 %v829
  %893 = vmatprep.subr.mxu0 0.0
  %894 = vmatpush1.msra.mxu0 %v828
  %895 = vmatprep.subr.mxu0 0.0
  %896 = vmatpush1.msra.mxu0 %v827
  %897 = vmatprep.subr.mxu0 0.0
  %898 = vmatpush1.msra.mxu0 %v826
  %899 = vmatprep.subr.mxu0 0.0
  %900 = vmatpush1.msra.mxu0 %v825
  %901 = vmatprep.subr.mxu0 0.0
  %902 = vmatpush1.msra.mxu0 %v824
  %903 = vmatprep.subr.mxu0 0.0
  %904 = vmatpush1.msra.mxu0 %v823
  %905 = vmatprep.subr.mxu0 0.0
  %906 = vmatpush1.msra.mxu0 %v822
  %907 = vmatprep.subr.mxu0 0.0
  %908 = vmatpush1.msra.mxu0 %v821
  %909 = vmatprep.subr.mxu0 0.0
  %910 = vmatpush1.msra.mxu0 %v820
  %911 = vmatprep.subr.mxu0 0.0
  %912 = vmatpush1.msra.mxu0 %v819
  %913 = vmatprep.subr.mxu0 0.0
  %914 = vmatpush1.msra.mxu0 %v818
  %915 = vmatprep.subr.mxu0 0.0
  %916 = vmatpush1.msra.mxu0 %v817
  %917 = vmatprep.subr.mxu0 0.0
  %918 = vmatpush1.msra.mxu0 %v816
  %919 = vmatprep.subr.mxu0 0.0
  %920 = vmatpush2.msra.mxu0 %v847
  %921 = vmatprep.subr.mxu0 0.0
  %922 = vmatpush2.msra.mxu0 %v846
  %923 = vmatprep.subr.mxu0 0.0
  %924 = vmatpush2.msra.mxu0 %v845
  %925 = vmatprep.subr.mxu0 0.0
  %926 = vmatpush2.msra.mxu0 %v844
  %927 = vmatprep.subr.mxu0 0.0
  %928 = vmatpush2.msra.mxu0 %v843
  %929 = vmatprep.subr.mxu0 0.0
  %930 = vmatpush2.msra.mxu0 %v842
  %931 = vmatprep.subr.mxu0 0.0
  %932 = vmatpush2.msra.mxu0 %v841
  %933 = vmatprep.subr.mxu0 0.0
  %934 = vmatpush2.msra.mxu0 %v840
  %935 = vmatprep.subr.mxu0 0.0
  %936 = vmatpush2.msra.mxu0 %v839
  %937 = vmatprep.subr.mxu0 0.0
  %938 = vmatpush2.msra.mxu0 %v838
  %939 = vmatprep.subr.mxu0 0.0
  %940 = vmatpush2.msra.mxu0 %v837
  %941 = vmatprep.subr.mxu0 0.0
  %942 = vmatpush2.msra.mxu0 %v836
  %943 = vmatprep.subr.mxu0 0.0
  %944 = vmatpush2.msra.mxu0 %v835
  %945 = vmatprep.subr.mxu0 0.0
  %946 = vmatpush2.msra.mxu0 %v834
  %947 = vmatprep.subr.mxu0 0.0
  %948 = vmatpush2.msra.mxu0 %v833
  %949 = vmatprep.subr.mxu0 0.0
  %950 = vmatpush2.msra.mxu0 %v832
  %951 = vmatprep.mubr.f32.mxu0 %v809
  %952 = vmatmul.mubr.f32.gmra.mxu0 %v808
  %v953 = vpop.f32.mrf.mxu0
  %v954 = vadd.f32 %v885, %v953
  %v955 = vpop.f32.mrf.mxu0
  %956 = vmatprep.mubr.f32.mxu0 %v813
  %957 = vmatmul.mubr.f32.gmra.mxu0 %v812
  %v958 = vpop.f32.mrf.mxu0
  %v959 = vadd.f32 %v885, %v958
  %v960 = vpop.f32.mrf.mxu0
  %961 = vdwg.mxu0
  %962 = vmatprep.subr.mxu0 0.0
  %963 = vmatpush1.msra.mxu0 %v863
  %964 = vmatprep.subr.mxu0 0.0
  %965 = vmatpush1.msra.mxu0 %v862
  %966 = vmatprep.subr.mxu0 0.0
  %967 = vmatpush1.msra.mxu0 %v861
  %968 = vmatprep.subr.mxu0 0.0
  %969 = vmatpush1.msra.mxu0 %v860
  %970 = vmatprep.subr.mxu0 0.0
  %971 = vmatpush1.msra.mxu0 %v859
  %972 = vmatprep.subr.mxu0 0.0
  %973 = vmatpush1.msra.mxu0 %v858
  %974 = vmatprep.subr.mxu0 0.0
  %975 = vmatpush1.msra.mxu0 %v857
  %976 = vmatprep.subr.mxu0 0.0
  %977 = vmatpush1.msra.mxu0 %v856
  %978 = vmatprep.subr.mxu0 0.0
  %979 = vmatpush1.msra.mxu0 %v855
  %980 = vmatprep.subr.mxu0 0.0
  %981 = vmatpush1.msra.mxu0 %v854
  %982 = vmatprep.subr.mxu0 0.0
  %983 = vmatpush1.msra.mxu0 %v853
  %984 = vmatprep.subr.mxu0 0.0
  %985 = vmatpush1.msra.mxu0 %v852
  %986 = vmatprep.subr.mxu0 0.0
  %987 = vmatpush1.msra.mxu0 %v851
  %988 = vmatprep.subr.mxu0 0.0
  %989 = vmatpush1.msra.mxu0 %v850
  %990 = vmatprep.subr.mxu0 0.0
  %991 = vmatpush1.msra.mxu0 %v849
  %992 = vmatprep.subr.mxu0 0.0
  %993 = vmatpush1.msra.mxu0 %v848
  %994 = vmatprep.subr.mxu0 0.0
  %995 = vmatpush2.msra.mxu0 %v879
  %996 = vmatprep.subr.mxu0 0.0
  %997 = vmatpush2.msra.mxu0 %v878
  %998 = vmatprep.subr.mxu0 0.0
  %999 = vmatpush2.msra.mxu0 %v877
  %1000 = vmatprep.subr.mxu0 0.0
  %1001 = vmatpush2.msra.mxu0 %v876
  %1002 = vmatprep.subr.mxu0 0.0
  %1003 = vmatpush2.msra.mxu0 %v875
  %1004 = vmatprep.subr.mxu0 0.0
  %1005 = vmatpush2.msra.mxu0 %v874
  %1006 = vmatprep.subr.mxu0 0.0
  %1007 = vmatpush2.msra.mxu0 %v873
  %1008 = vmatprep.subr.mxu0 0.0
  %1009 = vmatpush2.msra.mxu0 %v872
  %1010 = vmatprep.subr.mxu0 0.0
  %1011 = vmatpush2.msra.mxu0 %v871
  %1012 = vmatprep.subr.mxu0 0.0
  %1013 = vmatpush2.msra.mxu0 %v870
  %1014 = vmatprep.subr.mxu0 0.0
  %1015 = vmatpush2.msra.mxu0 %v869
  %1016 = vmatprep.subr.mxu0 0.0
  %1017 = vmatpush2.msra.mxu0 %v868
  %1018 = vmatprep.subr.mxu0 0.0
  %1019 = vmatpush2.msra.mxu0 %v867
  %1020 = vmatprep.subr.mxu0 0.0
  %1021 = vmatpush2.msra.mxu0 %v866
  %1022 = vmatprep.subr.mxu0 0.0
  %1023 = vmatpush2.msra.mxu0 %v865
  %1024 = vmatprep.subr.mxu0 0.0
  %1025 = vmatpush2.msra.mxu0 %v864
  %1026 = vmatprep.mubr.f32.mxu0 %v811
  %1027 = vmatmul.mubr.f32.gmra.mxu0 %v810
  %v1028 = vpop.f32.mrf.mxu0
  %v1029 = vadd.f32 %v954, %v1028
  %v1030 = vpop.f32.mrf.mxu0
  %1031 = vmatprep.mubr.f32.mxu0 %v815
  %1032 = vmatmul.mubr.f32.gmra.mxu0 %v814
  %v1033 = vpop.f32.mrf.mxu0
  %v1034 = vadd.f32 %v959, %v1033
  %v1035 = vpop.f32.mrf.mxu0
  %1036 = vdwg.mxu0
  %v1037 = vmax.f32 %v1029, 0.0
  %v1038 = vmax.f32 %v1034, 0.0
  %vm1039 = vcmask 523264
  %1040 = vst.msk [vmem:[#allocation4] sm:$0xff] %vm1039, 0.0
  %1041 = vst.msk [vmem:[#allocation4 + $0x8] sm:$0xff] %vm1039, 0.0
  %1042 = vst.msk [vmem:[#allocation4 + $0x10] sm:$0xff] %vm1039, 0.0
  %1043 = vst.msk [vmem:[#allocation4 + $0x18] sm:$0xff] %vm1039, 0.0
  %1044 = vst.msk [vmem:[#allocation4 + $0x20] sm:$0xff] %vm1039, 0.0
  %1045 = vst.msk [vmem:[#allocation4 + $0x28] sm:$0xff] %vm1039, 0.0
  %vm1046 = vcmask 519168
  %1047 = vst.msk [vmem:[#allocation4 + $0x7] sm:$0xf] %vm1046, %v1037
  %vm1048 = vcmask 523268
  %1049 = vst.msk [vmem:[#allocation4 + $0x9] sm:$0xf0] %vm1048, %v1037
  %1050 = vst.msk [vmem:[#allocation4 + $0x1f] sm:$0xf] %vm1046, %v1038
  %1051 = vst.msk [vmem:[#allocation4 + $0x21] sm:$0xf0] %vm1048, %v1038
  %1052 = vst [vmem:[#allocation5] sm:$0xff] 0.0
  %1053 = vst [vmem:[#allocation5 + $0x8] sm:$0xff] 0.0
  %1054 = vst [vmem:[#allocation5 + $0x10] sm:$0xff] 0.0
  %1055 = vst [vmem:[#allocation5 + $0x18] sm:$0xff] 0.0
  %1056 = vst [vmem:[#allocation5 + $0x20] sm:$0xff] 0.0
  %1057 = vst [vmem:[#allocation5 + $0x28] sm:$0xff] 0.0
  %1058 = vst [vmem:[#allocation5 + $0x30] sm:$0xff] 0.0
  %1059 = vst [vmem:[#allocation5 + $0x38] sm:$0xff] 0.0
  %1060 = vst [vmem:[#allocation5 + $0x40] sm:$0xff] 0.0
  %1061 = vst [vmem:[#allocation5 + $0x48] sm:$0xff] 0.0
  %v1062 = vld [vmem:[#allocation4] sm:$0xf]
  %1063 = vst.msk [vmem:[#allocation5] sm:$0xf] %vm1046, %v1062
  %v1064 = vld [vmem:[#allocation4 + $0x6] sm:$0xf]
  %v1066 = vrot.slane %v1064, 4
  %1068 = vst.msk [vmem:[#allocation5] sm:$0xf0] %vm1048, %v1066
  %v1069 = vld [vmem:[#allocation4 + $0x18] sm:$0xf]
  %1070 = vst.msk [vmem:[#allocation5 + $0x28] sm:$0xf] %vm1046, %v1069
  %v1071 = vld [vmem:[#allocation4 + $0x1e] sm:$0xf]
  %v1073 = vrot.slane %v1071, 4
  %1075 = vst.msk [vmem:[#allocation5 + $0x28] sm:$0xf0] %vm1048, %v1073
  %v1076 = vld [vmem:[#allocation4 + $0x1] sm:$0xf]
  %1078 = vrot.lane.b32.xlu0 %v1076, 64
  %v1079 = vpop.permute.xlu0 %1078
  %vm1081 = vcmask 1043968
  %1082 = vst.msk [vmem:[#allocation5] sm:$0xf] %vm1081, %v1079
  %v1083 = vld [vmem:[#allocation4 + $0x7] sm:$0xf]
  %v1085 = vrot.slane %v1083, 4
  %1086 = vrot.lane.b32.xlu0 %v1085, 64
  %v1087 = vpop.permute.xlu0 %1086
  %vm1089 = vcmask 1048068
  %1090 = vst.msk [vmem:[#allocation5] sm:$0xf0] %vm1089, %v1087
  %v1091 = vld [vmem:[#allocation4 + $0x19] sm:$0xf]
  %1093 = vrot.lane.b32.xlu0 %v1091, 64
  %v1094 = vpop.permute.xlu0 %1093
  %1096 = vst.msk [vmem:[#allocation5 + $0x28] sm:$0xf] %vm1081, %v1094
  %v1097 = vld [vmem:[#allocation4 + $0x1f] sm:$0xf]
  %v1099 = vrot.slane %v1097, 4
  %1100 = vrot.lane.b32.xlu0 %v1099, 64
  %v1101 = vpop.permute.xlu0 %1100
  %1103 = vst.msk [vmem:[#allocation5 + $0x28] sm:$0xf0] %vm1089, %v1101
  %v1104 = vld [vmem:[#allocation4 + $0x2] sm:$0xf]
  %1105 = vst.msk [vmem:[#allocation5 + $0x8] sm:$0xf] %vm1046, %v1104
  %v1106 = vld [vmem:[#allocation4 + $0x8] sm:$0xf]
  %v1108 = vrot.slane %v1106, 4
  %1110 = vst.msk [vmem:[#allocation5 + $0x8] sm:$0xf0] %vm1048, %v1108
  %v1111 = vld [vmem:[#allocation4 + $0x1a] sm:$0xf]
  %1112 = vst.msk [vmem:[#allocation5 + $0x30] sm:$0xf] %vm1046, %v1111
  %v1113 = vld [vmem:[#allocation4 + $0x20] sm:$0xf]
  %v1115 = vrot.slane %v1113, 4
  %1117 = vst.msk [vmem:[#allocation5 + $0x30] sm:$0xf0] %vm1048, %v1115
  %v1118 = vld [vmem:[#allocation4 + $0x6] sm:$0xf]
  %1120 = vrot.lane.b32.xlu0 %v1118, 64
  %v1121 = vpop.permute.xlu0 %1120
  %1123 = vst.msk [vmem:[#allocation5 + $0x8] sm:$0xf] %vm1081, %v1121
  %v1124 = vld [vmem:[#allocation4 + $0xc] sm:$0xf]
  %v1126 = vrot.slane %v1124, 4
  %1127 = vrot.lane.b32.xlu0 %v1126, 64
  %v1128 = vpop.permute.xlu0 %1127
  %1130 = vst.msk [vmem:[#allocation5 + $0x8] sm:$0xf0] %vm1089, %v1128
  %v1131 = vld [vmem:[#allocation4 + $0x1e] sm:$0xf]
  %1133 = vrot.lane.b32.xlu0 %v1131, 64
  %v1134 = vpop.permute.xlu0 %1133
  %1136 = vst.msk [vmem:[#allocation5 + $0x30] sm:$0xf] %vm1081, %v1134
  %v1137 = vld [vmem:[#allocation4 + $0x24] sm:$0xf]
  %v1139 = vrot.slane %v1137, 4
  %1140 = vrot.lane.b32.xlu0 %v1139, 64
  %v1141 = vpop.permute.xlu0 %1140
  %1143 = vst.msk [vmem:[#allocation5 + $0x30] sm:$0xf0] %vm1089, %v1141
  %v1144 = vld [vmem:[#allocation4 + $0x7] sm:$0xf]
  %1145 = vst.msk [vmem:[#allocation5 + $0x10] sm:$0xf] %vm1046, %v1144
  %v1146 = vld [vmem:[#allocation4 + $0xd] sm:$0xf]
  %v1148 = vrot.slane %v1146, 4
  %1150 = vst.msk [vmem:[#allocation5 + $0x10] sm:$0xf0] %vm1048, %v1148
  %v1151 = vld [vmem:[#allocation4 + $0x1f] sm:$0xf]
  %1152 = vst.msk [vmem:[#allocation5 + $0x38] sm:$0xf] %vm1046, %v1151
  %v1153 = vld [vmem:[#allocation4 + $0x25] sm:$0xf]
  %v1155 = vrot.slane %v1153, 4
  %1157 = vst.msk [vmem:[#allocation5 + $0x38] sm:$0xf0] %vm1048, %v1155
  %v1158 = vld [vmem:[#allocation4 + $0x8] sm:$0xf]
  %1160 = vrot.lane.b32.xlu0 %v1158, 64
  %v1161 = vpop.permute.xlu0 %1160
  %1163 = vst.msk [vmem:[#allocation5 + $0x10] sm:$0xf] %vm1081, %v1161
  %v1164 = vld [vmem:[#allocation4 + $0xe] sm:$0xf]
  %v1166 = vrot.slane %v1164, 4
  %1167 = vrot.lane.b32.xlu0 %v1166, 64
  %v1168 = vpop.permute.xlu0 %1167
  %1170 = vst.msk [vmem:[#allocation5 + $0x10] sm:$0xf0] %vm1089, %v1168
  %v1171 = vld [vmem:[#allocation4 + $0x20] sm:$0xf]
  %1173 = vrot.lane.b32.xlu0 %v1171, 64
  %v1174 = vpop.permute.xlu0 %1173
  %1176 = vst.msk [vmem:[#allocation5 + $0x38] sm:$0xf] %vm1081, %v1174
  %v1177 = vld [vmem:[#allocation4 + $0x26] sm:$0xf]
  %v1179 = vrot.slane %v1177, 4
  %1180 = vrot.lane.b32.xlu0 %v1179, 64
  %v1181 = vpop.permute.xlu0 %1180
  %1183 = vst.msk [vmem:[#allocation5 + $0x38] sm:$0xf0] %vm1089, %v1181
  %v1184 = vld [vmem:[#allocation4 + $0xc] sm:$0xf]
  %1185 = vst.msk [vmem:[#allocation5 + $0x18] sm:$0xf] %vm1046, %v1184
  %v1186 = vld [vmem:[#allocation4 + $0x12] sm:$0xf]
  %v1188 = vrot.slane %v1186, 4
  %1190 = vst.msk [vmem:[#allocation5 + $0x18] sm:$0xf0] %vm1048, %v1188
  %v1191 = vld [vmem:[#allocation4 + $0x24] sm:$0xf]
  %1192 = vst.msk [vmem:[#allocation5 + $0x40] sm:$0xf] %vm1046, %v1191
  %v1193 = vld [vmem:[#allocation4 + $0x2a] sm:$0xf]
  %v1195 = vrot.slane %v1193, 4
  %1197 = vst.msk [vmem:[#allocation5 + $0x40] sm:$0xf0] %vm1048, %v1195
  %v1198 = vld [vmem:[#allocation4 + $0xd] sm:$0xf]
  %1200 = vrot.lane.b32.xlu0 %v1198, 64
  %v1201 = vpop.permute.xlu0 %1200
  %1203 = vst.msk [vmem:[#allocation5 + $0x18] sm:$0xf] %vm1081, %v1201
  %v1204 = vld [vmem:[#allocation4 + $0x13] sm:$0xf]
  %v1206 = vrot.slane %v1204, 4
  %1207 = vrot.lane.b32.xlu0 %v1206, 64
  %v1208 = vpop.permute.xlu0 %1207
  %1210 = vst.msk [vmem:[#allocation5 + $0x18] sm:$0xf0] %vm1089, %v1208
  %v1211 = vld [vmem:[#allocation4 + $0x25] sm:$0xf]
  %1213 = vrot.lane.b32.xlu0 %v1211, 64
  %v1214 = vpop.permute.xlu0 %1213
  %1216 = vst.msk [vmem:[#allocation5 + $0x40] sm:$0xf] %vm1081, %v1214
  %v1217 = vld [vmem:[#allocation4 + $0x2b] sm:$0xf]
  %v1219 = vrot.slane %v1217, 4
  %1220 = vrot.lane.b32.xlu0 %v1219, 64
  %v1221 = vpop.permute.xlu0 %1220
  %1223 = vst.msk [vmem:[#allocation5 + $0x40] sm:$0xf0] %vm1089, %v1221
  %v1224 = vld [vmem:[#allocation4 + $0xe] sm:$0xf]
  %1225 = vst.msk [vmem:[#allocation5 + $0x20] sm:$0xf] %vm1046, %v1224
  %v1226 = vld [vmem:[#allocation4 + $0x14] sm:$0xf]
  %v1228 = vrot.slane %v1226, 4
  %1230 = vst.msk [vmem:[#allocation5 + $0x20] sm:$0xf0] %vm1048, %v1228
  %v1231 = vld [vmem:[#allocation4 + $0x26] sm:$0xf]
  %1232 = vst.msk [vmem:[#allocation5 + $0x48] sm:$0xf] %vm1046, %v1231
  %v1233 = vld [vmem:[#allocation4 + $0x2c] sm:$0xf]
  %v1235 = vrot.slane %v1233, 4
  %1237 = vst.msk [vmem:[#allocation5 + $0x48] sm:$0xf0] %vm1048, %v1235
  %v1238 = vld [vmem:[#allocation5] sm:$0xff]
  %v1239 = vld [vmem:[#allocation5 + $0x8] sm:$0xff]
  %v1240 = vld [vmem:[#allocation5 + $0x10] sm:$0xff]
  %v1241 = vld [vmem:[#allocation5 + $0x18] sm:$0xff]
  %v1242 = vld [vmem:[#allocation5 + $0x20] sm:$0xff]
  %v1243 = vld [vmem:[#allocation5 + $0x28] sm:$0xff]
  %v1244 = vld [vmem:[#allocation5 + $0x30] sm:$0xff]
  %v1245 = vld [vmem:[#allocation5 + $0x38] sm:$0xff]
  %v1246 = vld [vmem:[#allocation5 + $0x40] sm:$0xff]
  %v1247 = vld [vmem:[#allocation5 + $0x48] sm:$0xff]
  %v1248 = vld [vmem:[%s6] sm:$0xff]
  %v1249 = vld [vmem:[%s6 + $0x8] sm:$0xff]
  %v1250 = vld [vmem:[%s6 + $0x10] sm:$0xff]
  %v1251 = vld [vmem:[%s6 + $0x18] sm:$0xff]
  %v1252 = vld [vmem:[%s6 + $0x20] sm:$0xff]
  %v1253 = vld [vmem:[%s6 + $0x28] sm:$0xff]
  %v1254 = vld [vmem:[%s6 + $0x30] sm:$0xff]
  %v1255 = vld [vmem:[%s6 + $0x38] sm:$0xff]
  %v1256 = vld [vmem:[%s6 + $0x40] sm:$0xff]
  %v1257 = vld [vmem:[%s6 + $0x48] sm:$0xff]
  %v1258 = vld [vmem:[%s6 + $0x50] sm:$0xff]
  %v1259 = vld [vmem:[%s6 + $0x58] sm:$0xff]
  %v1260 = vld [vmem:[%s6 + $0x60] sm:$0xff]
  %v1261 = vld [vmem:[%s6 + $0x68] sm:$0xff]
  %v1262 = vld [vmem:[%s6 + $0x70] sm:$0xff]
  %v1263 = vld [vmem:[%s6 + $0x78] sm:$0xff]
  %v1264 = vld [vmem:[%s6 + $0x80] sm:$0xff]
  %v1265 = vld [vmem:[%s6 + $0x88] sm:$0xff]
  %v1266 = vld [vmem:[%s6 + $0x90] sm:$0xff]
  %v1267 = vld [vmem:[%s6 + $0x98] sm:$0xff]
  %v1268 = vld [vmem:[%s6 + $0xa0] sm:$0xff]
  %v1269 = vld [vmem:[%s6 + $0xa8] sm:$0xff]
  %v1270 = vld [vmem:[%s6 + $0xb0] sm:$0xff]
  %v1271 = vld [vmem:[%s6 + $0xb8] sm:$0xff]
  %v1272 = vld [vmem:[%s6 + $0xc0] sm:$0xff]
  %v1273 = vld [vmem:[%s6 + $0xc8] sm:$0xff]
  %v1274 = vld [vmem:[%s6 + $0xd0] sm:$0xff]
  %v1275 = vld [vmem:[%s6 + $0xd8] sm:$0xff]
  %v1276 = vld [vmem:[%s6 + $0xe0] sm:$0xff]
  %v1277 = vld [vmem:[%s6 + $0xe8] sm:$0xff]
  %v1278 = vld [vmem:[%s6 + $0xf0] sm:$0xff]
  %v1279 = vld [vmem:[%s6 + $0xf8] sm:$0xff]
  %v1280 = vld [vmem:[%s6 + $0x100] sm:$0xff]
  %v1281 = vld [vmem:[%s6 + $0x108] sm:$0xff]
  %v1282 = vld [vmem:[%s6 + $0x110] sm:$0xff]
  %v1283 = vld [vmem:[%s6 + $0x118] sm:$0xff]
  %v1284 = vld [vmem:[%s6 + $0x120] sm:$0xff]
  %v1285 = vld [vmem:[%s6 + $0x128] sm:$0xff]
  %v1286 = vld [vmem:[%s6 + $0x130] sm:$0xff]
  %v1287 = vld [vmem:[%s6 + $0x138] sm:$0xff]
  %v1288 = vld [vmem:[%s6 + $0x140] sm:$0xff]
  %v1289 = vld [vmem:[%s6 + $0x148] sm:$0xff]
  %v1290 = vld [vmem:[%s6 + $0x150] sm:$0xff]
  %v1291 = vld [vmem:[%s6 + $0x158] sm:$0xff]
  %v1292 = vld [vmem:[%s6 + $0x160] sm:$0xff]
  %v1293 = vld [vmem:[%s6 + $0x168] sm:$0xff]
  %v1294 = vld [vmem:[%s6 + $0x170] sm:$0xff]
  %v1295 = vld [vmem:[%s6 + $0x178] sm:$0xff]
  %v1296 = vld [vmem:[%s6 + $0x180] sm:$0xff]
  %v1297 = vld [vmem:[%s6 + $0x188] sm:$0xff]
  %v1298 = vld [vmem:[%s6 + $0x190] sm:$0xff]
  %v1299 = vld [vmem:[%s6 + $0x198] sm:$0xff]
  %v1300 = vld [vmem:[%s6 + $0x1a0] sm:$0xff]
  %v1301 = vld [vmem:[%s6 + $0x1a8] sm:$0xff]
  %v1302 = vld [vmem:[%s6 + $0x1b0] sm:$0xff]
  %v1303 = vld [vmem:[%s6 + $0x1b8] sm:$0xff]
  %v1304 = vld [vmem:[%s6 + $0x1c0] sm:$0xff]
  %v1305 = vld [vmem:[%s6 + $0x1c8] sm:$0xff]
  %v1306 = vld [vmem:[%s6 + $0x1d0] sm:$0xff]
  %v1307 = vld [vmem:[%s6 + $0x1d8] sm:$0xff]
  %v1308 = vld [vmem:[%s6 + $0x1e0] sm:$0xff]
  %v1309 = vld [vmem:[%s6 + $0x1e8] sm:$0xff]
  %v1310 = vld [vmem:[%s6 + $0x1f0] sm:$0xff]
  %v1311 = vld [vmem:[%s6 + $0x1f8] sm:$0xff]
  %v1312 = vld [vmem:[%s6 + $0x200] sm:$0xff]
  %v1313 = vld [vmem:[%s6 + $0x208] sm:$0xff]
  %v1314 = vld [vmem:[%s6 + $0x210] sm:$0xff]
  %v1315 = vld [vmem:[%s6 + $0x218] sm:$0xff]
  %v1316 = vld [vmem:[%s6 + $0x220] sm:$0xff]
  %v1317 = vld [vmem:[%s6 + $0x228] sm:$0xff]
  %v1318 = vld [vmem:[%s6 + $0x230] sm:$0xff]
  %v1319 = vld [vmem:[%s6 + $0x238] sm:$0xff]
  %v1320 = vld [vmem:[%s6 + $0x240] sm:$0xff]
  %v1321 = vld [vmem:[%s6 + $0x248] sm:$0xff]
  %v1322 = vld [vmem:[%s6 + $0x250] sm:$0xff]
  %v1323 = vld [vmem:[%s6 + $0x258] sm:$0xff]
  %v1324 = vld [vmem:[%s6 + $0x260] sm:$0xff]
  %v1325 = vld [vmem:[%s6 + $0x268] sm:$0xff]
  %v1326 = vld [vmem:[%s6 + $0x270] sm:$0xff]
  %v1327 = vld [vmem:[%s6 + $0x278] sm:$0xff]
  %v1328 = vld [vmem:[%s7] sm:$0x1]
  %v1330 = vlaneseq
  %v1331 = vshrl.u32 %v1330, 7
  %v1332 = vsub.s32 0, %v1331
  %v1333 = vrot.slane %v1328, %v1332
  %1335 = vmatprep.subr.mxu0 0.0
  %1336 = vmatpush1.msra.mxu0 %v1263
  %1337 = vmatprep.subr.mxu0 0.0
  %1338 = vmatpush1.msra.mxu0 %v1262
  %1339 = vmatprep.subr.mxu0 0.0
  %1340 = vmatpush1.msra.mxu0 %v1261
  %1341 = vmatprep.subr.mxu0 0.0
  %1342 = vmatpush1.msra.mxu0 %v1260
  %1343 = vmatprep.subr.mxu0 0.0
  %1344 = vmatpush1.msra.mxu0 %v1259
  %1345 = vmatprep.subr.mxu0 0.0
  %1346 = vmatpush1.msra.mxu0 %v1258
  %1347 = vmatprep.subr.mxu0 0.0
  %1348 = vmatpush1.msra.mxu0 %v1257
  %1349 = vmatprep.subr.mxu0 0.0
  %1350 = vmatpush1.msra.mxu0 %v1256
  %1351 = vmatprep.subr.mxu0 0.0
  %1352 = vmatpush1.msra.mxu0 %v1255
  %1353 = vmatprep.subr.mxu0 0.0
  %1354 = vmatpush1.msra.mxu0 %v1254
  %1355 = vmatprep.subr.mxu0 0.0
  %1356 = vmatpush1.msra.mxu0 %v1253
  %1357 = vmatprep.subr.mxu0 0.0
  %1358 = vmatpush1.msra.mxu0 %v1252
  %1359 = vmatprep.subr.mxu0 0.0
  %1360 = vmatpush1.msra.mxu0 %v1251
  %1361 = vmatprep.subr.mxu0 0.0
  %1362 = vmatpush1.msra.mxu0 %v1250
  %1363 = vmatprep.subr.mxu0 0.0
  %1364 = vmatpush1.msra.mxu0 %v1249
  %1365 = vmatprep.subr.mxu0 0.0
  %1366 = vmatpush1.msra.mxu0 %v1248
  %1367 = vmatprep.subr.mxu0 0.0
  %1368 = vmatpush2.msra.mxu0 %v1279
  %1369 = vmatprep.subr.mxu0 0.0
  %1370 = vmatpush2.msra.mxu0 %v1278
  %1371 = vmatprep.subr.mxu0 0.0
  %1372 = vmatpush2.msra.mxu0 %v1277
  %1373 = vmatprep.subr.mxu0 0.0
  %1374 = vmatpush2.msra.mxu0 %v1276
  %1375 = vmatprep.subr.mxu0 0.0
  %1376 = vmatpush2.msra.mxu0 %v1275
  %1377 = vmatprep.subr.mxu0 0.0
  %1378 = vmatpush2.msra.mxu0 %v1274
  %1379 = vmatprep.subr.mxu0 0.0
  %1380 = vmatpush2.msra.mxu0 %v1273
  %1381 = vmatprep.subr.mxu0 0.0
  %1382 = vmatpush2.msra.mxu0 %v1272
  %1383 = vmatprep.subr.mxu0 0.0
  %1384 = vmatpush2.msra.mxu0 %v1271
  %1385 = vmatprep.subr.mxu0 0.0
  %1386 = vmatpush2.msra.mxu0 %v1270
  %1387 = vmatprep.subr.mxu0 0.0
  %1388 = vmatpush2.msra.mxu0 %v1269
  %1389 = vmatprep.subr.mxu0 0.0
  %1390 = vmatpush2.msra.mxu0 %v1268
  %1391 = vmatprep.subr.mxu0 0.0
  %1392 = vmatpush2.msra.mxu0 %v1267
  %1393 = vmatprep.subr.mxu0 0.0
  %1394 = vmatpush2.msra.mxu0 %v1266
  %1395 = vmatprep.subr.mxu0 0.0
  %1396 = vmatpush2.msra.mxu0 %v1265
  %1397 = vmatprep.subr.mxu0 0.0
  %1398 = vmatpush2.msra.mxu0 %v1264
  %1399 = vmatprep.mubr.f32.mxu0 %v1239
  %1400 = vmatmul.mubr.f32.gmra.mxu0 %v1238
  %v1401 = vpop.f32.mrf.mxu0
  %v1402 = vadd.f32 %v1333, %v1401
  %v1403 = vpop.f32.mrf.mxu0
  %1404 = vmatprep.mubr.f32.mxu0 %v1244
  %1405 = vmatmul.mubr.f32.gmra.mxu0 %v1243
  %v1406 = vpop.f32.mrf.mxu0
  %v1407 = vadd.f32 %v1333, %v1406
  %v1408 = vpop.f32.mrf.mxu0
  %1409 = vdwg.mxu0
  %1410 = vmatprep.subr.mxu0 0.0
  %1411 = vmatpush1.msra.mxu0 %v1295
  %1412 = vmatprep.subr.mxu0 0.0
  %1413 = vmatpush1.msra.mxu0 %v1294
  %1414 = vmatprep.subr.mxu0 0.0
  %1415 = vmatpush1.msra.mxu0 %v1293
  %1416 = vmatprep.subr.mxu0 0.0
  %1417 = vmatpush1.msra.mxu0 %v1292
  %1418 = vmatprep.subr.mxu0 0.0
  %1419 = vmatpush1.msra.mxu0 %v1291
  %1420 = vmatprep.subr.mxu0 0.0
  %1421 = vmatpush1.msra.mxu0 %v1290
  %1422 = vmatprep.subr.mxu0 0.0
  %1423 = vmatpush1.msra.mxu0 %v1289
  %1424 = vmatprep.subr.mxu0 0.0
  %1425 = vmatpush1.msra.mxu0 %v1288
  %1426 = vmatprep.subr.mxu0 0.0
  %1427 = vmatpush1.msra.mxu0 %v1287
  %1428 = vmatprep.subr.mxu0 0.0
  %1429 = vmatpush1.msra.mxu0 %v1286
  %1430 = vmatprep.subr.mxu0 0.0
  %1431 = vmatpush1.msra.mxu0 %v1285
  %1432 = vmatprep.subr.mxu0 0.0
  %1433 = vmatpush1.msra.mxu0 %v1284
  %1434 = vmatprep.subr.mxu0 0.0
  %1435 = vmatpush1.msra.mxu0 %v1283
  %1436 = vmatprep.subr.mxu0 0.0
  %1437 = vmatpush1.msra.mxu0 %v1282
  %1438 = vmatprep.subr.mxu0 0.0
  %1439 = vmatpush1.msra.mxu0 %v1281
  %1440 = vmatprep.subr.mxu0 0.0
  %1441 = vmatpush1.msra.mxu0 %v1280
  %1442 = vmatprep.subr.mxu0 0.0
  %1443 = vmatpush2.msra.mxu0 %v1311
  %1444 = vmatprep.subr.mxu0 0.0
  %1445 = vmatpush2.msra.mxu0 %v1310
  %1446 = vmatprep.subr.mxu0 0.0
  %1447 = vmatpush2.msra.mxu0 %v1309
  %1448 = vmatprep.subr.mxu0 0.0
  %1449 = vmatpush2.msra.mxu0 %v1308
  %1450 = vmatprep.subr.mxu0 0.0
  %1451 = vmatpush2.msra.mxu0 %v1307
  %1452 = vmatprep.subr.mxu0 0.0
  %1453 = vmatpush2.msra.mxu0 %v1306
  %1454 = vmatprep.subr.mxu0 0.0
  %1455 = vmatpush2.msra.mxu0 %v1305
  %1456 = vmatprep.subr.mxu0 0.0
  %1457 = vmatpush2.msra.mxu0 %v1304
  %1458 = vmatprep.subr.mxu0 0.0
  %1459 = vmatpush2.msra.mxu0 %v1303
  %1460 = vmatprep.subr.mxu0 0.0
  %1461 = vmatpush2.msra.mxu0 %v1302
  %1462 = vmatprep.subr.mxu0 0.0
  %1463 = vmatpush2.msra.mxu0 %v1301
  %1464 = vmatprep.subr.mxu0 0.0
  %1465 = vmatpush2.msra.mxu0 %v1300
  %1466 = vmatprep.subr.mxu0 0.0
  %1467 = vmatpush2.msra.mxu0 %v1299
  %1468 = vmatprep.subr.mxu0 0.0
  %1469 = vmatpush2.msra.mxu0 %v1298
  %1470 = vmatprep.subr.mxu0 0.0
  %1471 = vmatpush2.msra.mxu0 %v1297
  %1472 = vmatprep.subr.mxu0 0.0
  %1473 = vmatpush2.msra.mxu0 %v1296
  %1474 = vmatprep.mubr.f32.mxu0 %v1241
  %1475 = vmatmul.mubr.f32.gmra.mxu0 %v1240
  %v1476 = vpop.f32.mrf.mxu0
  %v1477 = vadd.f32 %v1402, %v1476
  %v1478 = vpop.f32.mrf.mxu0
  %1479 = vmatprep.mubr.f32.mxu0 %v1246
  %1480 = vmatmul.mubr.f32.gmra.mxu0 %v1245
  %v1481 = vpop.f32.mrf.mxu0
  %v1482 = vadd.f32 %v1407, %v1481
  %v1483 = vpop.f32.mrf.mxu0
  %1484 = vdwg.mxu0
  %1485 = vmatprep.subr.mxu0 0.0
  %1486 = vmatpush1.msra.mxu0 %v1327
  %1487 = vmatprep.subr.mxu0 0.0
  %1488 = vmatpush1.msra.mxu0 %v1326
  %1489 = vmatprep.subr.mxu0 0.0
  %1490 = vmatpush1.msra.mxu0 %v1325
  %1491 = vmatprep.subr.mxu0 0.0
  %1492 = vmatpush1.msra.mxu0 %v1324
  %1493 = vmatprep.subr.mxu0 0.0
  %1494 = vmatpush1.msra.mxu0 %v1323
  %1495 = vmatprep.subr.mxu0 0.0
  %1496 = vmatpush1.msra.mxu0 %v1322
  %1497 = vmatprep.subr.mxu0 0.0
  %1498 = vmatpush1.msra.mxu0 %v1321
  %1499 = vmatprep.subr.mxu0 0.0
  %1500 = vmatpush1.msra.mxu0 %v1320
  %1501 = vmatprep.subr.mxu0 0.0
  %1502 = vmatpush1.msra.mxu0 %v1319
  %1503 = vmatprep.subr.mxu0 0.0
  %1504 = vmatpush1.msra.mxu0 %v1318
  %1505 = vmatprep.subr.mxu0 0.0
  %1506 = vmatpush1.msra.mxu0 %v1317
  %1507 = vmatprep.subr.mxu0 0.0
  %1508 = vmatpush1.msra.mxu0 %v1316
  %1509 = vmatprep.subr.mxu0 0.0
  %1510 = vmatpush1.msra.mxu0 %v1315
  %1511 = vmatprep.subr.mxu0 0.0
  %1512 = vmatpush1.msra.mxu0 %v1314
  %1513 = vmatprep.subr.mxu0 0.0
  %1514 = vmatpush1.msra.mxu0 %v1313
  %1515 = vmatprep.subr.mxu0 0.0
  %1516 = vmatpush1.msra.mxu0 %v1312
  %1517 = vmatprep.subr.mxu0 0.0
  %1518 = vmatpush2.msra.mxu0 0.0
  %1519 = vmatprep.subr.mxu0 0.0
  %1520 = vmatpush2.msra.mxu0 0.0
  %1521 = vmatprep.subr.mxu0 0.0
  %1522 = vmatpush2.msra.mxu0 0.0
  %1523 = vmatprep.subr.mxu0 0.0
  %1524 = vmatpush2.msra.mxu0 0.0
  %1525 = vmatprep.subr.mxu0 0.0
  %1526 = vmatpush2.msra.mxu0 0.0
  %1527 = vmatprep.subr.mxu0 0.0
  %1528 = vmatpush2.msra.mxu0 0.0
  %1529 = vmatprep.subr.mxu0 0.0
  %1530 = vmatpush2.msra.mxu0 0.0
  %1531 = vmatprep.subr.mxu0 0.0
  %1532 = vmatpush2.msra.mxu0 0.0
  %1533 = vmatprep.subr.mxu0 0.0
  %1534 = vmatpush2.msra.mxu0 0.0
  %1535 = vmatprep.subr.mxu0 0.0
  %1536 = vmatpush2.msra.mxu0 0.0
  %1537 = vmatprep.subr.mxu0 0.0
  %1538 = vmatpush2.msra.mxu0 0.0
  %1539 = vmatprep.subr.mxu0 0.0
  %1540 = vmatpush2.msra.mxu0 0.0
  %1541 = vmatprep.subr.mxu0 0.0
  %1542 = vmatpush2.msra.mxu0 0.0
  %1543 = vmatprep.subr.mxu0 0.0
  %1544 = vmatpush2.msra.mxu0 0.0
  %1545 = vmatprep.subr.mxu0 0.0
  %1546 = vmatpush2.msra.mxu0 0.0
  %1547 = vmatprep.subr.mxu0 0.0
  %1548 = vmatpush2.msra.mxu0 0.0
  %1549 = vmatprep.mubr.f32.mxu0 0.0
  %1550 = vmatmul.mubr.f32.gmra.mxu0 %v1242
  %v1551 = vpop.f32.mrf.mxu0
  %v1552 = vadd.f32 %v1477, %v1551
  %v1553 = vpop.f32.mrf.mxu0
  %1554 = vmatprep.mubr.f32.mxu0 0.0
  %1555 = vmatmul.mubr.f32.gmra.mxu0 %v1247
  %v1556 = vpop.f32.mrf.mxu0
  %v1557 = vadd.f32 %v1482, %v1556
  %v1558 = vpop.f32.mrf.mxu0
  %1559 = vdwg.mxu0
  %v1560 = vmax.f32 %v1552, 0.0
  %v1561 = vmax.f32 %v1557, 0.0
  %1562 = vst [vmem:[#allocation6] sm:$0xff] 0.0
  %1563 = vst [vmem:[#allocation6 + $0x8] sm:$0xff] 0.0
  %1564 = vst [vmem:[#allocation6 + $0x10] sm:$0xff] 0.0
  %1565 = vst [vmem:[#allocation6 + $0x18] sm:$0xff] 0.0
  %vm1566 = vcmask 516096
  %1567 = vst.msk [vmem:[#allocation6] sm:$0x1] %vm1566, %v1560
  %v1569 = vrot.slane %v1560, 1
  %1570 = vrot.lane.b32.xlu0 %v1569, 64
  %v1571 = vpop.permute.xlu0 %1570
  %vm1573 = vcmask 1040896
  %1574 = vst.msk [vmem:[#allocation6] sm:$0x1] %vm1573, %v1571
  %v1575 = vrot.slane %v1560, 2
  %1577 = vst.msk [vmem:[#allocation6 + $0x8] sm:$0x1] %vm1566, %v1575
  %v1578 = vrot.slane %v1560, 3
  %1579 = vrot.lane.b32.xlu0 %v1578, 64
  %v1580 = vpop.permute.xlu0 %1579
  %1582 = vst.msk [vmem:[#allocation6 + $0x8] sm:$0x1] %vm1573, %v1580
  %v1583 = vrot.slane %v1560, 4
  %1585 = vst.msk [vmem:[#allocation6 + $0x10] sm:$0x1] %vm1566, %v1583
  %v1586 = vrot.slane %v1560, 5
  %1587 = vrot.lane.b32.xlu0 %v1586, 64
  %v1588 = vpop.permute.xlu0 %1587
  %1590 = vst.msk [vmem:[#allocation6 + $0x10] sm:$0x1] %vm1573, %v1588
  %v1591 = vrot.slane %v1560, 6
  %1593 = vst.msk [vmem:[#allocation6 + $0x18] sm:$0x1] %vm1566, %v1591
  %v1594 = vrot.slane %v1560, 7
  %1595 = vrot.lane.b32.xlu0 %v1594, 64
  %v1596 = vpop.permute.xlu0 %1595
  %1598 = vst.msk [vmem:[#allocation6 + $0x18] sm:$0x1] %vm1573, %v1596
  %1599 = vst.msk [vmem:[#allocation6 + $0x1] sm:$0x1] %vm1566, %v1561
  %v1601 = vrot.slane %v1561, 1
  %1602 = vrot.lane.b32.xlu0 %v1601, 64
  %v1603 = vpop.permute.xlu0 %1602
  %1605 = vst.msk [vmem:[#allocation6 + $0x1] sm:$0x1] %vm1573, %v1603
  %v1606 = vrot.slane %v1561, 2
  %1608 = vst.msk [vmem:[#allocation6 + $0x9] sm:$0x1] %vm1566, %v1606
  %v1609 = vrot.slane %v1561, 3
  %1610 = vrot.lane.b32.xlu0 %v1609, 64
  %v1611 = vpop.permute.xlu0 %1610
  %1613 = vst.msk [vmem:[#allocation6 + $0x9] sm:$0x1] %vm1573, %v1611
  %v1614 = vrot.slane %v1561, 4
  %1616 = vst.msk [vmem:[#allocation6 + $0x11] sm:$0x1] %vm1566, %v1614
  %v1617 = vrot.slane %v1561, 5
  %1618 = vrot.lane.b32.xlu0 %v1617, 64
  %v1619 = vpop.permute.xlu0 %1618
  %1621 = vst.msk [vmem:[#allocation6 + $0x11] sm:$0x1] %vm1573, %v1619
  %v1622 = vrot.slane %v1561, 6
  %1624 = vst.msk [vmem:[#allocation6 + $0x19] sm:$0x1] %vm1566, %v1622
  %v1625 = vrot.slane %v1561, 7
  %1626 = vrot.lane.b32.xlu0 %v1625, 64
  %v1627 = vpop.permute.xlu0 %1626
  %1629 = vst.msk [vmem:[#allocation6 + $0x19] sm:$0x1] %vm1573, %v1627
  %v1630 = vld [vmem:[#allocation6] sm:$0xff]
  %v1631 = vld [vmem:[#allocation6 + $0x8] sm:$0xff]
  %v1632 = vld [vmem:[#allocation6 + $0x10] sm:$0xff]
  %v1633 = vld [vmem:[#allocation6 + $0x18] sm:$0xff]
  %v1634 = vld [vmem:[%s8] sm:$0xff]
  %v1635 = vld [vmem:[%s8 + $0x8] sm:$0xff]
  %v1636 = vld [vmem:[%s8 + $0x10] sm:$0xff]
  %v1637 = vld [vmem:[%s8 + $0x18] sm:$0xff]
  %v1638 = vld [vmem:[%s8 + $0x20] sm:$0xff]
  %v1639 = vld [vmem:[%s8 + $0x28] sm:$0xff]
  %v1640 = vld [vmem:[%s8 + $0x30] sm:$0xff]
  %v1641 = vld [vmem:[%s8 + $0x38] sm:$0xff]
  %v1642 = vld [vmem:[%s8 + $0x40] sm:$0xff]
  %v1643 = vld [vmem:[%s8 + $0x48] sm:$0xff]
  %v1644 = vld [vmem:[%s8 + $0x50] sm:$0xff]
  %v1645 = vld [vmem:[%s8 + $0x58] sm:$0xff]
  %v1646 = vld [vmem:[%s8 + $0x60] sm:$0xff]
  %v1647 = vld [vmem:[%s8 + $0x68] sm:$0xff]
  %v1648 = vld [vmem:[%s8 + $0x70] sm:$0xff]
  %v1649 = vld [vmem:[%s8 + $0x78] sm:$0xff]
  %v1650 = vld [vmem:[%s8 + $0x80] sm:$0xff]
  %v1651 = vld [vmem:[%s8 + $0x88] sm:$0xff]
  %v1652 = vld [vmem:[%s8 + $0x90] sm:$0xff]
  %v1653 = vld [vmem:[%s8 + $0x98] sm:$0xff]
  %v1654 = vld [vmem:[%s8 + $0xa0] sm:$0xff]
  %v1655 = vld [vmem:[%s8 + $0xa8] sm:$0xff]
  %v1656 = vld [vmem:[%s8 + $0xb0] sm:$0xff]
  %v1657 = vld [vmem:[%s8 + $0xb8] sm:$0xff]
  %v1658 = vld [vmem:[%s8 + $0xc0] sm:$0xff]
  %v1659 = vld [vmem:[%s8 + $0xc8] sm:$0xff]
  %v1660 = vld [vmem:[%s8 + $0xd0] sm:$0xff]
  %v1661 = vld [vmem:[%s8 + $0xd8] sm:$0xff]
  %v1662 = vld [vmem:[%s8 + $0xe0] sm:$0xff]
  %v1663 = vld [vmem:[%s8 + $0xe8] sm:$0xff]
  %v1664 = vld [vmem:[%s8 + $0xf0] sm:$0xff]
  %v1665 = vld [vmem:[%s8 + $0xf8] sm:$0xff]
  %v1666 = vld [vmem:[%s8 + $0x100] sm:$0xff]
  %v1667 = vld [vmem:[%s8 + $0x108] sm:$0xff]
  %v1668 = vld [vmem:[%s8 + $0x110] sm:$0xff]
  %v1669 = vld [vmem:[%s8 + $0x118] sm:$0xff]
  %v1670 = vld [vmem:[%s8 + $0x120] sm:$0xff]
  %v1671 = vld [vmem:[%s8 + $0x128] sm:$0xff]
  %v1672 = vld [vmem:[%s8 + $0x130] sm:$0xff]
  %v1673 = vld [vmem:[%s8 + $0x138] sm:$0xff]
  %v1674 = vld [vmem:[%s8 + $0x140] sm:$0xff]
  %v1675 = vld [vmem:[%s8 + $0x148] sm:$0xff]
  %v1676 = vld [vmem:[%s8 + $0x150] sm:$0xff]
  %v1677 = vld [vmem:[%s8 + $0x158] sm:$0xff]
  %v1678 = vld [vmem:[%s8 + $0x160] sm:$0xff]
  %v1679 = vld [vmem:[%s8 + $0x168] sm:$0xff]
  %v1680 = vld [vmem:[%s8 + $0x170] sm:$0xff]
  %v1681 = vld [vmem:[%s8 + $0x178] sm:$0xff]
  %v1682 = vld [vmem:[%s8 + $0x180] sm:$0xff]
  %v1683 = vld [vmem:[%s8 + $0x188] sm:$0xff]
  %v1684 = vld [vmem:[%s8 + $0x190] sm:$0xff]
  %v1685 = vld [vmem:[%s8 + $0x198] sm:$0xff]
  %v1686 = vld [vmem:[%s8 + $0x1a0] sm:$0xff]
  %v1687 = vld [vmem:[%s8 + $0x1a8] sm:$0xff]
  %v1688 = vld [vmem:[%s8 + $0x1b0] sm:$0xff]
  %v1689 = vld [vmem:[%s8 + $0x1b8] sm:$0xff]
  %v1690 = vld [vmem:[%s8 + $0x1c0] sm:$0xff]
  %v1691 = vld [vmem:[%s8 + $0x1c8] sm:$0xff]
  %v1692 = vld [vmem:[%s8 + $0x1d0] sm:$0xff]
  %v1693 = vld [vmem:[%s8 + $0x1d8] sm:$0xff]
  %v1694 = vld [vmem:[%s8 + $0x1e0] sm:$0xff]
  %v1695 = vld [vmem:[%s8 + $0x1e8] sm:$0xff]
  %v1696 = vld [vmem:[%s8 + $0x1f0] sm:$0xff]
  %v1697 = vld [vmem:[%s8 + $0x1f8] sm:$0xff]
  %v1698 = vld [vmem:[%s8 + $0x200] sm:$0xff]
  %v1699 = vld [vmem:[%s8 + $0x208] sm:$0xff]
  %v1700 = vld [vmem:[%s8 + $0x210] sm:$0xff]
  %v1701 = vld [vmem:[%s8 + $0x218] sm:$0xff]
  %v1702 = vld [vmem:[%s8 + $0x220] sm:$0xff]
  %v1703 = vld [vmem:[%s8 + $0x228] sm:$0xff]
  %v1704 = vld [vmem:[%s8 + $0x230] sm:$0xff]
  %v1705 = vld [vmem:[%s8 + $0x238] sm:$0xff]
  %v1706 = vld [vmem:[%s8 + $0x240] sm:$0xff]
  %v1707 = vld [vmem:[%s8 + $0x248] sm:$0xff]
  %v1708 = vld [vmem:[%s8 + $0x250] sm:$0xff]
  %v1709 = vld [vmem:[%s8 + $0x258] sm:$0xff]
  %v1710 = vld [vmem:[%s8 + $0x260] sm:$0xff]
  %v1711 = vld [vmem:[%s8 + $0x268] sm:$0xff]
  %v1712 = vld [vmem:[%s8 + $0x270] sm:$0xff]
  %v1713 = vld [vmem:[%s8 + $0x278] sm:$0xff]
  %v1714 = vld [vmem:[%s8 + $0x280] sm:$0xff]
  %v1715 = vld [vmem:[%s8 + $0x288] sm:$0xff]
  %v1716 = vld [vmem:[%s8 + $0x290] sm:$0xff]
  %v1717 = vld [vmem:[%s8 + $0x298] sm:$0xff]
  %v1718 = vld [vmem:[%s8 + $0x2a0] sm:$0xff]
  %v1719 = vld [vmem:[%s8 + $0x2a8] sm:$0xff]
  %v1720 = vld [vmem:[%s8 + $0x2b0] sm:$0xff]
  %v1721 = vld [vmem:[%s8 + $0x2b8] sm:$0xff]
  %v1722 = vld [vmem:[%s8 + $0x2c0] sm:$0xff]
  %v1723 = vld [vmem:[%s8 + $0x2c8] sm:$0xff]
  %v1724 = vld [vmem:[%s8 + $0x2d0] sm:$0xff]
  %v1725 = vld [vmem:[%s8 + $0x2d8] sm:$0xff]
  %v1726 = vld [vmem:[%s8 + $0x2e0] sm:$0xff]
  %v1727 = vld [vmem:[%s8 + $0x2e8] sm:$0xff]
  %v1728 = vld [vmem:[%s8 + $0x2f0] sm:$0xff]
  %v1729 = vld [vmem:[%s8 + $0x2f8] sm:$0xff]
  %v1730 = vld [vmem:[%s8 + $0x300] sm:$0xff]
  %v1731 = vld [vmem:[%s8 + $0x308] sm:$0xff]
  %v1732 = vld [vmem:[%s8 + $0x310] sm:$0xff]
  %v1733 = vld [vmem:[%s8 + $0x318] sm:$0xff]
  %v1734 = vld [vmem:[%s8 + $0x320] sm:$0xff]
  %v1735 = vld [vmem:[%s8 + $0x328] sm:$0xff]
  %v1736 = vld [vmem:[%s8 + $0x330] sm:$0xff]
  %v1737 = vld [vmem:[%s8 + $0x338] sm:$0xff]
  %v1738 = vld [vmem:[%s8 + $0x340] sm:$0xff]
  %v1739 = vld [vmem:[%s8 + $0x348] sm:$0xff]
  %v1740 = vld [vmem:[%s8 + $0x350] sm:$0xff]
  %v1741 = vld [vmem:[%s8 + $0x358] sm:$0xff]
  %v1742 = vld [vmem:[%s8 + $0x360] sm:$0xff]
  %v1743 = vld [vmem:[%s8 + $0x368] sm:$0xff]
  %v1744 = vld [vmem:[%s8 + $0x370] sm:$0xff]
  %v1745 = vld [vmem:[%s8 + $0x378] sm:$0xff]
  %v1746 = vld [vmem:[%s8 + $0x380] sm:$0xff]
  %v1747 = vld [vmem:[%s8 + $0x388] sm:$0xff]
  %v1748 = vld [vmem:[%s8 + $0x390] sm:$0xff]
  %v1749 = vld [vmem:[%s8 + $0x398] sm:$0xff]
  %v1750 = vld [vmem:[%s8 + $0x3a0] sm:$0xff]
  %v1751 = vld [vmem:[%s8 + $0x3a8] sm:$0xff]
  %v1752 = vld [vmem:[%s8 + $0x3b0] sm:$0xff]
  %v1753 = vld [vmem:[%s8 + $0x3b8] sm:$0xff]
  %v1754 = vld [vmem:[%s8 + $0x3c0] sm:$0xff]
  %v1755 = vld [vmem:[%s8 + $0x3c8] sm:$0xff]
  %v1756 = vld [vmem:[%s8 + $0x3d0] sm:$0xff]
  %v1757 = vld [vmem:[%s8 + $0x3d8] sm:$0xff]
  %v1758 = vld [vmem:[%s8 + $0x3e0] sm:$0xff]
  %v1759 = vld [vmem:[%s8 + $0x3e8] sm:$0xff]
  %v1760 = vld [vmem:[%s8 + $0x3f0] sm:$0xff]
  %v1761 = vld [vmem:[%s8 + $0x3f8] sm:$0xff]
  %v1762 = vld [vmem:[%s8 + $0x400] sm:$0xff]
  %v1763 = vld [vmem:[%s8 + $0x408] sm:$0xff]
  %v1764 = vld [vmem:[%s8 + $0x410] sm:$0xff]
  %v1765 = vld [vmem:[%s8 + $0x418] sm:$0xff]
  %v1766 = vld [vmem:[%s8 + $0x420] sm:$0xff]
  %v1767 = vld [vmem:[%s8 + $0x428] sm:$0xff]
  %v1768 = vld [vmem:[%s8 + $0x430] sm:$0xff]
  %v1769 = vld [vmem:[%s8 + $0x438] sm:$0xff]
  %v1770 = vld [vmem:[%s8 + $0x440] sm:$0xff]
  %v1771 = vld [vmem:[%s8 + $0x448] sm:$0xff]
  %v1772 = vld [vmem:[%s8 + $0x450] sm:$0xff]
  %v1773 = vld [vmem:[%s8 + $0x458] sm:$0xff]
  %v1774 = vld [vmem:[%s8 + $0x460] sm:$0xff]
  %v1775 = vld [vmem:[%s8 + $0x468] sm:$0xff]
  %v1776 = vld [vmem:[%s8 + $0x470] sm:$0xff]
  %v1777 = vld [vmem:[%s8 + $0x478] sm:$0xff]
  %v1778 = vld [vmem:[%s8 + $0x480] sm:$0xff]
  %v1779 = vld [vmem:[%s8 + $0x488] sm:$0xff]
  %v1780 = vld [vmem:[%s8 + $0x490] sm:$0xff]
  %v1781 = vld [vmem:[%s8 + $0x498] sm:$0xff]
  %v1782 = vld [vmem:[%s8 + $0x4a0] sm:$0xff]
  %v1783 = vld [vmem:[%s8 + $0x4a8] sm:$0xff]
  %v1784 = vld [vmem:[%s8 + $0x4b0] sm:$0xff]
  %v1785 = vld [vmem:[%s8 + $0x4b8] sm:$0xff]
  %v1786 = vld [vmem:[%s8 + $0x4c0] sm:$0xff]
  %v1787 = vld [vmem:[%s8 + $0x4c8] sm:$0xff]
  %v1788 = vld [vmem:[%s8 + $0x4d0] sm:$0xff]
  %v1789 = vld [vmem:[%s8 + $0x4d8] sm:$0xff]
  %v1790 = vld [vmem:[%s8 + $0x4e0] sm:$0xff]
  %v1791 = vld [vmem:[%s8 + $0x4e8] sm:$0xff]
  %v1792 = vld [vmem:[%s8 + $0x4f0] sm:$0xff]
  %v1793 = vld [vmem:[%s8 + $0x4f8] sm:$0xff]
  %v1794 = vld [vmem:[%s8 + $0x500] sm:$0xff]
  %v1795 = vld [vmem:[%s8 + $0x508] sm:$0xff]
  %v1796 = vld [vmem:[%s8 + $0x510] sm:$0xff]
  %v1797 = vld [vmem:[%s8 + $0x518] sm:$0xff]
  %v1798 = vld [vmem:[%s8 + $0x520] sm:$0xff]
  %v1799 = vld [vmem:[%s8 + $0x528] sm:$0xff]
  %v1800 = vld [vmem:[%s8 + $0x530] sm:$0xff]
  %v1801 = vld [vmem:[%s8 + $0x538] sm:$0xff]
  %v1802 = vld [vmem:[%s8 + $0x540] sm:$0xff]
  %v1803 = vld [vmem:[%s8 + $0x548] sm:$0xff]
  %v1804 = vld [vmem:[%s8 + $0x550] sm:$0xff]
  %v1805 = vld [vmem:[%s8 + $0x558] sm:$0xff]
  %v1806 = vld [vmem:[%s8 + $0x560] sm:$0xff]
  %v1807 = vld [vmem:[%s8 + $0x568] sm:$0xff]
  %v1808 = vld [vmem:[%s8 + $0x570] sm:$0xff]
  %v1809 = vld [vmem:[%s8 + $0x578] sm:$0xff]
  %v1810 = vld [vmem:[%s8 + $0x580] sm:$0xff]
  %v1811 = vld [vmem:[%s8 + $0x588] sm:$0xff]
  %v1812 = vld [vmem:[%s8 + $0x590] sm:$0xff]
  %v1813 = vld [vmem:[%s8 + $0x598] sm:$0xff]
  %v1814 = vld [vmem:[%s8 + $0x5a0] sm:$0xff]
  %v1815 = vld [vmem:[%s8 + $0x5a8] sm:$0xff]
  %v1816 = vld [vmem:[%s8 + $0x5b0] sm:$0xff]
  %v1817 = vld [vmem:[%s8 + $0x5b8] sm:$0xff]
  %v1818 = vld [vmem:[%s8 + $0x5c0] sm:$0xff]
  %v1819 = vld [vmem:[%s8 + $0x5c8] sm:$0xff]
  %v1820 = vld [vmem:[%s8 + $0x5d0] sm:$0xff]
  %v1821 = vld [vmem:[%s8 + $0x5d8] sm:$0xff]
  %v1822 = vld [vmem:[%s8 + $0x5e0] sm:$0xff]
  %v1823 = vld [vmem:[%s8 + $0x5e8] sm:$0xff]
  %v1824 = vld [vmem:[%s8 + $0x5f0] sm:$0xff]
  %v1825 = vld [vmem:[%s8 + $0x5f8] sm:$0xff]
  %v1826 = vld [vmem:[%s8 + $0x600] sm:$0xff]
  %v1827 = vld [vmem:[%s8 + $0x608] sm:$0xff]
  %v1828 = vld [vmem:[%s8 + $0x610] sm:$0xff]
  %v1829 = vld [vmem:[%s8 + $0x618] sm:$0xff]
  %v1830 = vld [vmem:[%s8 + $0x620] sm:$0xff]
  %v1831 = vld [vmem:[%s8 + $0x628] sm:$0xff]
  %v1832 = vld [vmem:[%s8 + $0x630] sm:$0xff]
  %v1833 = vld [vmem:[%s8 + $0x638] sm:$0xff]
  %v1834 = vld [vmem:[%s8 + $0x640] sm:$0xff]
  %v1835 = vld [vmem:[%s8 + $0x648] sm:$0xff]
  %v1836 = vld [vmem:[%s8 + $0x650] sm:$0xff]
  %v1837 = vld [vmem:[%s8 + $0x658] sm:$0xff]
  %v1838 = vld [vmem:[%s8 + $0x660] sm:$0xff]
  %v1839 = vld [vmem:[%s8 + $0x668] sm:$0xff]
  %v1840 = vld [vmem:[%s8 + $0x670] sm:$0xff]
  %v1841 = vld [vmem:[%s8 + $0x678] sm:$0xff]
  %v1842 = vld [vmem:[%s8 + $0x680] sm:$0xff]
  %v1843 = vld [vmem:[%s8 + $0x688] sm:$0xff]
  %v1844 = vld [vmem:[%s8 + $0x690] sm:$0xff]
  %v1845 = vld [vmem:[%s8 + $0x698] sm:$0xff]
  %v1846 = vld [vmem:[%s8 + $0x6a0] sm:$0xff]
  %v1847 = vld [vmem:[%s8 + $0x6a8] sm:$0xff]
  %v1848 = vld [vmem:[%s8 + $0x6b0] sm:$0xff]
  %v1849 = vld [vmem:[%s8 + $0x6b8] sm:$0xff]
  %v1850 = vld [vmem:[%s8 + $0x6c0] sm:$0xff]
  %v1851 = vld [vmem:[%s8 + $0x6c8] sm:$0xff]
  %v1852 = vld [vmem:[%s8 + $0x6d0] sm:$0xff]
  %v1853 = vld [vmem:[%s8 + $0x6d8] sm:$0xff]
  %v1854 = vld [vmem:[%s8 + $0x6e0] sm:$0xff]
  %v1855 = vld [vmem:[%s8 + $0x6e8] sm:$0xff]
  %v1856 = vld [vmem:[%s8 + $0x6f0] sm:$0xff]
  %v1857 = vld [vmem:[%s8 + $0x6f8] sm:$0xff]
  %v1858 = vld [vmem:[%s8 + $0x700] sm:$0xff]
  %v1859 = vld [vmem:[%s8 + $0x708] sm:$0xff]
  %v1860 = vld [vmem:[%s8 + $0x710] sm:$0xff]
  %v1861 = vld [vmem:[%s8 + $0x718] sm:$0xff]
  %v1862 = vld [vmem:[%s8 + $0x720] sm:$0xff]
  %v1863 = vld [vmem:[%s8 + $0x728] sm:$0xff]
  %v1864 = vld [vmem:[%s8 + $0x730] sm:$0xff]
  %v1865 = vld [vmem:[%s8 + $0x738] sm:$0xff]
  %v1866 = vld [vmem:[%s8 + $0x740] sm:$0xff]
  %v1867 = vld [vmem:[%s8 + $0x748] sm:$0xff]
  %v1868 = vld [vmem:[%s8 + $0x750] sm:$0xff]
  %v1869 = vld [vmem:[%s8 + $0x758] sm:$0xff]
  %v1870 = vld [vmem:[%s8 + $0x760] sm:$0xff]
  %v1871 = vld [vmem:[%s8 + $0x768] sm:$0xff]
  %v1872 = vld [vmem:[%s8 + $0x770] sm:$0xff]
  %v1873 = vld [vmem:[%s8 + $0x778] sm:$0xff]
  %v1874 = vld [vmem:[%s8 + $0x780] sm:$0xff]
  %v1875 = vld [vmem:[%s8 + $0x788] sm:$0xff]
  %v1876 = vld [vmem:[%s8 + $0x790] sm:$0xff]
  %v1877 = vld [vmem:[%s8 + $0x798] sm:$0xff]
  %v1878 = vld [vmem:[%s8 + $0x7a0] sm:$0xff]
  %v1879 = vld [vmem:[%s8 + $0x7a8] sm:$0xff]
  %v1880 = vld [vmem:[%s8 + $0x7b0] sm:$0xff]
  %v1881 = vld [vmem:[%s8 + $0x7b8] sm:$0xff]
  %v1882 = vld [vmem:[%s8 + $0x7c0] sm:$0xff]
  %v1883 = vld [vmem:[%s8 + $0x7c8] sm:$0xff]
  %v1884 = vld [vmem:[%s8 + $0x7d0] sm:$0xff]
  %v1885 = vld [vmem:[%s8 + $0x7d8] sm:$0xff]
  %v1886 = vld [vmem:[%s8 + $0x7e0] sm:$0xff]
  %v1887 = vld [vmem:[%s8 + $0x7e8] sm:$0xff]
  %v1888 = vld [vmem:[%s8 + $0x7f0] sm:$0xff]
  %v1889 = vld [vmem:[%s8 + $0x7f8] sm:$0xff]
  %v1890 = vld [vmem:[%s9] sm:$0xf]
  %v1892 = vlaneseq
  %v1893 = vshrl.u32 %v1892, 7
  %v1894 = vsub.s32 0, %v1893
  %v1895 = vrot.slane %v1890, %v1894
  %v1896 = vlaneseq
  %v1897 = vshrl.u32 %v1896, 7
  %v1898 = vsub.s32 1, %v1897
  %v1899 = vrot.slane %v1890, %v1898
  %v1900 = vlaneseq
  %v1901 = vshrl.u32 %v1900, 7
  %v1902 = vsub.s32 2, %v1901
  %v1903 = vrot.slane %v1890, %v1902
  %v1904 = vlaneseq
  %v1905 = vshrl.u32 %v1904, 7
  %v1906 = vsub.s32 3, %v1905
  %v1907 = vrot.slane %v1890, %v1906
  %1912 = vmatprep.subr.mxu0 %v1695
  %1913 = vmatpush1.msra.mxu0 %v1694
  %1914 = vmatprep.subr.mxu0 %v1691
  %1915 = vmatpush1.msra.mxu0 %v1690
  %1916 = vmatprep.subr.mxu0 %v1687
  %1917 = vmatpush1.msra.mxu0 %v1686
  %1918 = vmatprep.subr.mxu0 %v1683
  %1919 = vmatpush1.msra.mxu0 %v1682
  %1920 = vmatprep.subr.mxu0 %v1679
  %1921 = vmatpush1.msra.mxu0 %v1678
  %1922 = vmatprep.subr.mxu0 %v1675
  %1923 = vmatpush1.msra.mxu0 %v1674
  %1924 = vmatprep.subr.mxu0 %v1671
  %1925 = vmatpush1.msra.mxu0 %v1670
  %1926 = vmatprep.subr.mxu0 %v1667
  %1927 = vmatpush1.msra.mxu0 %v1666
  %1928 = vmatprep.subr.mxu0 %v1663
  %1929 = vmatpush1.msra.mxu0 %v1662
  %1930 = vmatprep.subr.mxu0 %v1659
  %1931 = vmatpush1.msra.mxu0 %v1658
  %1932 = vmatprep.subr.mxu0 %v1655
  %1933 = vmatpush1.msra.mxu0 %v1654
  %1934 = vmatprep.subr.mxu0 %v1651
  %1935 = vmatpush1.msra.mxu0 %v1650
  %1936 = vmatprep.subr.mxu0 %v1647
  %1937 = vmatpush1.msra.mxu0 %v1646
  %1938 = vmatprep.subr.mxu0 %v1643
  %1939 = vmatpush1.msra.mxu0 %v1642
  %1940 = vmatprep.subr.mxu0 %v1639
  %1941 = vmatpush1.msra.mxu0 %v1638
  %1942 = vmatprep.subr.mxu0 %v1635
  %1943 = vmatpush1.msra.mxu0 %v1634
  %1944 = vmatprep.subr.mxu0 %v1759
  %1945 = vmatpush2.msra.mxu0 %v1758
  %1946 = vmatprep.subr.mxu0 %v1755
  %1947 = vmatpush2.msra.mxu0 %v1754
  %1948 = vmatprep.subr.mxu0 %v1751
  %1949 = vmatpush2.msra.mxu0 %v1750
  %1950 = vmatprep.subr.mxu0 %v1747
  %1951 = vmatpush2.msra.mxu0 %v1746
  %1952 = vmatprep.subr.mxu0 %v1743
  %1953 = vmatpush2.msra.mxu0 %v1742
  %1954 = vmatprep.subr.mxu0 %v1739
  %1955 = vmatpush2.msra.mxu0 %v1738
  %1956 = vmatprep.subr.mxu0 %v1735
  %1957 = vmatpush2.msra.mxu0 %v1734
  %1958 = vmatprep.subr.mxu0 %v1731
  %1959 = vmatpush2.msra.mxu0 %v1730
  %1960 = vmatprep.subr.mxu0 %v1727
  %1961 = vmatpush2.msra.mxu0 %v1726
  %1962 = vmatprep.subr.mxu0 %v1723
  %1963 = vmatpush2.msra.mxu0 %v1722
  %1964 = vmatprep.subr.mxu0 %v1719
  %1965 = vmatpush2.msra.mxu0 %v1718
  %1966 = vmatprep.subr.mxu0 %v1715
  %1967 = vmatpush2.msra.mxu0 %v1714
  %1968 = vmatprep.subr.mxu0 %v1711
  %1969 = vmatpush2.msra.mxu0 %v1710
  %1970 = vmatprep.subr.mxu0 %v1707
  %1971 = vmatpush2.msra.mxu0 %v1706
  %1972 = vmatprep.subr.mxu0 %v1703
  %1973 = vmatpush2.msra.mxu0 %v1702
  %1974 = vmatprep.subr.mxu0 %v1699
  %1975 = vmatpush2.msra.mxu0 %v1698
  %1976 = vmatprep.mubr.f32.mxu0 %v1631
  %1977 = vmatmul.mubr.f32.gmra.mxu0 %v1630
  %v1978 = vpop.f32.mrf.mxu0
  %v1979 = vadd.f32 %v1895, %v1978
  %v1980 = vpop.f32.mrf.mxu0
  %v1981 = vadd.f32 %v1899, %v1980
  %1982 = vdwg.mxu0
  %1983 = vmatprep.subr.mxu0 %v1823
  %1984 = vmatpush1.msra.mxu0 %v1822
  %1985 = vmatprep.subr.mxu0 %v1819
  %1986 = vmatpush1.msra.mxu0 %v1818
  %1987 = vmatprep.subr.mxu0 %v1815
  %1988 = vmatpush1.msra.mxu0 %v1814
  %1989 = vmatprep.subr.mxu0 %v1811
  %1990 = vmatpush1.msra.mxu0 %v1810
  %1991 = vmatprep.subr.mxu0 %v1807
  %1992 = vmatpush1.msra.mxu0 %v1806
  %1993 = vmatprep.subr.mxu0 %v1803
  %1994 = vmatpush1.msra.mxu0 %v1802
  %1995 = vmatprep.subr.mxu0 %v1799
  %1996 = vmatpush1.msra.mxu0 %v1798
  %1997 = vmatprep.subr.mxu0 %v1795
  %1998 = vmatpush1.msra.mxu0 %v1794
  %1999 = vmatprep.subr.mxu0 %v1791
  %2000 = vmatpush1.msra.mxu0 %v1790
  %2001 = vmatprep.subr.mxu0 %v1787
  %2002 = vmatpush1.msra.mxu0 %v1786
  %2003 = vmatprep.subr.mxu0 %v1783
  %2004 = vmatpush1.msra.mxu0 %v1782
  %2005 = vmatprep.subr.mxu0 %v1779
  %2006 = vmatpush1.msra.mxu0 %v1778
  %2007 = vmatprep.subr.mxu0 %v1775
  %2008 = vmatpush1.msra.mxu0 %v1774
  %2009 = vmatprep.subr.mxu0 %v1771
  %2010 = vmatpush1.msra.mxu0 %v1770
  %2011 = vmatprep.subr.mxu0 %v1767
  %2012 = vmatpush1.msra.mxu0 %v1766
  %2013 = vmatprep.subr.mxu0 %v1763
  %2014 = vmatpush1.msra.mxu0 %v1762
  %2015 = vmatprep.subr.mxu0 %v1887
  %2016 = vmatpush2.msra.mxu0 %v1886
  %2017 = vmatprep.subr.mxu0 %v1883
  %2018 = vmatpush2.msra.mxu0 %v1882
  %2019 = vmatprep.subr.mxu0 %v1879
  %2020 = vmatpush2.msra.mxu0 %v1878
  %2021 = vmatprep.subr.mxu0 %v1875
  %2022 = vmatpush2.msra.mxu0 %v1874
  %2023 = vmatprep.subr.mxu0 %v1871
  %2024 = vmatpush2.msra.mxu0 %v1870
  %2025 = vmatprep.subr.mxu0 %v1867
  %2026 = vmatpush2.msra.mxu0 %v1866
  %2027 = vmatprep.subr.mxu0 %v1863
  %2028 = vmatpush2.msra.mxu0 %v1862
  %2029 = vmatprep.subr.mxu0 %v1859
  %2030 = vmatpush2.msra.mxu0 %v1858
  %2031 = vmatprep.subr.mxu0 %v1855
  %2032 = vmatpush2.msra.mxu0 %v1854
  %2033 = vmatprep.subr.mxu0 %v1851
  %2034 = vmatpush2.msra.mxu0 %v1850
  %2035 = vmatprep.subr.mxu0 %v1847
  %2036 = vmatpush2.msra.mxu0 %v1846
  %2037 = vmatprep.subr.mxu0 %v1843
  %2038 = vmatpush2.msra.mxu0 %v1842
  %2039 = vmatprep.subr.mxu0 %v1839
  %2040 = vmatpush2.msra.mxu0 %v1838
  %2041 = vmatprep.subr.mxu0 %v1835
  %2042 = vmatpush2.msra.mxu0 %v1834
  %2043 = vmatprep.subr.mxu0 %v1831
  %2044 = vmatpush2.msra.mxu0 %v1830
  %2045 = vmatprep.subr.mxu0 %v1827
  %2046 = vmatpush2.msra.mxu0 %v1826
  %2047 = vmatprep.mubr.f32.mxu0 %v1633
  %2048 = vmatmul.mubr.f32.gmra.mxu0 %v1632
  %v2049 = vpop.f32.mrf.mxu0
  %v2050 = vadd.f32 %v1979, %v2049
  %v2051 = vpop.f32.mrf.mxu0
  %v2052 = vadd.f32 %v1981, %v2051
  %2053 = vdwg.mxu0
  %2054 = vmatprep.subr.mxu0 %v1697
  %2055 = vmatpush1.msra.mxu0 %v1696
  %2056 = vmatprep.subr.mxu0 %v1693
  %2057 = vmatpush1.msra.mxu0 %v1692
  %2058 = vmatprep.subr.mxu0 %v1689
  %2059 = vmatpush1.msra.mxu0 %v1688
  %2060 = vmatprep.subr.mxu0 %v1685
  %2061 = vmatpush1.msra.mxu0 %v1684
  %2062 = vmatprep.subr.mxu0 %v1681
  %2063 = vmatpush1.msra.mxu0 %v1680
  %2064 = vmatprep.subr.mxu0 %v1677
  %2065 = vmatpush1.msra.mxu0 %v1676
  %2066 = vmatprep.subr.mxu0 %v1673
  %2067 = vmatpush1.msra.mxu0 %v1672
  %2068 = vmatprep.subr.mxu0 %v1669
  %2069 = vmatpush1.msra.mxu0 %v1668
  %2070 = vmatprep.subr.mxu0 %v1665
  %2071 = vmatpush1.msra.mxu0 %v1664
  %2072 = vmatprep.subr.mxu0 %v1661
  %2073 = vmatpush1.msra.mxu0 %v1660
  %2074 = vmatprep.subr.mxu0 %v1657
  %2075 = vmatpush1.msra.mxu0 %v1656
  %2076 = vmatprep.subr.mxu0 %v1653
  %2077 = vmatpush1.msra.mxu0 %v1652
  %2078 = vmatprep.subr.mxu0 %v1649
  %2079 = vmatpush1.msra.mxu0 %v1648
  %2080 = vmatprep.subr.mxu0 %v1645
  %2081 = vmatpush1.msra.mxu0 %v1644
  %2082 = vmatprep.subr.mxu0 %v1641
  %2083 = vmatpush1.msra.mxu0 %v1640
  %2084 = vmatprep.subr.mxu0 %v1637
  %2085 = vmatpush1.msra.mxu0 %v1636
  %2086 = vmatprep.subr.mxu0 %v1761
  %2087 = vmatpush2.msra.mxu0 %v1760
  %2088 = vmatprep.subr.mxu0 %v1757
  %2089 = vmatpush2.msra.mxu0 %v1756
  %2090 = vmatprep.subr.mxu0 %v1753
  %2091 = vmatpush2.msra.mxu0 %v1752
  %2092 = vmatprep.subr.mxu0 %v1749
  %2093 = vmatpush2.msra.mxu0 %v1748
  %2094 = vmatprep.subr.mxu0 %v1745
  %2095 = vmatpush2.msra.mxu0 %v1744
  %2096 = vmatprep.subr.mxu0 %v1741
  %2097 = vmatpush2.msra.mxu0 %v1740
  %2098 = vmatprep.subr.mxu0 %v1737
  %2099 = vmatpush2.msra.mxu0 %v1736
  %2100 = vmatprep.subr.mxu0 %v1733
  %2101 = vmatpush2.msra.mxu0 %v1732
  %2102 = vmatprep.subr.mxu0 %v1729
  %2103 = vmatpush2.msra.mxu0 %v1728
  %2104 = vmatprep.subr.mxu0 %v1725
  %2105 = vmatpush2.msra.mxu0 %v1724
  %2106 = vmatprep.subr.mxu0 %v1721
  %2107 = vmatpush2.msra.mxu0 %v1720
  %2108 = vmatprep.subr.mxu0 %v1717
  %2109 = vmatpush2.msra.mxu0 %v1716
  %2110 = vmatprep.subr.mxu0 %v1713
  %2111 = vmatpush2.msra.mxu0 %v1712
  %2112 = vmatprep.subr.mxu0 %v1709
  %2113 = vmatpush2.msra.mxu0 %v1708
  %2114 = vmatprep.subr.mxu0 %v1705
  %2115 = vmatpush2.msra.mxu0 %v1704
  %2116 = vmatprep.subr.mxu0 %v1701
  %2117 = vmatpush2.msra.mxu0 %v1700
  %2118 = vmatprep.mubr.f32.mxu0 %v1631
  %2119 = vmatmul.mubr.f32.gmra.mxu0 %v1630
  %v2120 = vpop.f32.mrf.mxu0
  %v2121 = vadd.f32 %v1903, %v2120
  %v2122 = vpop.f32.mrf.mxu0
  %v2123 = vadd.f32 %v1907, %v2122
  %2124 = vdwg.mxu0
  %2125 = vmatprep.subr.mxu0 %v1825
  %2126 = vmatpush1.msra.mxu0 %v1824
  %2127 = vmatprep.subr.mxu0 %v1821
  %2128 = vmatpush1.msra.mxu0 %v1820
  %2129 = vmatprep.subr.mxu0 %v1817
  %2130 = vmatpush1.msra.mxu0 %v1816
  %2131 = vmatprep.subr.mxu0 %v1813
  %2132 = vmatpush1.msra.mxu0 %v1812
  %2133 = vmatprep.subr.mxu0 %v1809
  %2134 = vmatpush1.msra.mxu0 %v1808
  %2135 = vmatprep.subr.mxu0 %v1805
  %2136 = vmatpush1.msra.mxu0 %v1804
  %2137 = vmatprep.subr.mxu0 %v1801
  %2138 = vmatpush1.msra.mxu0 %v1800
  %2139 = vmatprep.subr.mxu0 %v1797
  %2140 = vmatpush1.msra.mxu0 %v1796
  %2141 = vmatprep.subr.mxu0 %v1793
  %2142 = vmatpush1.msra.mxu0 %v1792
  %2143 = vmatprep.subr.mxu0 %v1789
  %2144 = vmatpush1.msra.mxu0 %v1788
  %2145 = vmatprep.subr.mxu0 %v1785
  %2146 = vmatpush1.msra.mxu0 %v1784
  %2147 = vmatprep.subr.mxu0 %v1781
  %2148 = vmatpush1.msra.mxu0 %v1780
  %2149 = vmatprep.subr.mxu0 %v1777
  %2150 = vmatpush1.msra.mxu0 %v1776
  %2151 = vmatprep.subr.mxu0 %v1773
  %2152 = vmatpush1.msra.mxu0 %v1772
  %2153 = vmatprep.subr.mxu0 %v1769
  %2154 = vmatpush1.msra.mxu0 %v1768
  %2155 = vmatprep.subr.mxu0 %v1765
  %2156 = vmatpush1.msra.mxu0 %v1764
  %2157 = vmatprep.subr.mxu0 %v1889
  %2158 = vmatpush2.msra.mxu0 %v1888
  %2159 = vmatprep.subr.mxu0 %v1885
  %2160 = vmatpush2.msra.mxu0 %v1884
  %2161 = vmatprep.subr.mxu0 %v1881
  %2162 = vmatpush2.msra.mxu0 %v1880
  %2163 = vmatprep.subr.mxu0 %v1877
  %2164 = vmatpush2.msra.mxu0 %v1876
  %2165 = vmatprep.subr.mxu0 %v1873
  %2166 = vmatpush2.msra.mxu0 %v1872
  %2167 = vmatprep.subr.mxu0 %v1869
  %2168 = vmatpush2.msra.mxu0 %v1868
  %2169 = vmatprep.subr.mxu0 %v1865
  %2170 = vmatpush2.msra.mxu0 %v1864
  %2171 = vmatprep.subr.mxu0 %v1861
  %2172 = vmatpush2.msra.mxu0 %v1860
  %2173 = vmatprep.subr.mxu0 %v1857
  %2174 = vmatpush2.msra.mxu0 %v1856
  %2175 = vmatprep.subr.mxu0 %v1853
  %2176 = vmatpush2.msra.mxu0 %v1852
  %2177 = vmatprep.subr.mxu0 %v1849
  %2178 = vmatpush2.msra.mxu0 %v1848
  %2179 = vmatprep.subr.mxu0 %v1845
  %2180 = vmatpush2.msra.mxu0 %v1844
  %2181 = vmatprep.subr.mxu0 %v1841
  %2182 = vmatpush2.msra.mxu0 %v1840
  %2183 = vmatprep.subr.mxu0 %v1837
  %2184 = vmatpush2.msra.mxu0 %v1836
  %2185 = vmatprep.subr.mxu0 %v1833
  %2186 = vmatpush2.msra.mxu0 %v1832
  %2187 = vmatprep.subr.mxu0 %v1829
  %2188 = vmatpush2.msra.mxu0 %v1828
  %2189 = vmatprep.mubr.f32.mxu0 %v1633
  %2190 = vmatmul.mubr.f32.gmra.mxu0 %v1632
  %v2191 = vpop.f32.mrf.mxu0
  %v2192 = vadd.f32 %v2121, %v2191
  %v2193 = vpop.f32.mrf.mxu0
  %v2194 = vadd.f32 %v2123, %v2193
  %2195 = vdwg.mxu0
  %v2196 = vmax.f32 %v2050, 0.0
  %v2197 = vmax.f32 %v2052, 0.0
  %v2198 = vmax.f32 %v2192, 0.0
  %v2199 = vmax.f32 %v2194, 0.0
  %v2200 = vld [vmem:[%s10] sm:$0xff]
  %v2201 = vld [vmem:[%s10 + $0x8] sm:$0xff]
  %v2202 = vld [vmem:[%s10 + $0x10] sm:$0xff]
  %v2203 = vld [vmem:[%s10 + $0x18] sm:$0xff]
  %v2204 = vld [vmem:[%s10 + $0x20] sm:$0xff]
  %v2205 = vld [vmem:[%s10 + $0x28] sm:$0xff]
  %v2206 = vld [vmem:[%s10 + $0x30] sm:$0xff]
  %v2207 = vld [vmem:[%s10 + $0x38] sm:$0xff]
  %v2208 = vld [vmem:[%s10 + $0x40] sm:$0xff]
  %v2209 = vld [vmem:[%s10 + $0x48] sm:$0xff]
  %v2210 = vld [vmem:[%s10 + $0x50] sm:$0xff]
  %v2211 = vld [vmem:[%s10 + $0x58] sm:$0xff]
  %v2212 = vld [vmem:[%s10 + $0x60] sm:$0xff]
  %v2213 = vld [vmem:[%s10 + $0x68] sm:$0xff]
  %v2214 = vld [vmem:[%s10 + $0x70] sm:$0xff]
  %v2215 = vld [vmem:[%s10 + $0x78] sm:$0xff]
  %v2216 = vld [vmem:[%s10 + $0x80] sm:$0xff]
  %v2217 = vld [vmem:[%s10 + $0x88] sm:$0xff]
  %v2218 = vld [vmem:[%s10 + $0x90] sm:$0xff]
  %v2219 = vld [vmem:[%s10 + $0x98] sm:$0xff]
  %v2220 = vld [vmem:[%s10 + $0xa0] sm:$0xff]
  %v2221 = vld [vmem:[%s10 + $0xa8] sm:$0xff]
  %v2222 = vld [vmem:[%s10 + $0xb0] sm:$0xff]
  %v2223 = vld [vmem:[%s10 + $0xb8] sm:$0xff]
  %v2224 = vld [vmem:[%s10 + $0xc0] sm:$0xff]
  %v2225 = vld [vmem:[%s10 + $0xc8] sm:$0xff]
  %v2226 = vld [vmem:[%s10 + $0xd0] sm:$0xff]
  %v2227 = vld [vmem:[%s10 + $0xd8] sm:$0xff]
  %v2228 = vld [vmem:[%s10 + $0xe0] sm:$0xff]
  %v2229 = vld [vmem:[%s10 + $0xe8] sm:$0xff]
  %v2230 = vld [vmem:[%s10 + $0xf0] sm:$0xff]
  %v2231 = vld [vmem:[%s10 + $0xf8] sm:$0xff]
  %v2232 = vld [vmem:[%s10 + $0x100] sm:$0xff]
  %v2233 = vld [vmem:[%s10 + $0x108] sm:$0xff]
  %v2234 = vld [vmem:[%s10 + $0x110] sm:$0xff]
  %v2235 = vld [vmem:[%s10 + $0x118] sm:$0xff]
  %v2236 = vld [vmem:[%s10 + $0x120] sm:$0xff]
  %v2237 = vld [vmem:[%s10 + $0x128] sm:$0xff]
  %v2238 = vld [vmem:[%s10 + $0x130] sm:$0xff]
  %v2239 = vld [vmem:[%s10 + $0x138] sm:$0xff]
  %v2240 = vld [vmem:[%s10 + $0x140] sm:$0xff]
  %v2241 = vld [vmem:[%s10 + $0x148] sm:$0xff]
  %v2242 = vld [vmem:[%s10 + $0x150] sm:$0xff]
  %v2243 = vld [vmem:[%s10 + $0x158] sm:$0xff]
  %v2244 = vld [vmem:[%s10 + $0x160] sm:$0xff]
  %v2245 = vld [vmem:[%s10 + $0x168] sm:$0xff]
  %v2246 = vld [vmem:[%s10 + $0x170] sm:$0xff]
  %v2247 = vld [vmem:[%s10 + $0x178] sm:$0xff]
  %v2248 = vld [vmem:[%s10 + $0x180] sm:$0xff]
  %v2249 = vld [vmem:[%s10 + $0x188] sm:$0xff]
  %v2250 = vld [vmem:[%s10 + $0x190] sm:$0xff]
  %v2251 = vld [vmem:[%s10 + $0x198] sm:$0xff]
  %v2252 = vld [vmem:[%s10 + $0x1a0] sm:$0xff]
  %v2253 = vld [vmem:[%s10 + $0x1a8] sm:$0xff]
  %v2254 = vld [vmem:[%s10 + $0x1b0] sm:$0xff]
  %v2255 = vld [vmem:[%s10 + $0x1b8] sm:$0xff]
  %v2256 = vld [vmem:[%s10 + $0x1c0] sm:$0xff]
  %v2257 = vld [vmem:[%s10 + $0x1c8] sm:$0xff]
  %v2258 = vld [vmem:[%s10 + $0x1d0] sm:$0xff]
  %v2259 = vld [vmem:[%s10 + $0x1d8] sm:$0xff]
  %v2260 = vld [vmem:[%s10 + $0x1e0] sm:$0xff]
  %v2261 = vld [vmem:[%s10 + $0x1e8] sm:$0xff]
  %v2262 = vld [vmem:[%s10 + $0x1f0] sm:$0xff]
  %v2263 = vld [vmem:[%s10 + $0x1f8] sm:$0xff]
  %v2264 = vld [vmem:[%s10 + $0x200] sm:$0xff]
  %v2265 = vld [vmem:[%s10 + $0x208] sm:$0xff]
  %v2266 = vld [vmem:[%s10 + $0x210] sm:$0xff]
  %v2267 = vld [vmem:[%s10 + $0x218] sm:$0xff]
  %v2268 = vld [vmem:[%s10 + $0x220] sm:$0xff]
  %v2269 = vld [vmem:[%s10 + $0x228] sm:$0xff]
  %v2270 = vld [vmem:[%s10 + $0x230] sm:$0xff]
  %v2271 = vld [vmem:[%s10 + $0x238] sm:$0xff]
  %v2272 = vld [vmem:[%s10 + $0x240] sm:$0xff]
  %v2273 = vld [vmem:[%s10 + $0x248] sm:$0xff]
  %v2274 = vld [vmem:[%s10 + $0x250] sm:$0xff]
  %v2275 = vld [vmem:[%s10 + $0x258] sm:$0xff]
  %v2276 = vld [vmem:[%s10 + $0x260] sm:$0xff]
  %v2277 = vld [vmem:[%s10 + $0x268] sm:$0xff]
  %v2278 = vld [vmem:[%s10 + $0x270] sm:$0xff]
  %v2279 = vld [vmem:[%s10 + $0x278] sm:$0xff]
  %v2280 = vld [vmem:[%s10 + $0x280] sm:$0xff]
  %v2281 = vld [vmem:[%s10 + $0x288] sm:$0xff]
  %v2282 = vld [vmem:[%s10 + $0x290] sm:$0xff]
  %v2283 = vld [vmem:[%s10 + $0x298] sm:$0xff]
  %v2284 = vld [vmem:[%s10 + $0x2a0] sm:$0xff]
  %v2285 = vld [vmem:[%s10 + $0x2a8] sm:$0xff]
  %v2286 = vld [vmem:[%s10 + $0x2b0] sm:$0xff]
  %v2287 = vld [vmem:[%s10 + $0x2b8] sm:$0xff]
  %v2288 = vld [vmem:[%s10 + $0x2c0] sm:$0xff]
  %v2289 = vld [vmem:[%s10 + $0x2c8] sm:$0xff]
  %v2290 = vld [vmem:[%s10 + $0x2d0] sm:$0xff]
  %v2291 = vld [vmem:[%s10 + $0x2d8] sm:$0xff]
  %v2292 = vld [vmem:[%s10 + $0x2e0] sm:$0xff]
  %v2293 = vld [vmem:[%s10 + $0x2e8] sm:$0xff]
  %v2294 = vld [vmem:[%s10 + $0x2f0] sm:$0xff]
  %v2295 = vld [vmem:[%s10 + $0x2f8] sm:$0xff]
  %v2296 = vld [vmem:[%s10 + $0x300] sm:$0xff]
  %v2297 = vld [vmem:[%s10 + $0x308] sm:$0xff]
  %v2298 = vld [vmem:[%s10 + $0x310] sm:$0xff]
  %v2299 = vld [vmem:[%s10 + $0x318] sm:$0xff]
  %v2300 = vld [vmem:[%s10 + $0x320] sm:$0xff]
  %v2301 = vld [vmem:[%s10 + $0x328] sm:$0xff]
  %v2302 = vld [vmem:[%s10 + $0x330] sm:$0xff]
  %v2303 = vld [vmem:[%s10 + $0x338] sm:$0xff]
  %v2304 = vld [vmem:[%s10 + $0x340] sm:$0xff]
  %v2305 = vld [vmem:[%s10 + $0x348] sm:$0xff]
  %v2306 = vld [vmem:[%s10 + $0x350] sm:$0xff]
  %v2307 = vld [vmem:[%s10 + $0x358] sm:$0xff]
  %v2308 = vld [vmem:[%s10 + $0x360] sm:$0xff]
  %v2309 = vld [vmem:[%s10 + $0x368] sm:$0xff]
  %v2310 = vld [vmem:[%s10 + $0x370] sm:$0xff]
  %v2311 = vld [vmem:[%s10 + $0x378] sm:$0xff]
  %v2312 = vld [vmem:[%s10 + $0x380] sm:$0xff]
  %v2313 = vld [vmem:[%s10 + $0x388] sm:$0xff]
  %v2314 = vld [vmem:[%s10 + $0x390] sm:$0xff]
  %v2315 = vld [vmem:[%s10 + $0x398] sm:$0xff]
  %v2316 = vld [vmem:[%s10 + $0x3a0] sm:$0xff]
  %v2317 = vld [vmem:[%s10 + $0x3a8] sm:$0xff]
  %v2318 = vld [vmem:[%s10 + $0x3b0] sm:$0xff]
  %v2319 = vld [vmem:[%s10 + $0x3b8] sm:$0xff]
  %v2320 = vld [vmem:[%s10 + $0x3c0] sm:$0xff]
  %v2321 = vld [vmem:[%s10 + $0x3c8] sm:$0xff]
  %v2322 = vld [vmem:[%s10 + $0x3d0] sm:$0xff]
  %v2323 = vld [vmem:[%s10 + $0x3d8] sm:$0xff]
  %v2324 = vld [vmem:[%s10 + $0x3e0] sm:$0xff]
  %v2325 = vld [vmem:[%s10 + $0x3e8] sm:$0xff]
  %v2326 = vld [vmem:[%s10 + $0x3f0] sm:$0xff]
  %v2327 = vld [vmem:[%s10 + $0x3f8] sm:$0xff]
  %v2328 = vld [vmem:[%s1] sm:$0xff]
  %v2329 = vld [vmem:[%s11] sm:$0xff]
  %v2330 = vld [vmem:[%s11 + $0x8] sm:$0xff]
  %v2331 = vld [vmem:[%s11 + $0x10] sm:$0xff]
  %v2332 = vld [vmem:[%s11 + $0x18] sm:$0xff]
  %v2333 = vld [vmem:[%s11 + $0x20] sm:$0xff]
  %v2334 = vld [vmem:[%s11 + $0x28] sm:$0xff]
  %v2335 = vld [vmem:[%s11 + $0x30] sm:$0xff]
  %v2336 = vld [vmem:[%s11 + $0x38] sm:$0xff]
  %v2337 = vld [vmem:[%s11 + $0x40] sm:$0xff]
  %v2338 = vld [vmem:[%s11 + $0x48] sm:$0xff]
  %v2339 = vld [vmem:[%s11 + $0x50] sm:$0xff]
  %v2340 = vld [vmem:[%s11 + $0x58] sm:$0xff]
  %v2341 = vld [vmem:[%s11 + $0x60] sm:$0xff]
  %v2342 = vld [vmem:[%s11 + $0x68] sm:$0xff]
  %v2343 = vld [vmem:[%s11 + $0x70] sm:$0xff]
  %v2344 = vld [vmem:[%s11 + $0x78] sm:$0xff]
  %v2345 = vld [vmem:[%s11 + $0x80] sm:$0xff]
  %v2346 = vld [vmem:[%s11 + $0x88] sm:$0xff]
  %v2347 = vld [vmem:[%s11 + $0x90] sm:$0xff]
  %v2348 = vld [vmem:[%s11 + $0x98] sm:$0xff]
  %v2349 = vld [vmem:[%s11 + $0xa0] sm:$0xff]
  %v2350 = vld [vmem:[%s11 + $0xa8] sm:$0xff]
  %v2351 = vld [vmem:[%s11 + $0xb0] sm:$0xff]
  %v2352 = vld [vmem:[%s11 + $0xb8] sm:$0xff]
  %v2353 = vld [vmem:[%s11 + $0xc0] sm:$0xff]
  %v2354 = vld [vmem:[%s11 + $0xc8] sm:$0xff]
  %v2355 = vld [vmem:[%s11 + $0xd0] sm:$0xff]
  %v2356 = vld [vmem:[%s11 + $0xd8] sm:$0xff]
  %v2357 = vld [vmem:[%s11 + $0xe0] sm:$0xff]
  %v2358 = vld [vmem:[%s11 + $0xe8] sm:$0xff]
  %v2359 = vld [vmem:[%s11 + $0xf0] sm:$0xff]
  %v2360 = vld [vmem:[%s11 + $0xf8] sm:$0xff]
  %2361 = vmatprep.subr.mxu0 %v2360
  %2362 = vmatpush1.msra.mxu0 %v2359
  %2363 = vmatprep.subr.mxu0 %v2358
  %2364 = vmatpush1.msra.mxu0 %v2357
  %2365 = vmatprep.subr.mxu0 %v2356
  %2366 = vmatpush1.msra.mxu0 %v2355
  %2367 = vmatprep.subr.mxu0 %v2354
  %2368 = vmatpush1.msra.mxu0 %v2353
  %2369 = vmatprep.subr.mxu0 %v2352
  %2370 = vmatpush1.msra.mxu0 %v2351
  %2371 = vmatprep.subr.mxu0 %v2350
  %2372 = vmatpush1.msra.mxu0 %v2349
  %2373 = vmatprep.subr.mxu0 %v2348
  %2374 = vmatpush1.msra.mxu0 %v2347
  %2375 = vmatprep.subr.mxu0 %v2346
  %2376 = vmatpush1.msra.mxu0 %v2345
  %2377 = vmatprep.subr.mxu0 %v2344
  %2378 = vmatpush1.msra.mxu0 %v2343
  %2379 = vmatprep.subr.mxu0 %v2342
  %2380 = vmatpush1.msra.mxu0 %v2341
  %2381 = vmatprep.subr.mxu0 %v2340
  %2382 = vmatpush1.msra.mxu0 %v2339
  %2383 = vmatprep.subr.mxu0 %v2338
  %2384 = vmatpush1.msra.mxu0 %v2337
  %2385 = vmatprep.subr.mxu0 %v2336
  %2386 = vmatpush1.msra.mxu0 %v2335
  %2387 = vmatprep.subr.mxu0 %v2334
  %2388 = vmatpush1.msra.mxu0 %v2333
  %2389 = vmatprep.subr.mxu0 %v2332
  %2390 = vmatpush1.msra.mxu0 %v2331
  %2391 = vmatprep.subr.mxu0 %v2330
  %2392 = vmatpush1.msra.mxu0 %v2329
  %2393 = vmatprep.subr.mxu0 0.0
  %2394 = vmatpush2.msra.mxu0 0.0
  %2395 = vmatprep.subr.mxu0 0.0
  %2396 = vmatpush2.msra.mxu0 0.0
  %2397 = vmatprep.subr.mxu0 0.0
  %2398 = vmatpush2.msra.mxu0 0.0
  %2399 = vmatprep.subr.mxu0 0.0
  %2400 = vmatpush2.msra.mxu0 0.0
  %2401 = vmatprep.subr.mxu0 0.0
  %2402 = vmatpush2.msra.mxu0 0.0
  %2403 = vmatprep.subr.mxu0 0.0
  %2404 = vmatpush2.msra.mxu0 0.0
  %2405 = vmatprep.subr.mxu0 0.0
  %2406 = vmatpush2.msra.mxu0 0.0
  %2407 = vmatprep.subr.mxu0 0.0
  %2408 = vmatpush2.msra.mxu0 0.0
  %2409 = vmatprep.subr.mxu0 0.0
  %2410 = vmatpush2.msra.mxu0 0.0
  %2411 = vmatprep.subr.mxu0 0.0
  %2412 = vmatpush2.msra.mxu0 0.0
  %2413 = vmatprep.subr.mxu0 0.0
  %2414 = vmatpush2.msra.mxu0 0.0
  %2415 = vmatprep.subr.mxu0 0.0
  %2416 = vmatpush2.msra.mxu0 0.0
  %2417 = vmatprep.subr.mxu0 0.0
  %2418 = vmatpush2.msra.mxu0 0.0
  %2419 = vmatprep.subr.mxu0 0.0
  %2420 = vmatpush2.msra.mxu0 0.0
  %2421 = vmatprep.subr.mxu0 0.0
  %2422 = vmatpush2.msra.mxu0 0.0
  %2423 = vmatprep.subr.mxu0 0.0
  %2424 = vmatpush2.msra.mxu0 0.0
  %2425 = vmatprep.mubr.f32.mxu0 0.0
  %2426 = vmatmul.mubr.f32.gmra.mxu0 %v2328
  %v2427 = vpop.f32.mrf.mxu0
  %v2428 = vadd.f32 0.0, %v2427
  %v2429 = vpop.f32.mrf.mxu0
  %v2430 = vadd.f32 0.0, %v2429
  %2431 = vdwg.mxu0
  %2432 = vmatprep.subr.mxu0 %v2231
  %2433 = vmatpush1.msra.mxu0 %v2230
  %2434 = vmatprep.subr.mxu0 %v2229
  %2435 = vmatpush1.msra.mxu0 %v2228
  %2436 = vmatprep.subr.mxu0 %v2227
  %2437 = vmatpush1.msra.mxu0 %v2226
  %2438 = vmatprep.subr.mxu0 %v2225
  %2439 = vmatpush1.msra.mxu0 %v2224
  %2440 = vmatprep.subr.mxu0 %v2223
  %2441 = vmatpush1.msra.mxu0 %v2222
  %2442 = vmatprep.subr.mxu0 %v2221
  %2443 = vmatpush1.msra.mxu0 %v2220
  %2444 = vmatprep.subr.mxu0 %v2219
  %2445 = vmatpush1.msra.mxu0 %v2218
  %2446 = vmatprep.subr.mxu0 %v2217
  %2447 = vmatpush1.msra.mxu0 %v2216
  %2448 = vmatprep.subr.mxu0 %v2215
  %2449 = vmatpush1.msra.mxu0 %v2214
  %2450 = vmatprep.subr.mxu0 %v2213
  %2451 = vmatpush1.msra.mxu0 %v2212
  %2452 = vmatprep.subr.mxu0 %v2211
  %2453 = vmatpush1.msra.mxu0 %v2210
  %2454 = vmatprep.subr.mxu0 %v2209
  %2455 = vmatpush1.msra.mxu0 %v2208
  %2456 = vmatprep.subr.mxu0 %v2207
  %2457 = vmatpush1.msra.mxu0 %v2206
  %2458 = vmatprep.subr.mxu0 %v2205
  %2459 = vmatpush1.msra.mxu0 %v2204
  %2460 = vmatprep.subr.mxu0 %v2203
  %2461 = vmatpush1.msra.mxu0 %v2202
  %2462 = vmatprep.subr.mxu0 %v2201
  %2463 = vmatpush1.msra.mxu0 %v2200
  %2464 = vmatprep.subr.mxu0 %v2263
  %2465 = vmatpush2.msra.mxu0 %v2262
  %2466 = vmatprep.subr.mxu0 %v2261
  %2467 = vmatpush2.msra.mxu0 %v2260
  %2468 = vmatprep.subr.mxu0 %v2259
  %2469 = vmatpush2.msra.mxu0 %v2258
  %2470 = vmatprep.subr.mxu0 %v2257
  %2471 = vmatpush2.msra.mxu0 %v2256
  %2472 = vmatprep.subr.mxu0 %v2255
  %2473 = vmatpush2.msra.mxu0 %v2254
  %2474 = vmatprep.subr.mxu0 %v2253
  %2475 = vmatpush2.msra.mxu0 %v2252
  %2476 = vmatprep.subr.mxu0 %v2251
  %2477 = vmatpush2.msra.mxu0 %v2250
  %2478 = vmatprep.subr.mxu0 %v2249
  %2479 = vmatpush2.msra.mxu0 %v2248
  %2480 = vmatprep.subr.mxu0 %v2247
  %2481 = vmatpush2.msra.mxu0 %v2246
  %2482 = vmatprep.subr.mxu0 %v2245
  %2483 = vmatpush2.msra.mxu0 %v2244
  %2484 = vmatprep.subr.mxu0 %v2243
  %2485 = vmatpush2.msra.mxu0 %v2242
  %2486 = vmatprep.subr.mxu0 %v2241
  %2487 = vmatpush2.msra.mxu0 %v2240
  %2488 = vmatprep.subr.mxu0 %v2239
  %2489 = vmatpush2.msra.mxu0 %v2238
  %2490 = vmatprep.subr.mxu0 %v2237
  %2491 = vmatpush2.msra.mxu0 %v2236
  %2492 = vmatprep.subr.mxu0 %v2235
  %2493 = vmatpush2.msra.mxu0 %v2234
  %2494 = vmatprep.subr.mxu0 %v2233
  %2495 = vmatpush2.msra.mxu0 %v2232
  %2496 = vmatprep.mubr.f32.mxu0 %v2197
  %2497 = vmatmul.mubr.f32.gmra.mxu0 %v2196
  %v2498 = vpop.f32.mrf.mxu0
  %v2499 = vadd.f32 %v2428, %v2498
  %v2500 = vpop.f32.mrf.mxu0
  %v2501 = vadd.f32 %v2430, %v2500
  %2502 = vdwg.mxu0
  %2503 = vmatprep.subr.mxu0 %v2295
  %2504 = vmatpush1.msra.mxu0 %v2294
  %2505 = vmatprep.subr.mxu0 %v2293
  %2506 = vmatpush1.msra.mxu0 %v2292
  %2507 = vmatprep.subr.mxu0 %v2291
  %2508 = vmatpush1.msra.mxu0 %v2290
  %2509 = vmatprep.subr.mxu0 %v2289
  %2510 = vmatpush1.msra.mxu0 %v2288
  %2511 = vmatprep.subr.mxu0 %v2287
  %2512 = vmatpush1.msra.mxu0 %v2286
  %2513 = vmatprep.subr.mxu0 %v2285
  %2514 = vmatpush1.msra.mxu0 %v2284
  %2515 = vmatprep.subr.mxu0 %v2283
  %2516 = vmatpush1.msra.mxu0 %v2282
  %2517 = vmatprep.subr.mxu0 %v2281
  %2518 = vmatpush1.msra.mxu0 %v2280
  %2519 = vmatprep.subr.mxu0 %v2279
  %2520 = vmatpush1.msra.mxu0 %v2278
  %2521 = vmatprep.subr.mxu0 %v2277
  %2522 = vmatpush1.msra.mxu0 %v2276
  %2523 = vmatprep.subr.mxu0 %v2275
  %2524 = vmatpush1.msra.mxu0 %v2274
  %2525 = vmatprep.subr.mxu0 %v2273
  %2526 = vmatpush1.msra.mxu0 %v2272
  %2527 = vmatprep.subr.mxu0 %v2271
  %2528 = vmatpush1.msra.mxu0 %v2270
  %2529 = vmatprep.subr.mxu0 %v2269
  %2530 = vmatpush1.msra.mxu0 %v2268
  %2531 = vmatprep.subr.mxu0 %v2267
  %2532 = vmatpush1.msra.mxu0 %v2266
  %2533 = vmatprep.subr.mxu0 %v2265
  %2534 = vmatpush1.msra.mxu0 %v2264
  %2535 = vmatprep.subr.mxu0 %v2327
  %2536 = vmatpush2.msra.mxu0 %v2326
  %2537 = vmatprep.subr.mxu0 %v2325
  %2538 = vmatpush2.msra.mxu0 %v2324
  %2539 = vmatprep.subr.mxu0 %v2323
  %2540 = vmatpush2.msra.mxu0 %v2322
  %2541 = vmatprep.subr.mxu0 %v2321
  %2542 = vmatpush2.msra.mxu0 %v2320
  %2543 = vmatprep.subr.mxu0 %v2319
  %2544 = vmatpush2.msra.mxu0 %v2318
  %2545 = vmatprep.subr.mxu0 %v2317
  %2546 = vmatpush2.msra.mxu0 %v2316
  %2547 = vmatprep.subr.mxu0 %v2315
  %2548 = vmatpush2.msra.mxu0 %v2314
  %2549 = vmatprep.subr.mxu0 %v2313
  %2550 = vmatpush2.msra.mxu0 %v2312
  %2551 = vmatprep.subr.mxu0 %v2311
  %2552 = vmatpush2.msra.mxu0 %v2310
  %2553 = vmatprep.subr.mxu0 %v2309
  %2554 = vmatpush2.msra.mxu0 %v2308
  %2555 = vmatprep.subr.mxu0 %v2307
  %2556 = vmatpush2.msra.mxu0 %v2306
  %2557 = vmatprep.subr.mxu0 %v2305
  %2558 = vmatpush2.msra.mxu0 %v2304
  %2559 = vmatprep.subr.mxu0 %v2303
  %2560 = vmatpush2.msra.mxu0 %v2302
  %2561 = vmatprep.subr.mxu0 %v2301
  %2562 = vmatpush2.msra.mxu0 %v2300
  %2563 = vmatprep.subr.mxu0 %v2299
  %2564 = vmatpush2.msra.mxu0 %v2298
  %2565 = vmatprep.subr.mxu0 %v2297
  %2566 = vmatpush2.msra.mxu0 %v2296
  %2567 = vmatprep.mubr.f32.mxu0 %v2199
  %2568 = vmatmul.mubr.f32.gmra.mxu0 %v2198
  %v2569 = vpop.f32.mrf.mxu0
  %v2570 = vadd.f32 %v2499, %v2569
  %v2571 = vpop.f32.mrf.mxu0
  %v2572 = vadd.f32 %v2501, %v2571
  %2573 = vdwg.mxu0
  %v2574 = vld [vmem:[%s12] sm:$0x3]
  %v2576 = vlaneseq
  %v2577 = vshrl.u32 %v2576, 7
  %v2578 = vsub.s32 0, %v2577
  %v2579 = vrot.slane %v2574, %v2578
  %v2580 = vlaneseq
  %v2581 = vshrl.u32 %v2580, 7
  %v2582 = vsub.s32 1, %v2581
  %v2583 = vrot.slane %v2574, %v2582
  %v2586 = vadd.f32 %v2570, %v2579
  %v2587 = vadd.f32 %v2572, %v2583
  %v2588 = vmax.f32 %v2586, 0.0
  %v2589 = vmax.f32 %v2587, 0.0
  %v2590 = vld [vmem:[%s13] sm:$0xff]
  %v2591 = vld [vmem:[%s13 + $0x8] sm:$0xff]
  %v2592 = vld [vmem:[%s13 + $0x10] sm:$0xff]
  %v2593 = vld [vmem:[%s13 + $0x18] sm:$0xff]
  %v2594 = vld [vmem:[%s13 + $0x20] sm:$0xff]
  %v2595 = vld [vmem:[%s13 + $0x28] sm:$0xff]
  %v2596 = vld [vmem:[%s13 + $0x30] sm:$0xff]
  %v2597 = vld [vmem:[%s13 + $0x38] sm:$0xff]
  %v2598 = vld [vmem:[%s13 + $0x40] sm:$0xff]
  %v2599 = vld [vmem:[%s13 + $0x48] sm:$0xff]
  %v2600 = vld [vmem:[%s13 + $0x50] sm:$0xff]
  %v2601 = vld [vmem:[%s13 + $0x58] sm:$0xff]
  %v2602 = vld [vmem:[%s13 + $0x60] sm:$0xff]
  %v2603 = vld [vmem:[%s13 + $0x68] sm:$0xff]
  %v2604 = vld [vmem:[%s13 + $0x70] sm:$0xff]
  %v2605 = vld [vmem:[%s13 + $0x78] sm:$0xff]
  %v2606 = vld [vmem:[%s13 + $0x80] sm:$0xff]
  %v2607 = vld [vmem:[%s13 + $0x88] sm:$0xff]
  %v2608 = vld [vmem:[%s13 + $0x90] sm:$0xff]
  %v2609 = vld [vmem:[%s13 + $0x98] sm:$0xff]
  %v2610 = vld [vmem:[%s13 + $0xa0] sm:$0xff]
  %v2611 = vld [vmem:[%s13 + $0xa8] sm:$0xff]
  %v2612 = vld [vmem:[%s13 + $0xb0] sm:$0xff]
  %v2613 = vld [vmem:[%s13 + $0xb8] sm:$0xff]
  %v2614 = vld [vmem:[%s13 + $0xc0] sm:$0xff]
  %v2615 = vld [vmem:[%s13 + $0xc8] sm:$0xff]
  %v2616 = vld [vmem:[%s13 + $0xd0] sm:$0xff]
  %v2617 = vld [vmem:[%s13 + $0xd8] sm:$0xff]
  %v2618 = vld [vmem:[%s13 + $0xe0] sm:$0xff]
  %v2619 = vld [vmem:[%s13 + $0xe8] sm:$0xff]
  %v2620 = vld [vmem:[%s13 + $0xf0] sm:$0xff]
  %v2621 = vld [vmem:[%s13 + $0xf8] sm:$0xff]
  %v2622 = vld [vmem:[%s14] sm:$0x1]
  %v2624 = vlaneseq
  %v2625 = vshrl.u32 %v2624, 7
  %v2626 = vsub.s32 0, %v2625
  %v2627 = vrot.slane %v2622, %v2626
  %2629 = vmatprep.subr.mxu0 0.0
  %2630 = vmatpush1.msra.mxu0 %v2605
  %2631 = vmatprep.subr.mxu0 0.0
  %2632 = vmatpush1.msra.mxu0 %v2604
  %2633 = vmatprep.subr.mxu0 0.0
  %2634 = vmatpush1.msra.mxu0 %v2603
  %2635 = vmatprep.subr.mxu0 0.0
  %2636 = vmatpush1.msra.mxu0 %v2602
  %2637 = vmatprep.subr.mxu0 0.0
  %2638 = vmatpush1.msra.mxu0 %v2601
  %2639 = vmatprep.subr.mxu0 0.0
  %2640 = vmatpush1.msra.mxu0 %v2600
  %2641 = vmatprep.subr.mxu0 0.0
  %2642 = vmatpush1.msra.mxu0 %v2599
  %2643 = vmatprep.subr.mxu0 0.0
  %2644 = vmatpush1.msra.mxu0 %v2598
  %2645 = vmatprep.subr.mxu0 0.0
  %2646 = vmatpush1.msra.mxu0 %v2597
  %2647 = vmatprep.subr.mxu0 0.0
  %2648 = vmatpush1.msra.mxu0 %v2596
  %2649 = vmatprep.subr.mxu0 0.0
  %2650 = vmatpush1.msra.mxu0 %v2595
  %2651 = vmatprep.subr.mxu0 0.0
  %2652 = vmatpush1.msra.mxu0 %v2594
  %2653 = vmatprep.subr.mxu0 0.0
  %2654 = vmatpush1.msra.mxu0 %v2593
  %2655 = vmatprep.subr.mxu0 0.0
  %2656 = vmatpush1.msra.mxu0 %v2592
  %2657 = vmatprep.subr.mxu0 0.0
  %2658 = vmatpush1.msra.mxu0 %v2591
  %2659 = vmatprep.subr.mxu0 0.0
  %2660 = vmatpush1.msra.mxu0 %v2590
  %2661 = vmatprep.subr.mxu0 0.0
  %2662 = vmatpush2.msra.mxu0 %v2621
  %2663 = vmatprep.subr.mxu0 0.0
  %2664 = vmatpush2.msra.mxu0 %v2620
  %2665 = vmatprep.subr.mxu0 0.0
  %2666 = vmatpush2.msra.mxu0 %v2619
  %2667 = vmatprep.subr.mxu0 0.0
  %2668 = vmatpush2.msra.mxu0 %v2618
  %2669 = vmatprep.subr.mxu0 0.0
  %2670 = vmatpush2.msra.mxu0 %v2617
  %2671 = vmatprep.subr.mxu0 0.0
  %2672 = vmatpush2.msra.mxu0 %v2616
  %2673 = vmatprep.subr.mxu0 0.0
  %2674 = vmatpush2.msra.mxu0 %v2615
  %2675 = vmatprep.subr.mxu0 0.0
  %2676 = vmatpush2.msra.mxu0 %v2614
  %2677 = vmatprep.subr.mxu0 0.0
  %2678 = vmatpush2.msra.mxu0 %v2613
  %2679 = vmatprep.subr.mxu0 0.0
  %2680 = vmatpush2.msra.mxu0 %v2612
  %2681 = vmatprep.subr.mxu0 0.0
  %2682 = vmatpush2.msra.mxu0 %v2611
  %2683 = vmatprep.subr.mxu0 0.0
  %2684 = vmatpush2.msra.mxu0 %v2610
  %2685 = vmatprep.subr.mxu0 0.0
  %2686 = vmatpush2.msra.mxu0 %v2609
  %2687 = vmatprep.subr.mxu0 0.0
  %2688 = vmatpush2.msra.mxu0 %v2608
  %2689 = vmatprep.subr.mxu0 0.0
  %2690 = vmatpush2.msra.mxu0 %v2607
  %2691 = vmatprep.subr.mxu0 0.0
  %2692 = vmatpush2.msra.mxu0 %v2606
  %2693 = vmatprep.mubr.f32.mxu0 %v2589
  %2694 = vmatmul.mubr.f32.gmra.mxu0 %v2588
  %v2695 = vpop.f32.mrf.mxu0
  %v2696 = vadd.f32 %v2627, %v2695
  %v2697 = vpop.f32.mrf.mxu0
  %2698 = vdwg.mxu0
  %v2699 = vmax.f32 %v2696, 0.0
  %v2700 = vld [vmem:[%s15] sm:$0xff]
  %v2701 = vld [vmem:[%s15 + $0x8] sm:$0xff]
  %v2702 = vld [vmem:[%s15 + $0x10] sm:$0xff]
  %v2703 = vld [vmem:[%s15 + $0x18] sm:$0xff]
  %v2704 = vld [vmem:[%s15 + $0x20] sm:$0xff]
  %v2705 = vld [vmem:[%s15 + $0x28] sm:$0xff]
  %v2706 = vld [vmem:[%s15 + $0x30] sm:$0xff]
  %v2707 = vld [vmem:[%s15 + $0x38] sm:$0xff]
  %v2708 = vld [vmem:[%s15 + $0x40] sm:$0xff]
  %v2709 = vld [vmem:[%s15 + $0x48] sm:$0xff]
  %v2710 = vld [vmem:[%s15 + $0x50] sm:$0xff]
  %v2711 = vld [vmem:[%s15 + $0x58] sm:$0xff]
  %v2712 = vld [vmem:[%s15 + $0x60] sm:$0xff]
  %v2713 = vld [vmem:[%s15 + $0x68] sm:$0xff]
  %v2714 = vld [vmem:[%s15 + $0x70] sm:$0xff]
  %v2715 = vld [vmem:[%s15 + $0x78] sm:$0xff]
  %v2716 = vld [vmem:[%s16] sm:$0x1]
  %v2718 = vlaneseq
  %v2719 = vshrl.u32 %v2718, 7
  %v2720 = vsub.s32 0, %v2719
  %v2721 = vrot.slane %v2716, %v2720
  %2723 = vmatprep.subr.mxu0 0.0
  %2724 = vmatpush1.msra.mxu0 %v2715
  %2725 = vmatprep.subr.mxu0 0.0
  %2726 = vmatpush1.msra.mxu0 %v2714
  %2727 = vmatprep.subr.mxu0 0.0
  %2728 = vmatpush1.msra.mxu0 %v2713
  %2729 = vmatprep.subr.mxu0 0.0
  %2730 = vmatpush1.msra.mxu0 %v2712
  %2731 = vmatprep.subr.mxu0 0.0
  %2732 = vmatpush1.msra.mxu0 %v2711
  %2733 = vmatprep.subr.mxu0 0.0
  %2734 = vmatpush1.msra.mxu0 %v2710
  %2735 = vmatprep.subr.mxu0 0.0
  %2736 = vmatpush1.msra.mxu0 %v2709
  %2737 = vmatprep.subr.mxu0 0.0
  %2738 = vmatpush1.msra.mxu0 %v2708
  %2739 = vmatprep.subr.mxu0 0.0
  %2740 = vmatpush1.msra.mxu0 %v2707
  %2741 = vmatprep.subr.mxu0 0.0
  %2742 = vmatpush1.msra.mxu0 %v2706
  %2743 = vmatprep.subr.mxu0 0.0
  %2744 = vmatpush1.msra.mxu0 %v2705
  %2745 = vmatprep.subr.mxu0 0.0
  %2746 = vmatpush1.msra.mxu0 %v2704
  %2747 = vmatprep.subr.mxu0 0.0
  %2748 = vmatpush1.msra.mxu0 %v2703
  %2749 = vmatprep.subr.mxu0 0.0
  %2750 = vmatpush1.msra.mxu0 %v2702
  %2751 = vmatprep.subr.mxu0 0.0
  %2752 = vmatpush1.msra.mxu0 %v2701
  %2753 = vmatprep.subr.mxu0 0.0
  %2754 = vmatpush1.msra.mxu0 %v2700
  %2755 = vmatprep.subr.mxu0 0.0
  %2756 = vmatpush2.msra.mxu0 0.0
  %2757 = vmatprep.subr.mxu0 0.0
  %2758 = vmatpush2.msra.mxu0 0.0
  %2759 = vmatprep.subr.mxu0 0.0
  %2760 = vmatpush2.msra.mxu0 0.0
  %2761 = vmatprep.subr.mxu0 0.0
  %2762 = vmatpush2.msra.mxu0 0.0
  %2763 = vmatprep.subr.mxu0 0.0
  %2764 = vmatpush2.msra.mxu0 0.0
  %2765 = vmatprep.subr.mxu0 0.0
  %2766 = vmatpush2.msra.mxu0 0.0
  %2767 = vmatprep.subr.mxu0 0.0
  %2768 = vmatpush2.msra.mxu0 0.0
  %2769 = vmatprep.subr.mxu0 0.0
  %2770 = vmatpush2.msra.mxu0 0.0
  %2771 = vmatprep.subr.mxu0 0.0
  %2772 = vmatpush2.msra.mxu0 0.0
  %2773 = vmatprep.subr.mxu0 0.0
  %2774 = vmatpush2.msra.mxu0 0.0
  %2775 = vmatprep.subr.mxu0 0.0
  %2776 = vmatpush2.msra.mxu0 0.0
  %2777 = vmatprep.subr.mxu0 0.0
  %2778 = vmatpush2.msra.mxu0 0.0
  %2779 = vmatprep.subr.mxu0 0.0
  %2780 = vmatpush2.msra.mxu0 0.0
  %2781 = vmatprep.subr.mxu0 0.0
  %2782 = vmatpush2.msra.mxu0 0.0
  %2783 = vmatprep.subr.mxu0 0.0
  %2784 = vmatpush2.msra.mxu0 0.0
  %2785 = vmatprep.subr.mxu0 0.0
  %2786 = vmatpush2.msra.mxu0 0.0
  %2787 = vmatprep.mubr.f32.mxu0 0.0
  %2788 = vmatmul.mubr.f32.gmra.mxu0 %v2699
  %v2789 = vpop.f32.mrf.mxu0
  %v2790 = vadd.f32 %v2721, %v2789
  %v2791 = vpop.f32.mrf.mxu0
  %2792 = vdwg.mxu0
  %2793 = vst [vmem:[%s17] sm:$0xff] %v2790
  // Predicated region
  $region70: #{ppo_value_forward.1} parent=0 // pred_check
    _
  $region71: #{ppo_value_forward.1} parent=0 // pred_check_branch
    %2795 = sbr.rel (0) target = $region73
  $region72: #{ppo_value_forward.1} parent=0 // pred_region
    _
  $region73: #{ppo_value_forward.1} parent=0 // pred_fallthru
    _
  // Predicated region
  $region74: #{ppo_value_forward.1} parent=0 // pred_check
    _
  $region75: #{ppo_value_forward.1} parent=0 // pred_check_branch
    %2797 = sbr.rel (0) target = $region77
  $region76: #{ppo_value_forward.1} parent=0 // pred_region
    _
  $region77: #{ppo_value_forward.1} parent=0 // pred_fallthru
    _

</llo_original>
